<compile_context>
chip_gen: v7x
topology: tpu7x:2x2x1
jax: 0.10.0
libtpu: 0.0.40
codegen_flags: <defaults>
</compile_context>

<pallas_src>
import numpy as np
import jax
import jax.numpy as jnp
from jax.experimental import pallas as pl
from jax.experimental.pallas import tpu as pltpu

# ---- configuration (module defaults, small batch) ----
B = 2            # batch
S = 15           # num_seq (hardcoded 15 in the module)
S_PAD = 16       # sublane-aligned padded sequence length
C, Hh, Ww = 4, 16, 16
F = C * Hh * Ww  # flattened epoch input features = 1024
E = 128          # d_model
NH = 8           # nhead
HD = E // NH     # head dim = 16
DF = 512         # dim_feedforward
NC = 5           # mlp output classes
LANE = 128       # lane-dense output width
LN_EPS = 1e-5
NEG_INF = -1e30


def seq_cross_transformer_kernel(img_ref, enc_w_ref, enc_b_ref, pos_ref,
                                 win_ref, bin_ref, wout_ref, bout_ref,
                                 ln1_g_ref, ln1_b_ref,
                                 w1_ref, b1_ref, w2_ref, b2_ref,
                                 ln2_g_ref, ln2_b_ref,
                                 wm_ref, bm_ref,
                                 attn_out_ref, logits_out_ref,
                                 ctx_ref):
    """One batch element per grid step; every activation slab is (S_PAD, ...)."""

    def layer_norm(v, g, beta):
        mu = jnp.mean(v, axis=-1, keepdims=True)
        var = jnp.mean((v - mu) ** 2, axis=-1, keepdims=True)
        return (v - mu) * jax.lax.rsqrt(var + LN_EPS) * g + beta

    # ---- epoch encoder (stand-in): flatten + Linear(F, E) ----
    feat = jnp.dot(img_ref[...], enc_w_ref[...],
                   preferred_element_type=jnp.float32) + enc_b_ref[...]      # (S_PAD, E)

    # ---- Intra_modal_atten: x += positions, MultiheadAttention, residual, LN ----
    x = feat + pos_ref[...]                                                  # (S_PAD, E)
    qkv = jnp.dot(x, win_ref[...],
                  preferred_element_type=jnp.float32) + bin_ref[...]         # (S_PAD, 3E)

    scale = HD ** -0.5
    q = qkv[:, 0:E] * scale
    k = qkv[:, E:2 * E]
    v = qkv[:, 2 * E:3 * E]

    # Head split via static lane slices stacked on a new leading (batch) axis.
    qh = jnp.stack([q[:, h * HD:(h + 1) * HD] for h in range(NH)], axis=0)   # (NH,S_PAD,HD)
    kh = jnp.stack([k[:, h * HD:(h + 1) * HD] for h in range(NH)], axis=0)
    vh = jnp.stack([v[:, h * HD:(h + 1) * HD] for h in range(NH)], axis=0)

    # Batched q @ k^T over heads (contracting dim 2 with dim 2, batch dim 0).
    sc = jax.lax.dot_general(qh, kh, (((2,), (2,)), ((0,), (0,))),
                             preferred_element_type=jnp.float32)             # (NH,S_PAD,S_PAD)
    key_idx = jax.lax.broadcasted_iota(jnp.int32, (NH, S_PAD, S_PAD), 2)
    sc = jnp.where(key_idx < S, sc, NEG_INF)            # mask padded key column
    sc = sc - jnp.max(sc, axis=-1, keepdims=True)
    p = jnp.exp(sc)
    p = p * pl.reciprocal(jnp.sum(p, axis=-1, keepdims=True), approx=True)

    # Head-averaged attention weights, padded lane-dense to 128 for unmasked stores.
    attn_avg = jnp.mean(p, axis=0)                                           # (S_PAD, S_PAD)
    attn_out_ref[0, :, :] = jnp.concatenate(
        [attn_avg, jnp.zeros((S_PAD, LANE - S_PAD), jnp.float32)], axis=-1)

    # Batched p @ v over heads; scatter per-head slices into the VMEM ctx scratch.
    ctx_h = jax.lax.dot_general(p, vh, (((2,), (1,)), ((0,), (0,))),
                                preferred_element_type=jnp.float32)          # (NH,S_PAD,HD)
    for h in range(NH):
        ctx_ref[:, h * HD:(h + 1) * HD] = ctx_h[h]

    attended = jnp.dot(ctx_ref[...], wout_ref[...],
                       preferred_element_type=jnp.float32) + bout_ref[...]
    out1 = layer_norm(x + attended, ln1_g_ref[...], ln1_b_ref[...])

    # ---- Feed_forward: LN(src + linear2(relu(linear1(src)))) ----
    hdn = jnp.maximum(
        jnp.dot(out1, w1_ref[...], preferred_element_type=jnp.float32) + b1_ref[...],
        0.0)
    src2 = jnp.dot(hdn, w2_ref[...],
                   preferred_element_type=jnp.float32) + b2_ref[...]
    out2 = layer_norm(out1 + src2, ln2_g_ref[...], ln2_b_ref[...])

    # ---- mlp head: Linear(E, 5) zero-padded to 128 lanes (dense stores) ----
    logits_out_ref[...] = jnp.dot(out2, wm_ref[...],
                                  preferred_element_type=jnp.float32) + bm_ref[...]


def seq_cross_transformer_forward(images, params):
    B_, S_, C_, H_, W_ = images.shape
    F_ = C_ * H_ * W_
    s_pad = S_PAD

    # Pad seq 15 -> 16 (sublane aligned) and flatten to a batch-major slab.
    img = images.reshape(B_, S_, F_)
    img = jnp.pad(img, ((0, 0), (0, s_pad - S_), (0, 0)))
    img_flat = img.reshape(B_ * s_pad, F_)                       # row = b*S_PAD + s

    pos = jnp.pad(params['positions'], ((0, s_pad - S_), (0, 0)))    # (S_PAD, E)
    wm_pad = jnp.pad(params['wm'], ((0, 0), (0, LANE - NC)))         # (E, 128)
    bm_pad = jnp.pad(params['bm'], ((0, 0), (0, LANE - NC)))         # (1, 128)

    args = (img_flat, params['enc_w'], params['enc_b'], pos,
            params['win'], params['bin'], params['wout'], params['bout'],
            params['ln1_g'], params['ln1_b'],
            params['w1'], params['b1'], params['w2'], params['b2'],
            params['ln2_g'], params['ln2_b'],
            wm_pad, bm_pad)

    def bcast(shape):
        n = len(shape)
        return pl.BlockSpec(shape, lambda b: (0,) * n)   # broadcast across grid

    in_specs = [
        pl.BlockSpec((s_pad, F_), lambda b: (b, 0)),     # per-batch image slab
        bcast((F_, E)), bcast((1, E)), bcast((s_pad, E)),
        bcast((E, 3 * E)), bcast((1, 3 * E)), bcast((E, E)), bcast((1, E)),
        bcast((1, E)), bcast((1, E)),
        bcast((E, DF)), bcast((1, DF)), bcast((DF, E)), bcast((1, E)),
        bcast((1, E)), bcast((1, E)),
        bcast((E, LANE)), bcast((1, LANE)),
    ]
    out_specs = (
        pl.BlockSpec((1, s_pad, LANE), lambda b: (b, 0, 0)),   # padded attn weights
        pl.BlockSpec((s_pad, LANE), lambda b: (b, 0)),         # padded logits
    )

    attn_pad, logits_pad = pl.pallas_call(
        seq_cross_transformer_kernel,
        grid=(B_,),
        out_shape=(jax.ShapeDtypeStruct((B_, s_pad, LANE), jnp.float32),
                   jax.ShapeDtypeStruct((B_ * s_pad, LANE), jnp.float32)),
        in_specs=in_specs,
        out_specs=out_specs,
        scratch_shapes=[pltpu.VMEM((s_pad, E), jnp.float32)],
        compiler_params=pltpu.CompilerParams(
            dimension_semantics=("parallel",)),
    )(*args)

    attn_w = attn_pad[:, :S_, :S_]                               # (B, S, S)
    logits = logits_pad.reshape(B_, s_pad, LANE)[:, :S_, :NC]    # (B, S, 5)
    # torch returns a list: outputs[i] = mlp(seq[i, :, :]) of shape (B, 5)
    outputs = [logits[:, i, :] for i in range(S_)]
    return attn_w, outputs


def reference_forward(images, params):
    """Pure-jnp reference mirroring the torch forward (eval mode)."""
    B_, S_, _, _, _ = images.shape
    feat = images.reshape(B_, S_, -1) @ params['enc_w'] + params['enc_b'][0]
    x = feat + params['positions'][None]                      # (B, S, E)
    xs = jnp.transpose(x, (1, 0, 2))                          # (S, B, E)
    qkv = xs @ params['win'] + params['bin'][0]
    q, k, v = qkv[..., :E], qkv[..., E:2 * E], qkv[..., 2 * E:]

    def split(t):                                             # (S,B,E)->(B,NH,S,HD)
        return jnp.transpose(t.reshape(S_, B_, NH, HD), (1, 2, 0, 3))

    qh, kh, vh = split(q), split(k), split(v)
    sc = jnp.einsum('bhqd,bhkd->bhqk', qh * (HD ** -0.5), kh)
    p = jax.nn.softmax(sc, axis=-1)
    avg_w = jnp.mean(p, axis=1)                               # (B, S, S)
    ctx = jnp.einsum('bhqk,bhkd->bhqd', p, vh)
    ctx = jnp.transpose(ctx, (2, 0, 1, 3)).reshape(S_, B_, E)
    attended = ctx @ params['wout'] + params['bout'][0]

    def ln_(v_, g, bt):
        mu = v_.mean(-1, keepdims=True)
        var = ((v_ - mu) ** 2).mean(-1, keepdims=True)
        return (v_ - mu) / jnp.sqrt(var + LN_EPS) * g[0] + bt[0]

    out1 = ln_(xs + attended, params['ln1_g'], params['ln1_b'])
    hdn = jax.nn.relu(out1 @ params['w1'] + params['b1'][0])
    out2 = ln_(out1 + (hdn @ params['w2'] + params['b2'][0]),
               params['ln2_g'], params['ln2_b'])
    logits = out2 @ params['wm'] + params['bm'][0]            # (S, B, 5)
    return avg_w, [logits[i] for i in range(S_)]


if __name__ == "__main__":
    key = jax.random.PRNGKey(0)
    keys = jax.random.split(key, 16)
    init = lambda k, shape, sc=0.02: jax.random.normal(k, shape, jnp.float32) * sc
    params = {
        'enc_w': init(keys[0], (F, E)),
        'enc_b': init(keys[1], (1, E)),
        'positions': jax.random.normal(keys[2], (S, E), jnp.float32),   # nn.Parameter(randn)
        'win': init(keys[3], (E, 3 * E)),      # MHA in_proj (already transposed for x @ W)
        'bin': init(keys[4], (1, 3 * E)),
        'wout': init(keys[5], (E, E)),         # MHA out_proj
        'bout': init(keys[6], (1, E)),
        'ln1_g': jnp.ones((1, E), jnp.float32),
        'ln1_b': jnp.zeros((1, E), jnp.float32),
        'w1': init(keys[7], (E, DF)),          # Feed_forward.linear1
        'b1': init(keys[8], (1, DF)),
        'w2': init(keys[9], (DF, E)),          # Feed_forward.linear2
        'b2': init(keys[10], (1, E)),
        'ln2_g': jnp.ones((1, E), jnp.float32),
        'ln2_b': jnp.zeros((1, E), jnp.float32),
        'wm': init(keys[11], (E, NC)),         # mlp Linear(d_model, 5)
        'bm': init(keys[12], (1, NC)),
    }
    images = jax.random.normal(keys[13], (B, S, C, Hh, Ww), jnp.float32)

    attn_w, outputs = seq_cross_transformer_forward(images, params)
    jax.block_until_ready(attn_w)
    for o in outputs:
        jax.block_until_ready(o)

    ref_w, ref_outs = reference_forward(images, params)
    np.testing.assert_allclose(np.asarray(attn_w), np.asarray(ref_w),
                               atol=2e-3, rtol=2e-3)
    for a, r in zip(outputs, ref_outs):
        np.testing.assert_allclose(np.asarray(a), np.asarray(r),
                                   atol=2e-3, rtol=2e-3)
    assert attn_w.shape == (B, S, S)
    assert len(outputs) == S and outputs[0].shape == (B, NC)
    print("KERNEL_OK")
</pallas_src>

<mosaic_0001>
module attributes {stable_mosaic.version = 11 : i64} {
  func.func @seq_cross_transformer_kernel(%arg0: i32, %arg1: memref<16x1024xf32, #tpu.memory_space<vmem>>, %arg2: memref<1024x128xf32, #tpu.memory_space<vmem>>, %arg3: memref<1x128xf32, #tpu.memory_space<vmem>>, %arg4: memref<16x128xf32, #tpu.memory_space<vmem>>, %arg5: memref<128x384xf32, #tpu.memory_space<vmem>>, %arg6: memref<1x384xf32, #tpu.memory_space<vmem>>, %arg7: memref<128x128xf32, #tpu.memory_space<vmem>>, %arg8: memref<1x128xf32, #tpu.memory_space<vmem>>, %arg9: memref<1x128xf32, #tpu.memory_space<vmem>>, %arg10: memref<1x128xf32, #tpu.memory_space<vmem>>, %arg11: memref<128x512xf32, #tpu.memory_space<vmem>>, %arg12: memref<1x512xf32, #tpu.memory_space<vmem>>, %arg13: memref<512x128xf32, #tpu.memory_space<vmem>>, %arg14: memref<1x128xf32, #tpu.memory_space<vmem>>, %arg15: memref<1x128xf32, #tpu.memory_space<vmem>>, %arg16: memref<1x128xf32, #tpu.memory_space<vmem>>, %arg17: memref<128x128xf32, #tpu.memory_space<vmem>>, %arg18: memref<1x128xf32, #tpu.memory_space<vmem>>, %arg19: memref<1x16x128xf32, #tpu.memory_space<vmem>>, %arg20: memref<16x128xf32, #tpu.memory_space<vmem>>, %arg21: memref<16x128xf32, #tpu.memory_space<vmem>>) attributes {dimension_semantics = [#tpu.dimension_semantics<parallel>], iteration_bounds = array<i64: 2>, scalar_prefetch = 0 : i64, scratch_operands = 1 : i64, tpu.core_type = #tpu.core_type<tc>, window_params = [{transform_indices = @transform_0, window_bounds = array<i64: 16, 1024>}, {pipeline_mode = #tpu.pipeline_mode<synchronous>, transform_indices = @transform_1, window_bounds = array<i64: 1024, 128>}, {pipeline_mode = #tpu.pipeline_mode<synchronous>, transform_indices = @transform_2, window_bounds = array<i64: 1, 128>}, {pipeline_mode = #tpu.pipeline_mode<synchronous>, transform_indices = @transform_3, window_bounds = array<i64: 16, 128>}, {pipeline_mode = #tpu.pipeline_mode<synchronous>, transform_indices = @transform_4, window_bounds = array<i64: 128, 384>}, {pipeline_mode = #tpu.pipeline_mode<synchronous>, transform_indices = @transform_5, window_bounds = array<i64: 1, 384>}, {pipeline_mode = #tpu.pipeline_mode<synchronous>, transform_indices = @transform_6, window_bounds = array<i64: 128, 128>}, {pipeline_mode = #tpu.pipeline_mode<synchronous>, transform_indices = @transform_7, window_bounds = array<i64: 1, 128>}, {pipeline_mode = #tpu.pipeline_mode<synchronous>, transform_indices = @transform_8, window_bounds = array<i64: 1, 128>}, {pipeline_mode = #tpu.pipeline_mode<synchronous>, transform_indices = @transform_9, window_bounds = array<i64: 1, 128>}, {pipeline_mode = #tpu.pipeline_mode<synchronous>, transform_indices = @transform_10, window_bounds = array<i64: 128, 512>}, {pipeline_mode = #tpu.pipeline_mode<synchronous>, transform_indices = @transform_11, window_bounds = array<i64: 1, 512>}, {pipeline_mode = #tpu.pipeline_mode<synchronous>, transform_indices = @transform_12, window_bounds = array<i64: 512, 128>}, {pipeline_mode = #tpu.pipeline_mode<synchronous>, transform_indices = @transform_13, window_bounds = array<i64: 1, 128>}, {pipeline_mode = #tpu.pipeline_mode<synchronous>, transform_indices = @transform_14, window_bounds = array<i64: 1, 128>}, {pipeline_mode = #tpu.pipeline_mode<synchronous>, transform_indices = @transform_15, window_bounds = array<i64: 1, 128>}, {pipeline_mode = #tpu.pipeline_mode<synchronous>, transform_indices = @transform_16, window_bounds = array<i64: 128, 128>}, {pipeline_mode = #tpu.pipeline_mode<synchronous>, transform_indices = @transform_17, window_bounds = array<i64: 1, 128>}, {transform_indices = @transform_18, window_bounds = array<i64: 1, 16, 128>}, {transform_indices = @transform_19, window_bounds = array<i64: 16, 128>}]} {
    %c0 = arith.constant 0 : index
    %c0_0 = arith.constant 0 : index
    %0 = vector.load %arg1[%c0, %c0_0] : memref<16x1024xf32, #tpu.memory_space<vmem>>, vector<16x1024xf32>
    %c0_1 = arith.constant 0 : index
    %c0_2 = arith.constant 0 : index
    %1 = vector.load %arg2[%c0_1, %c0_2] : memref<1024x128xf32, #tpu.memory_space<vmem>>, vector<1024x128xf32>
    %cst = arith.constant dense<0.000000e+00> : vector<16x128xf32>
    %2 = tpu.matmul %0, %1, %cst {dimension_numbers = #tpu.dot_dimension_numbers<[1], [0], [0], [1], [0, 0, 1, 1], [], []>} : vector<16x1024xf32>, vector<1024x128xf32>, vector<16x128xf32> -> vector<16x128xf32>
    %c0_3 = arith.constant 0 : index
    %c0_4 = arith.constant 0 : index
    %3 = vector.load %arg3[%c0_3, %c0_4] : memref<1x128xf32, #tpu.memory_space<vmem>>, vector<1x128xf32>
    %4 = vector.broadcast %3 : vector<1x128xf32> to vector<16x128xf32>
    %5 = arith.addf %2, %4 : vector<16x128xf32>
    %c0_5 = arith.constant 0 : index
    %c0_6 = arith.constant 0 : index
    %6 = vector.load %arg4[%c0_5, %c0_6] : memref<16x128xf32, #tpu.memory_space<vmem>>, vector<16x128xf32>
    %7 = arith.addf %5, %6 : vector<16x128xf32>
    %c0_7 = arith.constant 0 : index
    %c0_8 = arith.constant 0 : index
    %8 = vector.load %arg5[%c0_7, %c0_8] : memref<128x384xf32, #tpu.memory_space<vmem>>, vector<128x384xf32>
    %cst_9 = arith.constant dense<0.000000e+00> : vector<16x384xf32>
    %9 = tpu.matmul %7, %8, %cst_9 {dimension_numbers = #tpu.dot_dimension_numbers<[1], [0], [0], [1], [0, 0, 1, 1], [], []>} : vector<16x128xf32>, vector<128x384xf32>, vector<16x384xf32> -> vector<16x384xf32>
    %c0_10 = arith.constant 0 : index
    %c0_11 = arith.constant 0 : index
    %10 = vector.load %arg6[%c0_10, %c0_11] : memref<1x384xf32, #tpu.memory_space<vmem>>, vector<1x384xf32>
    %11 = vector.broadcast %10 : vector<1x384xf32> to vector<16x384xf32>
    %12 = arith.addf %9, %11 : vector<16x384xf32>
    %13 = vector.extract_strided_slice %12 {offsets = [0, 0], sizes = [16, 128], strides = [1, 1]} : vector<16x384xf32> to vector<16x128xf32>
    %cst_12 = arith.constant 2.500000e-01 : f32
    %14 = vector.broadcast %cst_12 : f32 to vector<16x128xf32>
    %15 = arith.mulf %13, %14 : vector<16x128xf32>
    %16 = vector.extract_strided_slice %12 {offsets = [0, 128], sizes = [16, 128], strides = [1, 1]} : vector<16x384xf32> to vector<16x128xf32>
    %17 = vector.extract_strided_slice %12 {offsets = [0, 256], sizes = [16, 128], strides = [1, 1]} : vector<16x384xf32> to vector<16x128xf32>
    %18 = vector.extract_strided_slice %15 {offsets = [0, 0], sizes = [16, 16], strides = [1, 1]} : vector<16x128xf32> to vector<16x16xf32>
    %19 = vector.extract_strided_slice %15 {offsets = [0, 16], sizes = [16, 16], strides = [1, 1]} : vector<16x128xf32> to vector<16x16xf32>
    %20 = vector.extract_strided_slice %15 {offsets = [0, 32], sizes = [16, 16], strides = [1, 1]} : vector<16x128xf32> to vector<16x16xf32>
    %21 = vector.extract_strided_slice %15 {offsets = [0, 48], sizes = [16, 16], strides = [1, 1]} : vector<16x128xf32> to vector<16x16xf32>
    %22 = vector.extract_strided_slice %15 {offsets = [0, 64], sizes = [16, 16], strides = [1, 1]} : vector<16x128xf32> to vector<16x16xf32>
    %23 = vector.extract_strided_slice %15 {offsets = [0, 80], sizes = [16, 16], strides = [1, 1]} : vector<16x128xf32> to vector<16x16xf32>
    %24 = vector.extract_strided_slice %15 {offsets = [0, 96], sizes = [16, 16], strides = [1, 1]} : vector<16x128xf32> to vector<16x16xf32>
    %25 = vector.extract_strided_slice %15 {offsets = [0, 112], sizes = [16, 16], strides = [1, 1]} : vector<16x128xf32> to vector<16x16xf32>
    %26 = vector.shape_cast %18 : vector<16x16xf32> to vector<1x16x16xf32>
    %27 = vector.shape_cast %19 : vector<16x16xf32> to vector<1x16x16xf32>
    %28 = vector.shape_cast %20 : vector<16x16xf32> to vector<1x16x16xf32>
    %29 = vector.shape_cast %21 : vector<16x16xf32> to vector<1x16x16xf32>
    %30 = vector.shape_cast %22 : vector<16x16xf32> to vector<1x16x16xf32>
    %31 = vector.shape_cast %23 : vector<16x16xf32> to vector<1x16x16xf32>
    %32 = vector.shape_cast %24 : vector<16x16xf32> to vector<1x16x16xf32>
    %33 = vector.shape_cast %25 : vector<16x16xf32> to vector<1x16x16xf32>
    %34 = tpu.concatenate %26, %27, %28, %29, %30, %31, %32, %33 in 0 : vector<1x16x16xf32>, vector<1x16x16xf32>, vector<1x16x16xf32>, vector<1x16x16xf32>, vector<1x16x16xf32>, vector<1x16x16xf32>, vector<1x16x16xf32>, vector<1x16x16xf32> -> vector<8x16x16xf32>
    %35 = vector.extract_strided_slice %16 {offsets = [0, 0], sizes = [16, 16], strides = [1, 1]} : vector<16x128xf32> to vector<16x16xf32>
    %36 = vector.extract_strided_slice %16 {offsets = [0, 16], sizes = [16, 16], strides = [1, 1]} : vector<16x128xf32> to vector<16x16xf32>
    %37 = vector.extract_strided_slice %16 {offsets = [0, 32], sizes = [16, 16], strides = [1, 1]} : vector<16x128xf32> to vector<16x16xf32>
    %38 = vector.extract_strided_slice %16 {offsets = [0, 48], sizes = [16, 16], strides = [1, 1]} : vector<16x128xf32> to vector<16x16xf32>
    %39 = vector.extract_strided_slice %16 {offsets = [0, 64], sizes = [16, 16], strides = [1, 1]} : vector<16x128xf32> to vector<16x16xf32>
    %40 = vector.extract_strided_slice %16 {offsets = [0, 80], sizes = [16, 16], strides = [1, 1]} : vector<16x128xf32> to vector<16x16xf32>
    %41 = vector.extract_strided_slice %16 {offsets = [0, 96], sizes = [16, 16], strides = [1, 1]} : vector<16x128xf32> to vector<16x16xf32>
    %42 = vector.extract_strided_slice %16 {offsets = [0, 112], sizes = [16, 16], strides = [1, 1]} : vector<16x128xf32> to vector<16x16xf32>
    %43 = vector.shape_cast %35 : vector<16x16xf32> to vector<1x16x16xf32>
    %44 = vector.shape_cast %36 : vector<16x16xf32> to vector<1x16x16xf32>
    %45 = vector.shape_cast %37 : vector<16x16xf32> to vector<1x16x16xf32>
    %46 = vector.shape_cast %38 : vector<16x16xf32> to vector<1x16x16xf32>
    %47 = vector.shape_cast %39 : vector<16x16xf32> to vector<1x16x16xf32>
    %48 = vector.shape_cast %40 : vector<16x16xf32> to vector<1x16x16xf32>
    %49 = vector.shape_cast %41 : vector<16x16xf32> to vector<1x16x16xf32>
    %50 = vector.shape_cast %42 : vector<16x16xf32> to vector<1x16x16xf32>
    %51 = tpu.concatenate %43, %44, %45, %46, %47, %48, %49, %50 in 0 : vector<1x16x16xf32>, vector<1x16x16xf32>, vector<1x16x16xf32>, vector<1x16x16xf32>, vector<1x16x16xf32>, vector<1x16x16xf32>, vector<1x16x16xf32>, vector<1x16x16xf32> -> vector<8x16x16xf32>
    %52 = vector.extract_strided_slice %17 {offsets = [0, 0], sizes = [16, 16], strides = [1, 1]} : vector<16x128xf32> to vector<16x16xf32>
    %53 = vector.extract_strided_slice %17 {offsets = [0, 16], sizes = [16, 16], strides = [1, 1]} : vector<16x128xf32> to vector<16x16xf32>
    %54 = vector.extract_strided_slice %17 {offsets = [0, 32], sizes = [16, 16], strides = [1, 1]} : vector<16x128xf32> to vector<16x16xf32>
    %55 = vector.extract_strided_slice %17 {offsets = [0, 48], sizes = [16, 16], strides = [1, 1]} : vector<16x128xf32> to vector<16x16xf32>
    %56 = vector.extract_strided_slice %17 {offsets = [0, 64], sizes = [16, 16], strides = [1, 1]} : vector<16x128xf32> to vector<16x16xf32>
    %57 = vector.extract_strided_slice %17 {offsets = [0, 80], sizes = [16, 16], strides = [1, 1]} : vector<16x128xf32> to vector<16x16xf32>
    %58 = vector.extract_strided_slice %17 {offsets = [0, 96], sizes = [16, 16], strides = [1, 1]} : vector<16x128xf32> to vector<16x16xf32>
    %59 = vector.extract_strided_slice %17 {offsets = [0, 112], sizes = [16, 16], strides = [1, 1]} : vector<16x128xf32> to vector<16x16xf32>
    %60 = vector.shape_cast %52 : vector<16x16xf32> to vector<1x16x16xf32>
    %61 = vector.shape_cast %53 : vector<16x16xf32> to vector<1x16x16xf32>
    %62 = vector.shape_cast %54 : vector<16x16xf32> to vector<1x16x16xf32>
    %63 = vector.shape_cast %55 : vector<16x16xf32> to vector<1x16x16xf32>
    %64 = vector.shape_cast %56 : vector<16x16xf32> to vector<1x16x16xf32>
    %65 = vector.shape_cast %57 : vector<16x16xf32> to vector<1x16x16xf32>
    %66 = vector.shape_cast %58 : vector<16x16xf32> to vector<1x16x16xf32>
    %67 = vector.shape_cast %59 : vector<16x16xf32> to vector<1x16x16xf32>
    %68 = tpu.concatenate %60, %61, %62, %63, %64, %65, %66, %67 in 0 : vector<1x16x16xf32>, vector<1x16x16xf32>, vector<1x16x16xf32>, vector<1x16x16xf32>, vector<1x16x16xf32>, vector<1x16x16xf32>, vector<1x16x16xf32>, vector<1x16x16xf32> -> vector<8x16x16xf32>
    %cst_13 = arith.constant dense<0.000000e+00> : vector<8x16x16xf32>
    %69 = tpu.matmul %34, %51, %cst_13 {dimension_numbers = #tpu.dot_dimension_numbers<[2], [2], [1], [1], [0, 0, 0, 1, 1, 1], [0], [0]>} : vector<8x16x16xf32>, vector<8x16x16xf32>, vector<8x16x16xf32> -> vector<8x16x16xf32>
    %70 = tpu.iota {dimensions = array<i32: 2>} : vector<8x16x16xi32>
    %c15_i32 = arith.constant 15 : i32
    %71 = vector.broadcast %c15_i32 : i32 to vector<8x16x16xi32>
    %72 = arith.cmpi slt, %70, %71 : vector<8x16x16xi32>
    %cst_14 = arith.constant -1.000000e+30 : f32
    %73 = vector.broadcast %cst_14 : f32 to vector<8x16x16xf32>
    %74 = arith.select %72, %69, %73 : vector<8x16x16xi1>, vector<8x16x16xf32>
    %cst_15 = arith.constant dense<0xFF800000> : vector<8x16xf32>
    %75 = vector.multi_reduction <maximumf>, %74, %cst_15 [2] : vector<8x16x16xf32> to vector<8x16xf32>
    %76 = vector.shape_cast %75 : vector<8x16xf32> to vector<8x16x1xf32>
    %77 = vector.broadcast %76 : vector<8x16x1xf32> to vector<8x16x16xf32>
    %78 = arith.subf %74, %77 : vector<8x16x16xf32>
    %79 = math.exp %78 : vector<8x16x16xf32>
    %cst_16 = arith.constant dense<0.000000e+00> : vector<8x16xf32>
    %80 = vector.multi_reduction <add>, %79, %cst_16 [2] : vector<8x16x16xf32> to vector<8x16xf32>
    %81 = vector.shape_cast %80 : vector<8x16xf32> to vector<8x16x1xf32>
    %82 = tpu.reciprocal %81 {approx = true} : vector<8x16x1xf32> -> vector<8x16x1xf32>
    %83 = vector.broadcast %82 : vector<8x16x1xf32> to vector<8x16x16xf32>
    %84 = arith.mulf %79, %83 : vector<8x16x16xf32>
    %cst_17 = arith.constant dense<0.000000e+00> : vector<16x16xf32>
    %85 = vector.multi_reduction <add>, %84, %cst_17 [0] : vector<8x16x16xf32> to vector<16x16xf32>
    %cst_18 = arith.constant 8.000000e+00 : f32
    %86 = vector.broadcast %cst_18 : f32 to vector<16x16xf32>
    %87 = arith.divf %85, %86 : vector<16x16xf32>
    %cst_19 = arith.constant 0.000000e+00 : f32
    %88 = vector.broadcast %cst_19 : f32 to vector<16x112xf32>
    %89 = tpu.concatenate %87, %88 in 1 : vector<16x16xf32>, vector<16x112xf32> -> vector<16x128xf32>
    %c0_20 = arith.constant 0 : index
    %c0_21 = arith.constant 0 : index
    %c0_22 = arith.constant 0 : index
    %90 = vector.load %arg19[%c0_20, %c0_21, %c0_22] : memref<1x16x128xf32, #tpu.memory_space<vmem>>, vector<1x16x128xf32>
    %91 = vector.shape_cast %90 : vector<1x16x128xf32> to vector<16x128xf32>
    %92 = vector.shape_cast %89 : vector<16x128xf32> to vector<1x16x128xf32>
    tpu.vector_store %arg19[%c0_20, %c0_21, %c0_22], %92 {strides = array<i32>} : memref<1x16x128xf32, #tpu.memory_space<vmem>>, vector<1x16x128xf32>,
    %cst_23 = arith.constant dense<0.000000e+00> : vector<8x16x16xf32>
    %93 = tpu.matmul %84, %68, %cst_23 {dimension_numbers = #tpu.dot_dimension_numbers<[2], [1], [1], [2], [0, 0, 0, 1, 1, 2], [0], [0]>} : vector<8x16x16xf32>, vector<8x16x16xf32>, vector<8x16x16xf32> -> vector<8x16x16xf32>
    %94 = vector.extract_strided_slice %93 {offsets = [0, 0, 0], sizes = [1, 16, 16], strides = [1, 1, 1]} : vector<8x16x16xf32> to vector<1x16x16xf32>
    %95 = vector.shape_cast %94 : vector<1x16x16xf32> to vector<16x16xf32>
    %c0_24 = arith.constant 0 : index
    %c0_25 = arith.constant 0 : index
    %96 = vector.load %arg21[%c0_24, %c0_25] : memref<16x128xf32, #tpu.memory_space<vmem>>, vector<16x16xf32>
    tpu.vector_store %arg21[%c0_24, %c0_25], %95 {strides = array<i32>} : memref<16x128xf32, #tpu.memory_space<vmem>>, vector<16x16xf32>,
    %97 = vector.extract_strided_slice %93 {offsets = [1, 0, 0], sizes = [1, 16, 16], strides = [1, 1, 1]} : vector<8x16x16xf32> to vector<1x16x16xf32>
    %98 = vector.shape_cast %97 : vector<1x16x16xf32> to vector<16x16xf32>
    %c0_26 = arith.constant 0 : index
    %c16 = arith.constant 16 : index
    %99 = vector.load %arg21[%c0_26, %c16] : memref<16x128xf32, #tpu.memory_space<vmem>>, vector<16x16xf32>
    tpu.vector_store %arg21[%c0_26, %c16], %98 {strides = array<i32>} : memref<16x128xf32, #tpu.memory_space<vmem>>, vector<16x16xf32>,
    %100 = vector.extract_strided_slice %93 {offsets = [2, 0, 0], sizes = [1, 16, 16], strides = [1, 1, 1]} : vector<8x16x16xf32> to vector<1x16x16xf32>
    %101 = vector.shape_cast %100 : vector<1x16x16xf32> to vector<16x16xf32>
    %c0_27 = arith.constant 0 : index
    %c32 = arith.constant 32 : index
    %102 = vector.load %arg21[%c0_27, %c32] : memref<16x128xf32, #tpu.memory_space<vmem>>, vector<16x16xf32>
    tpu.vector_store %arg21[%c0_27, %c32], %101 {strides = array<i32>} : memref<16x128xf32, #tpu.memory_space<vmem>>, vector<16x16xf32>,
    %103 = vector.extract_strided_slice %93 {offsets = [3, 0, 0], sizes = [1, 16, 16], strides = [1, 1, 1]} : vector<8x16x16xf32> to vector<1x16x16xf32>
    %104 = vector.shape_cast %103 : vector<1x16x16xf32> to vector<16x16xf32>
    %c0_28 = arith.constant 0 : index
    %c48 = arith.constant 48 : index
    %105 = vector.load %arg21[%c0_28, %c48] : memref<16x128xf32, #tpu.memory_space<vmem>>, vector<16x16xf32>
    tpu.vector_store %arg21[%c0_28, %c48], %104 {strides = array<i32>} : memref<16x128xf32, #tpu.memory_space<vmem>>, vector<16x16xf32>,
    %106 = vector.extract_strided_slice %93 {offsets = [4, 0, 0], sizes = [1, 16, 16], strides = [1, 1, 1]} : vector<8x16x16xf32> to vector<1x16x16xf32>
    %107 = vector.shape_cast %106 : vector<1x16x16xf32> to vector<16x16xf32>
    %c0_29 = arith.constant 0 : index
    %c64 = arith.constant 64 : index
    %108 = vector.load %arg21[%c0_29, %c64] : memref<16x128xf32, #tpu.memory_space<vmem>>, vector<16x16xf32>
    tpu.vector_store %arg21[%c0_29, %c64], %107 {strides = array<i32>} : memref<16x128xf32, #tpu.memory_space<vmem>>, vector<16x16xf32>,
    %109 = vector.extract_strided_slice %93 {offsets = [5, 0, 0], sizes = [1, 16, 16], strides = [1, 1, 1]} : vector<8x16x16xf32> to vector<1x16x16xf32>
    %110 = vector.shape_cast %109 : vector<1x16x16xf32> to vector<16x16xf32>
    %c0_30 = arith.constant 0 : index
    %c80 = arith.constant 80 : index
    %111 = vector.load %arg21[%c0_30, %c80] : memref<16x128xf32, #tpu.memory_space<vmem>>, vector<16x16xf32>
    tpu.vector_store %arg21[%c0_30, %c80], %110 {strides = array<i32>} : memref<16x128xf32, #tpu.memory_space<vmem>>, vector<16x16xf32>,
    %112 = vector.extract_strided_slice %93 {offsets = [6, 0, 0], sizes = [1, 16, 16], strides = [1, 1, 1]} : vector<8x16x16xf32> to vector<1x16x16xf32>
    %113 = vector.shape_cast %112 : vector<1x16x16xf32> to vector<16x16xf32>
    %c0_31 = arith.constant 0 : index
    %c96 = arith.constant 96 : index
    %114 = vector.load %arg21[%c0_31, %c96] : memref<16x128xf32, #tpu.memory_space<vmem>>, vector<16x16xf32>
    tpu.vector_store %arg21[%c0_31, %c96], %113 {strides = array<i32>} : memref<16x128xf32, #tpu.memory_space<vmem>>, vector<16x16xf32>,
    %115 = vector.extract_strided_slice %93 {offsets = [7, 0, 0], sizes = [1, 16, 16], strides = [1, 1, 1]} : vector<8x16x16xf32> to vector<1x16x16xf32>
    %116 = vector.shape_cast %115 : vector<1x16x16xf32> to vector<16x16xf32>
    %c0_32 = arith.constant 0 : index
    %c112 = arith.constant 112 : index
    %117 = vector.load %arg21[%c0_32, %c112] : memref<16x128xf32, #tpu.memory_space<vmem>>, vector<16x16xf32>
    tpu.vector_store %arg21[%c0_32, %c112], %116 {strides = array<i32>} : memref<16x128xf32, #tpu.memory_space<vmem>>, vector<16x16xf32>,
    %c0_33 = arith.constant 0 : index
    %c0_34 = arith.constant 0 : index
    %118 = vector.load %arg21[%c0_33, %c0_34] : memref<16x128xf32, #tpu.memory_space<vmem>>, vector<16x128xf32>
    %c0_35 = arith.constant 0 : index
    %c0_36 = arith.constant 0 : index
    %119 = vector.load %arg7[%c0_35, %c0_36] : memref<128x128xf32, #tpu.memory_space<vmem>>, vector<128x128xf32>
    %cst_37 = arith.constant dense<0.000000e+00> : vector<16x128xf32>
    %120 = tpu.matmul %118, %119, %cst_37 {dimension_numbers = #tpu.dot_dimension_numbers<[1], [0], [0], [1], [0, 0, 1, 1], [], []>} : vector<16x128xf32>, vector<128x128xf32>, vector<16x128xf32> -> vector<16x128xf32>
    %c0_38 = arith.constant 0 : index
    %c0_39 = arith.constant 0 : index
    %121 = vector.load %arg8[%c0_38, %c0_39] : memref<1x128xf32, #tpu.memory_space<vmem>>, vector<1x128xf32>
    %122 = vector.broadcast %121 : vector<1x128xf32> to vector<16x128xf32>
    %123 = arith.addf %120, %122 : vector<16x128xf32>
    %124 = arith.addf %7, %123 : vector<16x128xf32>
    %c0_40 = arith.constant 0 : index
    %c0_41 = arith.constant 0 : index
    %125 = vector.load %arg9[%c0_40, %c0_41] : memref<1x128xf32, #tpu.memory_space<vmem>>, vector<1x128xf32>
    %c0_42 = arith.constant 0 : index
    %c0_43 = arith.constant 0 : index
    %126 = vector.load %arg10[%c0_42, %c0_43] : memref<1x128xf32, #tpu.memory_space<vmem>>, vector<1x128xf32>
    %cst_44 = arith.constant dense<0.000000e+00> : vector<16xf32>
    %127 = vector.multi_reduction <add>, %124, %cst_44 [1] : vector<16x128xf32> to vector<16xf32>
    %128 = vector.shape_cast %127 : vector<16xf32> to vector<16x1xf32>
    %cst_45 = arith.constant 1.280000e+02 : f32
    %129 = vector.broadcast %cst_45 : f32 to vector<16x1xf32>
    %130 = arith.divf %128, %129 : vector<16x1xf32>
    %131 = vector.broadcast %130 : vector<16x1xf32> to vector<16x128xf32>
    %132 = arith.subf %124, %131 : vector<16x128xf32>
    %133 = arith.mulf %132, %132 : vector<16x128xf32>
    %cst_46 = arith.constant dense<0.000000e+00> : vector<16xf32>
    %134 = vector.multi_reduction <add>, %133, %cst_46 [1] : vector<16x128xf32> to vector<16xf32>
    %135 = vector.shape_cast %134 : vector<16xf32> to vector<16x1xf32>
    %cst_47 = arith.constant 1.280000e+02 : f32
    %136 = vector.broadcast %cst_47 : f32 to vector<16x1xf32>
    %137 = arith.divf %135, %136 : vector<16x1xf32>
    %138 = vector.broadcast %130 : vector<16x1xf32> to vector<16x128xf32>
    %139 = arith.subf %124, %138 : vector<16x128xf32>
    %cst_48 = arith.constant 9.99999974E-6 : f32
    %140 = vector.broadcast %cst_48 : f32 to vector<16x1xf32>
    %141 = arith.addf %137, %140 : vector<16x1xf32>
    %142 = math.rsqrt %141 : vector<16x1xf32>
    %143 = vector.broadcast %142 : vector<16x1xf32> to vector<16x128xf32>
    %144 = arith.mulf %139, %143 : vector<16x128xf32>
    %145 = vector.broadcast %125 : vector<1x128xf32> to vector<16x128xf32>
    %146 = arith.mulf %144, %145 : vector<16x128xf32>
    %147 = vector.broadcast %126 : vector<1x128xf32> to vector<16x128xf32>
    %148 = arith.addf %146, %147 : vector<16x128xf32>
    %c0_49 = arith.constant 0 : index
    %c0_50 = arith.constant 0 : index
    %149 = vector.load %arg11[%c0_49, %c0_50] : memref<128x512xf32, #tpu.memory_space<vmem>>, vector<128x512xf32>
    %cst_51 = arith.constant dense<0.000000e+00> : vector<16x512xf32>
    %150 = tpu.matmul %148, %149, %cst_51 {dimension_numbers = #tpu.dot_dimension_numbers<[1], [0], [0], [1], [0, 0, 1, 1], [], []>} : vector<16x128xf32>, vector<128x512xf32>, vector<16x512xf32> -> vector<16x512xf32>
    %c0_52 = arith.constant 0 : index
    %c0_53 = arith.constant 0 : index
    %151 = vector.load %arg12[%c0_52, %c0_53] : memref<1x512xf32, #tpu.memory_space<vmem>>, vector<1x512xf32>
    %152 = vector.broadcast %151 : vector<1x512xf32> to vector<16x512xf32>
    %153 = arith.addf %150, %152 : vector<16x512xf32>
    %cst_54 = arith.constant 0.000000e+00 : f32
    %154 = vector.broadcast %cst_54 : f32 to vector<16x512xf32>
    %155 = arith.maximumf %153, %154 : vector<16x512xf32>
    %c0_55 = arith.constant 0 : index
    %c0_56 = arith.constant 0 : index
    %156 = vector.load %arg13[%c0_55, %c0_56] : memref<512x128xf32, #tpu.memory_space<vmem>>, vector<512x128xf32>
    %cst_57 = arith.constant dense<0.000000e+00> : vector<16x128xf32>
    %157 = tpu.matmul %155, %156, %cst_57 {dimension_numbers = #tpu.dot_dimension_numbers<[1], [0], [0], [1], [0, 0, 1, 1], [], []>} : vector<16x512xf32>, vector<512x128xf32>, vector<16x128xf32> -> vector<16x128xf32>
    %c0_58 = arith.constant 0 : index
    %c0_59 = arith.constant 0 : index
    %158 = vector.load %arg14[%c0_58, %c0_59] : memref<1x128xf32, #tpu.memory_space<vmem>>, vector<1x128xf32>
    %159 = vector.broadcast %158 : vector<1x128xf32> to vector<16x128xf32>
    %160 = arith.addf %157, %159 : vector<16x128xf32>
    %161 = arith.addf %148, %160 : vector<16x128xf32>
    %c0_60 = arith.constant 0 : index
    %c0_61 = arith.constant 0 : index
    %162 = vector.load %arg15[%c0_60, %c0_61] : memref<1x128xf32, #tpu.memory_space<vmem>>, vector<1x128xf32>
    %c0_62 = arith.constant 0 : index
    %c0_63 = arith.constant 0 : index
    %163 = vector.load %arg16[%c0_62, %c0_63] : memref<1x128xf32, #tpu.memory_space<vmem>>, vector<1x128xf32>
    %cst_64 = arith.constant dense<0.000000e+00> : vector<16xf32>
    %164 = vector.multi_reduction <add>, %161, %cst_64 [1] : vector<16x128xf32> to vector<16xf32>
    %165 = vector.shape_cast %164 : vector<16xf32> to vector<16x1xf32>
    %cst_65 = arith.constant 1.280000e+02 : f32
    %166 = vector.broadcast %cst_65 : f32 to vector<16x1xf32>
    %167 = arith.divf %165, %166 : vector<16x1xf32>
    %168 = vector.broadcast %167 : vector<16x1xf32> to vector<16x128xf32>
    %169 = arith.subf %161, %168 : vector<16x128xf32>
    %170 = arith.mulf %169, %169 : vector<16x128xf32>
    %cst_66 = arith.constant dense<0.000000e+00> : vector<16xf32>
    %171 = vector.multi_reduction <add>, %170, %cst_66 [1] : vector<16x128xf32> to vector<16xf32>
    %172 = vector.shape_cast %171 : vector<16xf32> to vector<16x1xf32>
    %cst_67 = arith.constant 1.280000e+02 : f32
    %173 = vector.broadcast %cst_67 : f32 to vector<16x1xf32>
    %174 = arith.divf %172, %173 : vector<16x1xf32>
    %175 = vector.broadcast %167 : vector<16x1xf32> to vector<16x128xf32>
    %176 = arith.subf %161, %175 : vector<16x128xf32>
    %cst_68 = arith.constant 9.99999974E-6 : f32
    %177 = vector.broadcast %cst_68 : f32 to vector<16x1xf32>
    %178 = arith.addf %174, %177 : vector<16x1xf32>
    %179 = math.rsqrt %178 : vector<16x1xf32>
    %180 = vector.broadcast %179 : vector<16x1xf32> to vector<16x128xf32>
    %181 = arith.mulf %176, %180 : vector<16x128xf32>
    %182 = vector.broadcast %162 : vector<1x128xf32> to vector<16x128xf32>
    %183 = arith.mulf %181, %182 : vector<16x128xf32>
    %184 = vector.broadcast %163 : vector<1x128xf32> to vector<16x128xf32>
    %185 = arith.addf %183, %184 : vector<16x128xf32>
    %c0_69 = arith.constant 0 : index
    %c0_70 = arith.constant 0 : index
    %186 = vector.load %arg17[%c0_69, %c0_70] : memref<128x128xf32, #tpu.memory_space<vmem>>, vector<128x128xf32>
    %cst_71 = arith.constant dense<0.000000e+00> : vector<16x128xf32>
    %187 = tpu.matmul %185, %186, %cst_71 {dimension_numbers = #tpu.dot_dimension_numbers<[1], [0], [0], [1], [0, 0, 1, 1], [], []>} : vector<16x128xf32>, vector<128x128xf32>, vector<16x128xf32> -> vector<16x128xf32>
    %c0_72 = arith.constant 0 : index
    %c0_73 = arith.constant 0 : index
    %188 = vector.load %arg18[%c0_72, %c0_73] : memref<1x128xf32, #tpu.memory_space<vmem>>, vector<1x128xf32>
    %189 = vector.broadcast %188 : vector<1x128xf32> to vector<16x128xf32>
    %190 = arith.addf %187, %189 : vector<16x128xf32>
    %c0_74 = arith.constant 0 : index
    %c0_75 = arith.constant 0 : index
    %191 = vector.load %arg20[%c0_74, %c0_75] : memref<16x128xf32, #tpu.memory_space<vmem>>, vector<16x128xf32>
    tpu.vector_store %arg20[%c0_74, %c0_75], %190 {strides = array<i32>} : memref<16x128xf32, #tpu.memory_space<vmem>>, vector<16x128xf32>,
    return
  }
  func.func @transform_0(%arg0: i32) -> (i32, i32) {
    %c0_i32 = arith.constant 0 : i32
    %c0_i32_0 = arith.constant 0 : i32
    return %arg0, %c0_i32 : i32, i32
  }
  func.func @transform_1(%arg0: i32) -> (i32, i32) {
    %c0_i32 = arith.constant 0 : i32
    %c0_i32_0 = arith.constant 0 : i32
    %c0_i32_1 = arith.constant 0 : i32
    return %c0_i32, %c0_i32_0 : i32, i32
  }
  func.func @transform_2(%arg0: i32) -> (i32, i32) {
    %c0_i32 = arith.constant 0 : i32
    %c0_i32_0 = arith.constant 0 : i32
    %c0_i32_1 = arith.constant 0 : i32
    return %c0_i32, %c0_i32_0 : i32, i32
  }
  func.func @transform_3(%arg0: i32) -> (i32, i32) {
    %c0_i32 = arith.constant 0 : i32
    %c0_i32_0 = arith.constant 0 : i32
    %c0_i32_1 = arith.constant 0 : i32
    return %c0_i32, %c0_i32_0 : i32, i32
  }
  func.func @transform_4(%arg0: i32) -> (i32, i32) {
    %c0_i32 = arith.constant 0 : i32
    %c0_i32_0 = arith.constant 0 : i32
    %c0_i32_1 = arith.constant 0 : i32
    return %c0_i32, %c0_i32_0 : i32, i32
  }
  func.func @transform_5(%arg0: i32) -> (i32, i32) {
    %c0_i32 = arith.constant 0 : i32
    %c0_i32_0 = arith.constant 0 : i32
    %c0_i32_1 = arith.constant 0 : i32
    return %c0_i32, %c0_i32_0 : i32, i32
  }
  func.func @transform_6(%arg0: i32) -> (i32, i32) {
    %c0_i32 = arith.constant 0 : i32
    %c0_i32_0 = arith.constant 0 : i32
    %c0_i32_1 = arith.constant 0 : i32
    return %c0_i32, %c0_i32_0 : i32, i32
  }
  func.func @transform_7(%arg0: i32) -> (i32, i32) {
    %c0_i32 = arith.constant 0 : i32
    %c0_i32_0 = arith.constant 0 : i32
    %c0_i32_1 = arith.constant 0 : i32
    return %c0_i32, %c0_i32_0 : i32, i32
  }
  func.func @transform_8(%arg0: i32) -> (i32, i32) {
    %c0_i32 = arith.constant 0 : i32
    %c0_i32_0 = arith.constant 0 : i32
    %c0_i32_1 = arith.constant 0 : i32
    return %c0_i32, %c0_i32_0 : i32, i32
  }
  func.func @transform_9(%arg0: i32) -> (i32, i32) {
    %c0_i32 = arith.constant 0 : i32
    %c0_i32_0 = arith.constant 0 : i32
    %c0_i32_1 = arith.constant 0 : i32
    return %c0_i32, %c0_i32_0 : i32, i32
  }
  func.func @transform_10(%arg0: i32) -> (i32, i32) {
    %c0_i32 = arith.constant 0 : i32
    %c0_i32_0 = arith.constant 0 : i32
    %c0_i32_1 = arith.constant 0 : i32
    return %c0_i32, %c0_i32_0 : i32, i32
  }
  func.func @transform_11(%arg0: i32) -> (i32, i32) {
    %c0_i32 = arith.constant 0 : i32
    %c0_i32_0 = arith.constant 0 : i32
    %c0_i32_1 = arith.constant 0 : i32
    return %c0_i32, %c0_i32_0 : i32, i32
  }
  func.func @transform_12(%arg0: i32) -> (i32, i32) {
    %c0_i32 = arith.constant 0 : i32
    %c0_i32_0 = arith.constant 0 : i32
    %c0_i32_1 = arith.constant 0 : i32
    return %c0_i32, %c0_i32_0 : i32, i32
  }
  func.func @transform_13(%arg0: i32) -> (i32, i32) {
    %c0_i32 = arith.constant 0 : i32
    %c0_i32_0 = arith.constant 0 : i32
    %c0_i32_1 = arith.constant 0 : i32
    return %c0_i32, %c0_i32_0 : i32, i32
  }
  func.func @transform_14(%arg0: i32) -> (i32, i32) {
    %c0_i32 = arith.constant 0 : i32
    %c0_i32_0 = arith.constant 0 : i32
    %c0_i32_1 = arith.constant 0 : i32
    return %c0_i32, %c0_i32_0 : i32, i32
  }
  func.func @transform_15(%arg0: i32) -> (i32, i32) {
    %c0_i32 = arith.constant 0 : i32
    %c0_i32_0 = arith.constant 0 : i32
    %c0_i32_1 = arith.constant 0 : i32
    return %c0_i32, %c0_i32_0 : i32, i32
  }
  func.func @transform_16(%arg0: i32) -> (i32, i32) {
    %c0_i32 = arith.constant 0 : i32
    %c0_i32_0 = arith.constant 0 : i32
    %c0_i32_1 = arith.constant 0 : i32
    return %c0_i32, %c0_i32_0 : i32, i32
  }
  func.func @transform_17(%arg0: i32) -> (i32, i32) {
    %c0_i32 = arith.constant 0 : i32
    %c0_i32_0 = arith.constant 0 : i32
    %c0_i32_1 = arith.constant 0 : i32
    return %c0_i32, %c0_i32_0 : i32, i32
  }
  func.func @transform_18(%arg0: i32) -> (i32, i32, i32) {
    %c0_i32 = arith.constant 0 : i32
    %c0_i32_0 = arith.constant 0 : i32
    %c0_i32_1 = arith.constant 0 : i32
    return %arg0, %c0_i32, %c0_i32_0 : i32, i32, i32
  }
  func.func @transform_19(%arg0: i32) -> (i32, i32) {
    %c0_i32 = arith.constant 0 : i32
    %c0_i32_0 = arith.constant 0 : i32
    return %arg0, %c0_i32 : i32, i32
  }
}

</mosaic_0001>

<llo_original>
// kernel: tpu_custom_call.1
$region0: #{tpu_custom_call.1}
  #allocation0 [shape = 'u32[]', space=smem, size = 0x4, offset = 0x4, fixed_abs, tag = 'smem constant byte address 0x4 - core index']
  #allocation1 [shape = 'u32[144,128]{1,0:T(1,128)}', space=vmem, size = 0x12000, scoped, tag = 'internal scratch']
  #allocation2 [shape = 'f32[16,128]{1,0:T(8,128)}', space=vmem, size = 0x2000, scoped, tag = 'scratch operand']
  %s0 = inlined_call_operand.hbm [shape: f32[32,1024], index: 0, kind: input, shape index: {}]
  %s1 = inlined_call_operand.hbm [shape: f32[1024,128], index: 1, kind: input, shape index: {}]
  %s2 = inlined_call_operand.hbm [shape: f32[1,128], index: 2, kind: input, shape index: {}]
  %s3 = inlined_call_operand.hbm [shape: f32[16,128], index: 3, kind: input, shape index: {}]
  %s4 = inlined_call_operand.hbm [shape: f32[128,384], index: 4, kind: input, shape index: {}]
  %s5 = inlined_call_operand.vmem [shape: f32[1,384], index: 5, kind: input, shape index: {}]
  %s6 = inlined_call_operand.hbm [shape: f32[128,128], index: 6, kind: input, shape index: {}]
  %s7 = inlined_call_operand.vmem [shape: f32[1,128], index: 7, kind: input, shape index: {}]
  %s8 = inlined_call_operand.vmem [shape: f32[1,128], index: 8, kind: input, shape index: {}]
  %s9 = inlined_call_operand.vmem [shape: f32[1,128], index: 9, kind: input, shape index: {}]
  %s10 = inlined_call_operand.hbm [shape: f32[128,512], index: 10, kind: input, shape index: {}]
  %s11 = inlined_call_operand.vmem [shape: f32[1,512], index: 11, kind: input, shape index: {}]
  %s12 = inlined_call_operand.hbm [shape: f32[512,128], index: 12, kind: input, shape index: {}]
  %s13 = inlined_call_operand.vmem [shape: f32[1,128], index: 13, kind: input, shape index: {}]
  %s14 = inlined_call_operand.vmem [shape: f32[1,128], index: 14, kind: input, shape index: {}]
  %s15 = inlined_call_operand.vmem [shape: f32[1,128], index: 15, kind: input, shape index: {}]
  %s16 = inlined_call_operand.hbm [shape: f32[128,128], index: 16, kind: input, shape index: {}]
  %s17 = inlined_call_operand.vmem [shape: f32[1,128], index: 17, kind: input, shape index: {}]
  %s18 = inlined_call_operand.hbm [shape: f32[2,16,128], index: 18, kind: output, shape index: {0}]
  %s19 = inlined_call_operand.hbm [shape: f32[32,128], index: 19, kind: output, shape index: {1}]
  %20 = xla_tuple %s18, %s19
  %s21 = sld [smem:[#allocation0]]
  $region149: #{tpu_custom_call.1} parent=0
    _
  %s23 = ssub.s32 1, %s21
  %s24 = scalar_select 0, %s23, %s21
  $region1: #{tpu_custom_call.1} parent=0
    #allocation3 [shape = 'u8[131072]{0}', space=vmem, size = 0x20000, scoped, tag = 'input window, operand 0']
    #allocation4 [shape = 's32[2]{0}', space=sflag, size = 0x8, scoped, tag = 'scoped memory for tpu_custom_call.1']
    #allocation5 [shape = 's32[2]{0}', space=sflag, size = 0x8, scoped, tag = 'scoped memory for tpu_custom_call.1']
    #allocation6 [shape = 'u8[524288]{0}', space=vmem, size = 0x80000, scoped, tag = 'input window, operand 1, single buffered']
    #allocation7 [shape = 's32[1]{0}', space=sflag, size = 0x4, scoped, tag = 'scoped memory for tpu_custom_call.1']
    #allocation8 [shape = 'u8[512]{0}', space=vmem, size = 0x400, scoped, tag = 'input window, operand 2, single buffered']
    #allocation9 [shape = 'u8[8192]{0}', space=vmem, size = 0x2000, scoped, tag = 'input window, operand 3, single buffered']
    #allocation10 [shape = 's32[1]{0}', space=sflag, size = 0x4, scoped, tag = 'scoped memory for tpu_custom_call.1']
    #allocation11 [shape = 'u8[196608]{0}', space=vmem, size = 0x30000, scoped, tag = 'input window, operand 4, single buffered']
    #allocation12 [shape = 'u8[65536]{0}', space=vmem, size = 0x10000, scoped, tag = 'input window, operand 6, single buffered']
    #allocation13 [shape = 's32[1]{0}', space=sflag, size = 0x4, scoped, tag = 'scoped memory for tpu_custom_call.1']
    #allocation14 [shape = 'u8[262144]{0}', space=vmem, size = 0x40000, scoped, tag = 'input window, operand 10, single buffered']
    #allocation15 [shape = 'u8[262144]{0}', space=vmem, size = 0x40000, scoped, tag = 'input window, operand 12, single buffered']
    #allocation16 [shape = 's32[1]{0}', space=sflag, size = 0x4, scoped, tag = 'scoped memory for tpu_custom_call.1']
    #allocation17 [shape = 'u8[65536]{0}', space=vmem, size = 0x10000, scoped, tag = 'input window, operand 16, single buffered']
    #allocation18 [shape = 'u8[16384]{0}', space=vmem, size = 0x4000, scoped, tag = 'output window, operand 0']
    #allocation19 [shape = 'u8[16384]{0}', space=vmem, size = 0x4000, scoped, tag = 'output window, operand 1']
    #allocation20 [shape = 's32[2]{0}', space=sflag, size = 0x8, scoped, tag = 'scoped memory for tpu_custom_call.1']
    %25 = vsyncpa [#allocation4], 0
    %s26 = scalar_lea.sflag [#allocation4], 1
    %27 = vsyncpa %s26, 0
    %28 = vsyncpa [#allocation7], 0
    %29 = vsyncpa [#allocation10], 0
    %30 = vsyncpa [#allocation13], 0
    %31 = vsyncpa [#allocation16], 0
    %32 = vsyncpa [#allocation5], 0
    %s33 = scalar_lea.sflag [#allocation5], 1
    %34 = vsyncpa %s33, 0
    %35 = vsyncpa [#allocation20], 0
    %s36 = scalar_lea.sflag [#allocation20], 1
    %37 = vsyncpa %s36, 0
    loop: start=0, step=1, limit=4
    $region2: #{tpu_custom_call.1} parent=1 // loop_pre_header
      _
    $region3: #{tpu_custom_call.1} parent=1 // loop_header
      %s39 = sphi 0, %s43
      %p40 = scmp.ge.s32.totalorder %s39, 4
      %s49 = sphi 0, %s51
      %s52 = sphi 0, %s49
      %s53 = sphi 0, %s52
      %s69 = sphi 0, %s53
      %s73 = sphi 0, %s73
      %s75 = sphi 0, %s73
      %s76 = sphi 0, %s75
      %s90 = sphi 0, %s76
      %s94 = sphi 0, %s94
      %s96 = sphi 0, %s94
      %s97 = sphi 0, %s96
      %s111 = sphi 0, %s97
      %s115 = sphi 0, %s115
      %s117 = sphi 0, %s115
      %s118 = sphi 0, %s117
      %s132 = sphi 0, %s118
      %s136 = sphi 0, %s136
      %s138 = sphi 0, %s136
      %s139 = sphi 0, %s138
      %s153 = sphi 0, %s139
      %s157 = sphi 0, %s157
      %s159 = sphi 0, %s157
      %s160 = sphi 0, %s159
      %s174 = sphi 0, %s160
      %s178 = sphi 0, %s178
      %s180 = sphi 0, %s178
      %s181 = sphi 0, %s180
      %s195 = sphi 0, %s181
      %s199 = sphi 0, %s199
      %s201 = sphi 0, %s199
      %s202 = sphi 0, %s201
      %s216 = sphi 0, %s202
      %s220 = sphi 0, %s220
      %s222 = sphi 0, %s220
      %s223 = sphi 0, %s222
      %s237 = sphi 0, %s223
      %s241 = sphi 0, %s241
      %s243 = sphi 0, %s241
      %s244 = sphi 0, %s243
      %s258 = sphi 0, %s244
      %s262 = sphi 0, %s262
      %s264 = sphi 0, %s262
      %s265 = sphi 0, %s264
      %s279 = sphi 0, %s265
      %s283 = sphi 0, %s283
      %s285 = sphi 0, %s283
      %s286 = sphi 0, %s285
      %s300 = sphi 0, %s286
      %s304 = sphi 0, %s304
      %s306 = sphi 0, %s304
      %s307 = sphi 0, %s306
      %s321 = sphi 0, %s307
      %s325 = sphi 0, %s325
      %s327 = sphi 0, %s325
      %s328 = sphi 0, %s327
      %s342 = sphi 0, %s328
      %s346 = sphi 0, %s346
      %s348 = sphi 0, %s346
      %s349 = sphi 0, %s348
      %s363 = sphi 0, %s349
      %s367 = sphi 0, %s367
      %s369 = sphi 0, %s367
      %s370 = sphi 0, %s369
      %s384 = sphi 0, %s370
      %s388 = sphi 0, %s388
      %s390 = sphi 0, %s388
      %s391 = sphi 0, %s390
      %s405 = sphi 0, %s391
      %s409 = sphi 0, %s409
      %s411 = sphi 0, %s409
      %s412 = sphi 0, %s411
      %s426 = sphi 0, %s412
      %s432 = sphi 0, %s434
      %s435 = sphi 0, %s432
      %s436 = sphi 0, %s435
      %s452 = sphi 0, %s436
      %s458 = sphi 0, %s460
      %s461 = sphi 0, %s458
      %s462 = sphi 0, %s461
      %s478 = sphi 0, %s462
    $region4: #{tpu_custom_call.1} parent=1 // loop_header_branch
      %42 = sbr.rel (%p40) target = $region8
    $region5: #{tpu_custom_call.1} parent=1 // loop_body
      %s44 = ssub.s32 %s39, 1
      %s45 = ssub.s32 %s39, 2
      %s46 = sadd.s32 %s39, 1
      %s47 = ssub.s32 %s39, %s46
      %p48 = scmp.eq.s32.totalorder %s47, 0
      %s50 = sadd.s32 %s49, 1
      %s51 = scalar_select %p48, %s49, %s50
      %p54 = pneg %p48
      %p55 = scmp.eq.s32.totalorder %s39, 1
      %p56 = por %p54, %p55
      %p57 = scmp.ne.s32.totalorder %s49, %s52
      %p58 = scmp.eq.s32.totalorder %s39, 0
      %p59 = por %p57, %p58
      %p60 = scmp.ne.s32.totalorder %s49, %s52
      %p61 = scmp.eq.s32.totalorder %s44, 1
      %p62 = por %p60, %p61
      %p63 = scmp.ne.s32.totalorder %s52, %s53
      %p64 = scmp.eq.s32.totalorder %s44, 0
      %p65 = por %p63, %p64
      %p66 = scmp.ne.s32.totalorder %s52, %s53
      %p67 = scmp.eq.s32.totalorder %s45, 1
      %p68 = por %p66, %p67
      %p70 = scmp.ne.s32.totalorder %s53, %s69
      %p71 = scmp.eq.s32.totalorder %s45, 0
      %p72 = por %p70, %p71
      %s74 = sadd.s32 %s73, 1
      %p77 = scmp.eq.s32.totalorder %s39, 1
      %p78 = scmp.ne.s32.totalorder %s73, %s75
      %p79 = scmp.eq.s32.totalorder %s39, 0
      %p80 = por %p78, %p79
      %p81 = scmp.ne.s32.totalorder %s73, %s75
      %p82 = scmp.eq.s32.totalorder %s44, 1
      %p83 = por %p81, %p82
      %p84 = scmp.ne.s32.totalorder %s75, %s76
      %p85 = scmp.eq.s32.totalorder %s44, 0
      %p86 = por %p84, %p85
      %p87 = scmp.ne.s32.totalorder %s75, %s76
      %p88 = scmp.eq.s32.totalorder %s45, 1
      %p89 = por %p87, %p88
      %p91 = scmp.ne.s32.totalorder %s76, %s90
      %p92 = scmp.eq.s32.totalorder %s45, 0
      %p93 = por %p91, %p92
      %s95 = sadd.s32 %s94, 1
      %p98 = scmp.eq.s32.totalorder %s39, 1
      %p99 = scmp.ne.s32.totalorder %s94, %s96
      %p100 = scmp.eq.s32.totalorder %s39, 0
      %p101 = por %p99, %p100
      %p102 = scmp.ne.s32.totalorder %s94, %s96
      %p103 = scmp.eq.s32.totalorder %s44, 1
      %p104 = por %p102, %p103
      %p105 = scmp.ne.s32.totalorder %s96, %s97
      %p106 = scmp.eq.s32.totalorder %s44, 0
      %p107 = por %p105, %p106
      %p108 = scmp.ne.s32.totalorder %s96, %s97
      %p109 = scmp.eq.s32.totalorder %s45, 1
      %p110 = por %p108, %p109
      %p112 = scmp.ne.s32.totalorder %s97, %s111
      %p113 = scmp.eq.s32.totalorder %s45, 0
      %p114 = por %p112, %p113
      %s116 = sadd.s32 %s115, 1
      %p119 = scmp.eq.s32.totalorder %s39, 1
      %p120 = scmp.ne.s32.totalorder %s115, %s117
      %p121 = scmp.eq.s32.totalorder %s39, 0
      %p122 = por %p120, %p121
      %p123 = scmp.ne.s32.totalorder %s115, %s117
      %p124 = scmp.eq.s32.totalorder %s44, 1
      %p125 = por %p123, %p124
      %p126 = scmp.ne.s32.totalorder %s117, %s118
      %p127 = scmp.eq.s32.totalorder %s44, 0
      %p128 = por %p126, %p127
      %p129 = scmp.ne.s32.totalorder %s117, %s118
      %p130 = scmp.eq.s32.totalorder %s45, 1
      %p131 = por %p129, %p130
      %p133 = scmp.ne.s32.totalorder %s118, %s132
      %p134 = scmp.eq.s32.totalorder %s45, 0
      %p135 = por %p133, %p134
      %s137 = sadd.s32 %s136, 1
      %p140 = scmp.eq.s32.totalorder %s39, 1
      %p141 = scmp.ne.s32.totalorder %s136, %s138
      %p142 = scmp.eq.s32.totalorder %s39, 0
      %p143 = por %p141, %p142
      %p144 = scmp.ne.s32.totalorder %s136, %s138
      %p145 = scmp.eq.s32.totalorder %s44, 1
      %p146 = por %p144, %p145
      %p147 = scmp.ne.s32.totalorder %s138, %s139
      %p148 = scmp.eq.s32.totalorder %s44, 0
      %p149 = por %p147, %p148
      %p150 = scmp.ne.s32.totalorder %s138, %s139
      %p151 = scmp.eq.s32.totalorder %s45, 1
      %p152 = por %p150, %p151
      %p154 = scmp.ne.s32.totalorder %s139, %s153
      %p155 = scmp.eq.s32.totalorder %s45, 0
      %p156 = por %p154, %p155
      %s158 = sadd.s32 %s157, 1
      %p161 = scmp.eq.s32.totalorder %s39, 1
      %p162 = scmp.ne.s32.totalorder %s157, %s159
      %p163 = scmp.eq.s32.totalorder %s39, 0
      %p164 = por %p162, %p163
      %p165 = scmp.ne.s32.totalorder %s157, %s159
      %p166 = scmp.eq.s32.totalorder %s44, 1
      %p167 = por %p165, %p166
      %p168 = scmp.ne.s32.totalorder %s159, %s160
      %p169 = scmp.eq.s32.totalorder %s44, 0
      %p170 = por %p168, %p169
      %p171 = scmp.ne.s32.totalorder %s159, %s160
      %p172 = scmp.eq.s32.totalorder %s45, 1
      %p173 = por %p171, %p172
      %p175 = scmp.ne.s32.totalorder %s160, %s174
      %p176 = scmp.eq.s32.totalorder %s45, 0
      %p177 = por %p175, %p176
      %s179 = sadd.s32 %s178, 1
      %p182 = scmp.eq.s32.totalorder %s39, 1
      %p183 = scmp.ne.s32.totalorder %s178, %s180
      %p184 = scmp.eq.s32.totalorder %s39, 0
      %p185 = por %p183, %p184
      %p186 = scmp.ne.s32.totalorder %s178, %s180
      %p187 = scmp.eq.s32.totalorder %s44, 1
      %p188 = por %p186, %p187
      %p189 = scmp.ne.s32.totalorder %s180, %s181
      %p190 = scmp.eq.s32.totalorder %s44, 0
      %p191 = por %p189, %p190
      %p192 = scmp.ne.s32.totalorder %s180, %s181
      %p193 = scmp.eq.s32.totalorder %s45, 1
      %p194 = por %p192, %p193
      %p196 = scmp.ne.s32.totalorder %s181, %s195
      %p197 = scmp.eq.s32.totalorder %s45, 0
      %p198 = por %p196, %p197
      %s200 = sadd.s32 %s199, 1
      %p203 = scmp.eq.s32.totalorder %s39, 1
      %p204 = scmp.ne.s32.totalorder %s199, %s201
      %p205 = scmp.eq.s32.totalorder %s39, 0
      %p206 = por %p204, %p205
      %p207 = scmp.ne.s32.totalorder %s199, %s201
      %p208 = scmp.eq.s32.totalorder %s44, 1
      %p209 = por %p207, %p208
      %p210 = scmp.ne.s32.totalorder %s201, %s202
      %p211 = scmp.eq.s32.totalorder %s44, 0
      %p212 = por %p210, %p211
      %p213 = scmp.ne.s32.totalorder %s201, %s202
      %p214 = scmp.eq.s32.totalorder %s45, 1
      %p215 = por %p213, %p214
      %p217 = scmp.ne.s32.totalorder %s202, %s216
      %p218 = scmp.eq.s32.totalorder %s45, 0
      %p219 = por %p217, %p218
      %s221 = sadd.s32 %s220, 1
      %p224 = scmp.eq.s32.totalorder %s39, 1
      %p225 = scmp.ne.s32.totalorder %s220, %s222
      %p226 = scmp.eq.s32.totalorder %s39, 0
      %p227 = por %p225, %p226
      %p228 = scmp.ne.s32.totalorder %s220, %s222
      %p229 = scmp.eq.s32.totalorder %s44, 1
      %p230 = por %p228, %p229
      %p231 = scmp.ne.s32.totalorder %s222, %s223
      %p232 = scmp.eq.s32.totalorder %s44, 0
      %p233 = por %p231, %p232
      %p234 = scmp.ne.s32.totalorder %s222, %s223
      %p235 = scmp.eq.s32.totalorder %s45, 1
      %p236 = por %p234, %p235
      %p238 = scmp.ne.s32.totalorder %s223, %s237
      %p239 = scmp.eq.s32.totalorder %s45, 0
      %p240 = por %p238, %p239
      %s242 = sadd.s32 %s241, 1
      %p245 = scmp.eq.s32.totalorder %s39, 1
      %p246 = scmp.ne.s32.totalorder %s241, %s243
      %p247 = scmp.eq.s32.totalorder %s39, 0
      %p248 = por %p246, %p247
      %p249 = scmp.ne.s32.totalorder %s241, %s243
      %p250 = scmp.eq.s32.totalorder %s44, 1
      %p251 = por %p249, %p250
      %p252 = scmp.ne.s32.totalorder %s243, %s244
      %p253 = scmp.eq.s32.totalorder %s44, 0
      %p254 = por %p252, %p253
      %p255 = scmp.ne.s32.totalorder %s243, %s244
      %p256 = scmp.eq.s32.totalorder %s45, 1
      %p257 = por %p255, %p256
      %p259 = scmp.ne.s32.totalorder %s244, %s258
      %p260 = scmp.eq.s32.totalorder %s45, 0
      %p261 = por %p259, %p260
      %s263 = sadd.s32 %s262, 1
      %p266 = scmp.eq.s32.totalorder %s39, 1
      %p267 = scmp.ne.s32.totalorder %s262, %s264
      %p268 = scmp.eq.s32.totalorder %s39, 0
      %p269 = por %p267, %p268
      %p270 = scmp.ne.s32.totalorder %s262, %s264
      %p271 = scmp.eq.s32.totalorder %s44, 1
      %p272 = por %p270, %p271
      %p273 = scmp.ne.s32.totalorder %s264, %s265
      %p274 = scmp.eq.s32.totalorder %s44, 0
      %p275 = por %p273, %p274
      %p276 = scmp.ne.s32.totalorder %s264, %s265
      %p277 = scmp.eq.s32.totalorder %s45, 1
      %p278 = por %p276, %p277
      %p280 = scmp.ne.s32.totalorder %s265, %s279
      %p281 = scmp.eq.s32.totalorder %s45, 0
      %p282 = por %p280, %p281
      %s284 = sadd.s32 %s283, 1
      %p287 = scmp.eq.s32.totalorder %s39, 1
      %p288 = scmp.ne.s32.totalorder %s283, %s285
      %p289 = scmp.eq.s32.totalorder %s39, 0
      %p290 = por %p288, %p289
      %p291 = scmp.ne.s32.totalorder %s283, %s285
      %p292 = scmp.eq.s32.totalorder %s44, 1
      %p293 = por %p291, %p292
      %p294 = scmp.ne.s32.totalorder %s285, %s286
      %p295 = scmp.eq.s32.totalorder %s44, 0
      %p296 = por %p294, %p295
      %p297 = scmp.ne.s32.totalorder %s285, %s286
      %p298 = scmp.eq.s32.totalorder %s45, 1
      %p299 = por %p297, %p298
      %p301 = scmp.ne.s32.totalorder %s286, %s300
      %p302 = scmp.eq.s32.totalorder %s45, 0
      %p303 = por %p301, %p302
      %s305 = sadd.s32 %s304, 1
      %p308 = scmp.eq.s32.totalorder %s39, 1
      %p309 = scmp.ne.s32.totalorder %s304, %s306
      %p310 = scmp.eq.s32.totalorder %s39, 0
      %p311 = por %p309, %p310
      %p312 = scmp.ne.s32.totalorder %s304, %s306
      %p313 = scmp.eq.s32.totalorder %s44, 1
      %p314 = por %p312, %p313
      %p315 = scmp.ne.s32.totalorder %s306, %s307
      %p316 = scmp.eq.s32.totalorder %s44, 0
      %p317 = por %p315, %p316
      %p318 = scmp.ne.s32.totalorder %s306, %s307
      %p319 = scmp.eq.s32.totalorder %s45, 1
      %p320 = por %p318, %p319
      %p322 = scmp.ne.s32.totalorder %s307, %s321
      %p323 = scmp.eq.s32.totalorder %s45, 0
      %p324 = por %p322, %p323
      %s326 = sadd.s32 %s325, 1
      %p329 = scmp.eq.s32.totalorder %s39, 1
      %p330 = scmp.ne.s32.totalorder %s325, %s327
      %p331 = scmp.eq.s32.totalorder %s39, 0
      %p332 = por %p330, %p331
      %p333 = scmp.ne.s32.totalorder %s325, %s327
      %p334 = scmp.eq.s32.totalorder %s44, 1
      %p335 = por %p333, %p334
      %p336 = scmp.ne.s32.totalorder %s327, %s328
      %p337 = scmp.eq.s32.totalorder %s44, 0
      %p338 = por %p336, %p337
      %p339 = scmp.ne.s32.totalorder %s327, %s328
      %p340 = scmp.eq.s32.totalorder %s45, 1
      %p341 = por %p339, %p340
      %p343 = scmp.ne.s32.totalorder %s328, %s342
      %p344 = scmp.eq.s32.totalorder %s45, 0
      %p345 = por %p343, %p344
      %s347 = sadd.s32 %s346, 1
      %p350 = scmp.eq.s32.totalorder %s39, 1
      %p351 = scmp.ne.s32.totalorder %s346, %s348
      %p352 = scmp.eq.s32.totalorder %s39, 0
      %p353 = por %p351, %p352
      %p354 = scmp.ne.s32.totalorder %s346, %s348
      %p355 = scmp.eq.s32.totalorder %s44, 1
      %p356 = por %p354, %p355
      %p357 = scmp.ne.s32.totalorder %s348, %s349
      %p358 = scmp.eq.s32.totalorder %s44, 0
      %p359 = por %p357, %p358
      %p360 = scmp.ne.s32.totalorder %s348, %s349
      %p361 = scmp.eq.s32.totalorder %s45, 1
      %p362 = por %p360, %p361
      %p364 = scmp.ne.s32.totalorder %s349, %s363
      %p365 = scmp.eq.s32.totalorder %s45, 0
      %p366 = por %p364, %p365
      %s368 = sadd.s32 %s367, 1
      %p371 = scmp.eq.s32.totalorder %s39, 1
      %p372 = scmp.ne.s32.totalorder %s367, %s369
      %p373 = scmp.eq.s32.totalorder %s39, 0
      %p374 = por %p372, %p373
      %p375 = scmp.ne.s32.totalorder %s367, %s369
      %p376 = scmp.eq.s32.totalorder %s44, 1
      %p377 = por %p375, %p376
      %p378 = scmp.ne.s32.totalorder %s369, %s370
      %p379 = scmp.eq.s32.totalorder %s44, 0
      %p380 = por %p378, %p379
      %p381 = scmp.ne.s32.totalorder %s369, %s370
      %p382 = scmp.eq.s32.totalorder %s45, 1
      %p383 = por %p381, %p382
      %p385 = scmp.ne.s32.totalorder %s370, %s384
      %p386 = scmp.eq.s32.totalorder %s45, 0
      %p387 = por %p385, %p386
      %s389 = sadd.s32 %s388, 1
      %p392 = scmp.eq.s32.totalorder %s39, 1
      %p393 = scmp.ne.s32.totalorder %s388, %s390
      %p394 = scmp.eq.s32.totalorder %s39, 0
      %p395 = por %p393, %p394
      %p396 = scmp.ne.s32.totalorder %s388, %s390
      %p397 = scmp.eq.s32.totalorder %s44, 1
      %p398 = por %p396, %p397
      %p399 = scmp.ne.s32.totalorder %s390, %s391
      %p400 = scmp.eq.s32.totalorder %s44, 0
      %p401 = por %p399, %p400
      %p402 = scmp.ne.s32.totalorder %s390, %s391
      %p403 = scmp.eq.s32.totalorder %s45, 1
      %p404 = por %p402, %p403
      %p406 = scmp.ne.s32.totalorder %s391, %s405
      %p407 = scmp.eq.s32.totalorder %s45, 0
      %p408 = por %p406, %p407
      %s410 = sadd.s32 %s409, 1
      %p413 = scmp.eq.s32.totalorder %s39, 1
      %p414 = scmp.ne.s32.totalorder %s409, %s411
      %p415 = scmp.eq.s32.totalorder %s39, 0
      %p416 = por %p414, %p415
      %p417 = scmp.ne.s32.totalorder %s409, %s411
      %p418 = scmp.eq.s32.totalorder %s44, 1
      %p419 = por %p417, %p418
      %p420 = scmp.ne.s32.totalorder %s411, %s412
      %p421 = scmp.eq.s32.totalorder %s44, 0
      %p422 = por %p420, %p421
      %p423 = scmp.ne.s32.totalorder %s411, %s412
      %p424 = scmp.eq.s32.totalorder %s45, 1
      %p425 = por %p423, %p424
      %p427 = scmp.ne.s32.totalorder %s412, %s426
      %p428 = scmp.eq.s32.totalorder %s45, 0
      %p429 = por %p427, %p428
      %s430 = ssub.s32 %s39, %s46
      %p431 = scmp.eq.s32.totalorder %s430, 0
      %s433 = sadd.s32 %s432, 1
      %s434 = scalar_select %p431, %s432, %s433
      %p437 = pneg %p431
      %p438 = scmp.eq.s32.totalorder %s39, 1
      %p439 = por %p437, %p438
      %p440 = scmp.ne.s32.totalorder %s432, %s435
      %p441 = scmp.eq.s32.totalorder %s39, 0
      %p442 = por %p440, %p441
      %p443 = scmp.ne.s32.totalorder %s432, %s435
      %p444 = scmp.eq.s32.totalorder %s44, 1
      %p445 = por %p443, %p444
      %p446 = scmp.ne.s32.totalorder %s435, %s436
      %p447 = scmp.eq.s32.totalorder %s44, 0
      %p448 = por %p446, %p447
      %p449 = scmp.ne.s32.totalorder %s435, %s436
      %p450 = scmp.eq.s32.totalorder %s45, 1
      %p451 = por %p449, %p450
      %p453 = scmp.ne.s32.totalorder %s436, %s452
      %p454 = scmp.eq.s32.totalorder %s45, 0
      %p455 = por %p453, %p454
      %s456 = ssub.s32 %s39, %s46
      %p457 = scmp.eq.s32.totalorder %s456, 0
      %s459 = sadd.s32 %s458, 1
      %s460 = scalar_select %p457, %s458, %s459
      %p463 = pneg %p457
      %p464 = scmp.eq.s32.totalorder %s39, 1
      %p465 = por %p463, %p464
      %p466 = scmp.ne.s32.totalorder %s458, %s461
      %p467 = scmp.eq.s32.totalorder %s39, 0
      %p468 = por %p466, %p467
      %p469 = scmp.ne.s32.totalorder %s458, %s461
      %p470 = scmp.eq.s32.totalorder %s44, 1
      %p471 = por %p469, %p470
      %p472 = scmp.ne.s32.totalorder %s461, %s462
      %p473 = scmp.eq.s32.totalorder %s44, 0
      %p474 = por %p472, %p473
      %p475 = scmp.ne.s32.totalorder %s461, %s462
      %p476 = scmp.eq.s32.totalorder %s45, 1
      %p477 = por %p475, %p476
      %p479 = scmp.ne.s32.totalorder %s462, %s478
      %p480 = scmp.eq.s32.totalorder %s45, 0
      %p481 = por %p479, %p480
      %p482 = scmp.le.s32.totalorder 1, %s39
      %p483 = scmp.lt.s32.totalorder %s39, 3
      %p484 = pnand %p482, %p483
      %p485 = pneg %p484
      // Predicated region
      $region9: #{tpu_custom_call.1} parent=5 // pred_check
        _
      $region10: #{tpu_custom_call.1} parent=5 // pred_check_branch
        %487 = sbr.rel (%p484) target = $region12
      $region11: #{tpu_custom_call.1} parent=5 // pred_region
        %s488 = ssub.s32 %s39, 1
        // Predicated region
        $region13: #{tpu_custom_call.1} parent=11 // pred_check
          %p489 = pneg %p86
        $region14: #{tpu_custom_call.1} parent=11 // pred_check_branch
          %491 = sbr.rel (%p489) target = $region16
        $region15: #{tpu_custom_call.1} parent=11 // pred_region
          %s493 = ssub.s32 16384, 16384
          %494 = vsyncadd [#allocation7], %s493
          %s495 = sshll.u32 [#allocation6], 4
          %s496 = int_to_ptr.vmem [resolvable:$true] %s495
          %501 = dma.hbm_to_vmem [thread:$0]  %s1, 16384, %s496, [#allocation7], 128, 128, 8
        $region16: #{tpu_custom_call.1} parent=11 // pred_fallthru
          _
        // Predicated region
        $region17: #{tpu_custom_call.1} parent=11 // pred_check
          %p502 = pneg %p107
        $region18: #{tpu_custom_call.1} parent=11 // pred_check_branch
          %504 = sbr.rel (%p502) target = $region20
        $region19: #{tpu_custom_call.1} parent=11 // pred_region
          %s506 = ssub.s32 16, 16
          %507 = vsyncadd [#allocation7], %s506
          %s509 = sshll.u32 [#allocation8], 4
          %s510 = int_to_ptr.vmem [resolvable:$true] %s509
          %512 = dma.hbm_to_vmem [thread:$0]  %s2, 16, %s510, [#allocation7]
        $region20: #{tpu_custom_call.1} parent=11 // pred_fallthru
          _
        // Predicated region
        $region21: #{tpu_custom_call.1} parent=11 // pred_check
          %p513 = pneg %p128
        $region22: #{tpu_custom_call.1} parent=11 // pred_check_branch
          %515 = sbr.rel (%p513) target = $region24
        $region23: #{tpu_custom_call.1} parent=11 // pred_region
          %s517 = ssub.s32 256, 256
          %518 = vsyncadd [#allocation10], %s517
          %s519 = sshll.u32 [#allocation9], 4
          %s520 = int_to_ptr.vmem [resolvable:$true] %s519
          %525 = dma.hbm_to_vmem [thread:$0]  %s3, 256, %s520, [#allocation10], 128, 128, 8
        $region24: #{tpu_custom_call.1} parent=11 // pred_fallthru
          _
        // Predicated region
        $region25: #{tpu_custom_call.1} parent=11 // pred_check
          %p526 = pneg %p149
        $region26: #{tpu_custom_call.1} parent=11 // pred_check_branch
          %528 = sbr.rel (%p526) target = $region28
        $region27: #{tpu_custom_call.1} parent=11 // pred_region
          %s530 = ssub.s32 6144, 6144
          %531 = vsyncadd [#allocation10], %s530
          %s532 = sshll.u32 [#allocation11], 4
          %s533 = int_to_ptr.vmem [resolvable:$true] %s532
          %538 = dma.hbm_to_vmem [thread:$0]  %s4, 6144, %s533, [#allocation10], 384, 384, 24
        $region28: #{tpu_custom_call.1} parent=11 // pred_fallthru
          _
        // Predicated region
        $region29: #{tpu_custom_call.1} parent=11 // pred_check
          %p539 = pneg %p170
        $region30: #{tpu_custom_call.1} parent=11 // pred_check_branch
          %541 = sbr.rel (%p539) target = $region32
        $region31: #{tpu_custom_call.1} parent=11 // pred_region
          _
        $region32: #{tpu_custom_call.1} parent=11 // pred_fallthru
          _
        // Predicated region
        $region33: #{tpu_custom_call.1} parent=11 // pred_check
          %p542 = pneg %p191
        $region34: #{tpu_custom_call.1} parent=11 // pred_check_branch
          %544 = sbr.rel (%p542) target = $region36
        $region35: #{tpu_custom_call.1} parent=11 // pred_region
          %s546 = ssub.s32 2048, 2048
          %547 = vsyncadd [#allocation13], %s546
          %s548 = sshll.u32 [#allocation12], 4
          %s549 = int_to_ptr.vmem [resolvable:$true] %s548
          %554 = dma.hbm_to_vmem [thread:$0]  %s6, 2048, %s549, [#allocation13], 128, 128, 8
        $region36: #{tpu_custom_call.1} parent=11 // pred_fallthru
          _
        // Predicated region
        $region37: #{tpu_custom_call.1} parent=11 // pred_check
          %p555 = pneg %p212
        $region38: #{tpu_custom_call.1} parent=11 // pred_check_branch
          %557 = sbr.rel (%p555) target = $region40
        $region39: #{tpu_custom_call.1} parent=11 // pred_region
          _
        $region40: #{tpu_custom_call.1} parent=11 // pred_fallthru
          _
        // Predicated region
        $region41: #{tpu_custom_call.1} parent=11 // pred_check
          %p558 = pneg %p233
        $region42: #{tpu_custom_call.1} parent=11 // pred_check_branch
          %560 = sbr.rel (%p558) target = $region44
        $region43: #{tpu_custom_call.1} parent=11 // pred_region
          _
        $region44: #{tpu_custom_call.1} parent=11 // pred_fallthru
          _
        // Predicated region
        $region45: #{tpu_custom_call.1} parent=11 // pred_check
          %p561 = pneg %p254
        $region46: #{tpu_custom_call.1} parent=11 // pred_check_branch
          %563 = sbr.rel (%p561) target = $region48
        $region47: #{tpu_custom_call.1} parent=11 // pred_region
          _
        $region48: #{tpu_custom_call.1} parent=11 // pred_fallthru
          _
        // Predicated region
        $region49: #{tpu_custom_call.1} parent=11 // pred_check
          %p564 = pneg %p275
        $region50: #{tpu_custom_call.1} parent=11 // pred_check_branch
          %566 = sbr.rel (%p564) target = $region52
        $region51: #{tpu_custom_call.1} parent=11 // pred_region
          %s568 = ssub.s32 8192, 8192
          %569 = vsyncadd [#allocation13], %s568
          %s570 = sshll.u32 [#allocation14], 4
          %s571 = int_to_ptr.vmem [resolvable:$true] %s570
          %576 = dma.hbm_to_vmem [thread:$0]  %s10, 8192, %s571, [#allocation13], 512, 512, 32
        $region52: #{tpu_custom_call.1} parent=11 // pred_fallthru
          _
        // Predicated region
        $region53: #{tpu_custom_call.1} parent=11 // pred_check
          %p577 = pneg %p296
        $region54: #{tpu_custom_call.1} parent=11 // pred_check_branch
          %579 = sbr.rel (%p577) target = $region56
        $region55: #{tpu_custom_call.1} parent=11 // pred_region
          _
        $region56: #{tpu_custom_call.1} parent=11 // pred_fallthru
          _
        // Predicated region
        $region57: #{tpu_custom_call.1} parent=11 // pred_check
          %p580 = pneg %p317
        $region58: #{tpu_custom_call.1} parent=11 // pred_check_branch
          %582 = sbr.rel (%p580) target = $region60
        $region59: #{tpu_custom_call.1} parent=11 // pred_region
          %s584 = ssub.s32 8192, 8192
          %585 = vsyncadd [#allocation16], %s584
          %s586 = sshll.u32 [#allocation15], 4
          %s587 = int_to_ptr.vmem [resolvable:$true] %s586
          %592 = dma.hbm_to_vmem [thread:$0]  %s12, 8192, %s587, [#allocation16], 128, 128, 8
        $region60: #{tpu_custom_call.1} parent=11 // pred_fallthru
          _
        // Predicated region
        $region61: #{tpu_custom_call.1} parent=11 // pred_check
          %p593 = pneg %p338
        $region62: #{tpu_custom_call.1} parent=11 // pred_check_branch
          %595 = sbr.rel (%p593) target = $region64
        $region63: #{tpu_custom_call.1} parent=11 // pred_region
          _
        $region64: #{tpu_custom_call.1} parent=11 // pred_fallthru
          _
        // Predicated region
        $region65: #{tpu_custom_call.1} parent=11 // pred_check
          %p596 = pneg %p359
        $region66: #{tpu_custom_call.1} parent=11 // pred_check_branch
          %598 = sbr.rel (%p596) target = $region68
        $region67: #{tpu_custom_call.1} parent=11 // pred_region
          _
        $region68: #{tpu_custom_call.1} parent=11 // pred_fallthru
          _
        // Predicated region
        $region69: #{tpu_custom_call.1} parent=11 // pred_check
          %p599 = pneg %p380
        $region70: #{tpu_custom_call.1} parent=11 // pred_check_branch
          %601 = sbr.rel (%p599) target = $region72
        $region71: #{tpu_custom_call.1} parent=11 // pred_region
          _
        $region72: #{tpu_custom_call.1} parent=11 // pred_fallthru
          _
        // Predicated region
        $region73: #{tpu_custom_call.1} parent=11 // pred_check
          %p602 = pneg %p401
        $region74: #{tpu_custom_call.1} parent=11 // pred_check_branch
          %604 = sbr.rel (%p602) target = $region76
        $region75: #{tpu_custom_call.1} parent=11 // pred_region
          %s606 = ssub.s32 2048, 2048
          %607 = vsyncadd [#allocation16], %s606
          %s608 = sshll.u32 [#allocation17], 4
          %s609 = int_to_ptr.vmem [resolvable:$true] %s608
          %614 = dma.hbm_to_vmem [thread:$0]  %s16, 2048, %s609, [#allocation16], 128, 128, 8
        $region76: #{tpu_custom_call.1} parent=11 // pred_fallthru
          _
        // Predicated region
        $region77: #{tpu_custom_call.1} parent=11 // pred_check
          %p615 = pneg %p422
        $region78: #{tpu_custom_call.1} parent=11 // pred_check_branch
          %617 = sbr.rel (%p615) target = $region80
        $region79: #{tpu_custom_call.1} parent=11 // pred_region
          _
        $region80: #{tpu_custom_call.1} parent=11 // pred_fallthru
          _
      $region12: #{tpu_custom_call.1} parent=5 // pred_fallthru
        _
      %p618 = scmp.lt.s32.totalorder %s39, 2
      // Predicated region
      $region81: #{tpu_custom_call.1} parent=5 // pred_check
        %p619 = pneg %p618
      $region82: #{tpu_custom_call.1} parent=5 // pred_check_branch
        %621 = sbr.rel (%p619) target = $region84
      $region83: #{tpu_custom_call.1} parent=5 // pred_region
        // Predicated region
        $region85: #{tpu_custom_call.1} parent=83 // pred_check
          %p622 = pneg %p59
        $region86: #{tpu_custom_call.1} parent=83 // pred_check_branch
          %624 = sbr.rel (%p622) target = $region88
        $region87: #{tpu_custom_call.1} parent=83 // pred_region
          %s625 = sand.u32 %s49, 1
          %s626 = scalar_lea.sflag [#allocation4], %s625
          %s627 = sand.u32 %s49, 1
          %s628 = smul.addr %s627, 128
          %s629 = scalar_lea.vmem [#allocation3], %s628
          %s630 = smul.u32 2, %s39
          %s632 = ssub.s32 2048, 2048
          %633 = vsyncadd %s626, %s632
          %s634 = smul.addr %s630, 8
          %s635 = smul.addr %s634, 128
          %s636 = scalar_lea.hbm %s0, %s635
          %s637 = sshll.u32 %s629, 4
          %s638 = int_to_ptr.vmem [resolvable:$true] %s637
          %643 = dma.hbm_to_vmem [thread:$0]  %s636, 2048, %s638, %s626, 1024, 1024, 64
        $region88: #{tpu_custom_call.1} parent=83 // pred_fallthru
          _
      $region84: #{tpu_custom_call.1} parent=5 // pred_fallthru
        _
      %p644 = scmp.le.s32.totalorder 1, %s39
      %p645 = scmp.lt.s32.totalorder %s39, 3
      %p646 = pnand %p644, %p645
      %p647 = pneg %p646
      // Predicated region
      $region89: #{tpu_custom_call.1} parent=5 // pred_check
        _
      $region90: #{tpu_custom_call.1} parent=5 // pred_check_branch
        %649 = sbr.rel (%p646) target = $region92
      $region91: #{tpu_custom_call.1} parent=5 // pred_region
        %s650 = ssub.s32 %s39, 1
        %s651 = sand.u32 %s52, 1
        %s652 = scalar_lea.sflag [#allocation4], %s651
        %s653 = sand.u32 %s52, 1
        %s654 = smul.addr %s653, 128
        %s655 = scalar_lea.vmem [#allocation3], %s654
        // Predicated region
        $region93: #{tpu_custom_call.1} parent=91 // pred_check
          %p656 = pneg %p65
        $region94: #{tpu_custom_call.1} parent=91 // pred_check_branch
          %658 = sbr.rel (%p656) target = $region96
        $region95: #{tpu_custom_call.1} parent=91 // pred_region
          %659 = dma.done %s652, 2048
        $region96: #{tpu_custom_call.1} parent=91 // pred_fallthru
          _
        // Predicated region
        $region97: #{tpu_custom_call.1} parent=91 // pred_check
          %p660 = pneg %p86
        $region98: #{tpu_custom_call.1} parent=91 // pred_check_branch
          %662 = sbr.rel (%p660) target = $region100
        $region99: #{tpu_custom_call.1} parent=91 // pred_region
          %663 = dma.done [#allocation7], 16384
        $region100: #{tpu_custom_call.1} parent=91 // pred_fallthru
          _
        // Predicated region
        $region101: #{tpu_custom_call.1} parent=91 // pred_check
          %p664 = pneg %p107
        $region102: #{tpu_custom_call.1} parent=91 // pred_check_branch
          %666 = sbr.rel (%p664) target = $region104
        $region103: #{tpu_custom_call.1} parent=91 // pred_region
          %667 = dma.done [#allocation7], 16
        $region104: #{tpu_custom_call.1} parent=91 // pred_fallthru
          _
        // Predicated region
        $region105: #{tpu_custom_call.1} parent=91 // pred_check
          %p668 = pneg %p128
        $region106: #{tpu_custom_call.1} parent=91 // pred_check_branch
          %670 = sbr.rel (%p668) target = $region108
        $region107: #{tpu_custom_call.1} parent=91 // pred_region
          %671 = dma.done [#allocation10], 256
        $region108: #{tpu_custom_call.1} parent=91 // pred_fallthru
          _
        // Predicated region
        $region109: #{tpu_custom_call.1} parent=91 // pred_check
          %p672 = pneg %p149
        $region110: #{tpu_custom_call.1} parent=91 // pred_check_branch
          %674 = sbr.rel (%p672) target = $region112
        $region111: #{tpu_custom_call.1} parent=91 // pred_region
          %675 = dma.done [#allocation10], 6144
        $region112: #{tpu_custom_call.1} parent=91 // pred_fallthru
          _
        // Predicated region
        $region113: #{tpu_custom_call.1} parent=91 // pred_check
          %p676 = pneg %p191
        $region114: #{tpu_custom_call.1} parent=91 // pred_check_branch
          %678 = sbr.rel (%p676) target = $region116
        $region115: #{tpu_custom_call.1} parent=91 // pred_region
          %679 = dma.done [#allocation13], 2048
        $region116: #{tpu_custom_call.1} parent=91 // pred_fallthru
          _
        // Predicated region
        $region117: #{tpu_custom_call.1} parent=91 // pred_check
          %p680 = pneg %p275
        $region118: #{tpu_custom_call.1} parent=91 // pred_check_branch
          %682 = sbr.rel (%p680) target = $region120
        $region119: #{tpu_custom_call.1} parent=91 // pred_region
          %683 = dma.done [#allocation13], 8192
        $region120: #{tpu_custom_call.1} parent=91 // pred_fallthru
          _
        // Predicated region
        $region121: #{tpu_custom_call.1} parent=91 // pred_check
          %p684 = pneg %p317
        $region122: #{tpu_custom_call.1} parent=91 // pred_check_branch
          %686 = sbr.rel (%p684) target = $region124
        $region123: #{tpu_custom_call.1} parent=91 // pred_region
          %687 = dma.done [#allocation16], 8192
        $region124: #{tpu_custom_call.1} parent=91 // pred_fallthru
          _
        // Predicated region
        $region125: #{tpu_custom_call.1} parent=91 // pred_check
          %p688 = pneg %p401
        $region126: #{tpu_custom_call.1} parent=91 // pred_check_branch
          %690 = sbr.rel (%p688) target = $region128
        $region127: #{tpu_custom_call.1} parent=91 // pred_region
          %691 = dma.done [#allocation16], 2048
        $region128: #{tpu_custom_call.1} parent=91 // pred_fallthru
          _
        %s692 = sand.u32 %s52, 1
        %s693 = scalar_lea.sflag [#allocation4], %s692
        %s694 = sand.u32 %s52, 1
        %s695 = smul.addr %s694, 128
        %s696 = scalar_lea.vmem [#allocation3], %s695
        %p697 = pneg %p65
        %p698 = pneg %p62
        %p699 = pneg %p86
        %p700 = pneg %p83
        %p701 = pneg %p107
        %p702 = pneg %p104
        %p703 = pneg %p128
        %p704 = pneg %p125
        %p705 = pneg %p149
        %p706 = pneg %p146
        %p707 = pneg %p170
        %p708 = pneg %p167
        %p709 = pneg %p191
        %p710 = pneg %p188
        %p711 = pneg %p212
        %p712 = pneg %p209
        %p713 = pneg %p233
        %p714 = pneg %p230
        %p715 = pneg %p254
        %p716 = pneg %p251
        %p717 = pneg %p275
        %p718 = pneg %p272
        %p719 = pneg %p296
        %p720 = pneg %p293
        %p721 = pneg %p317
        %p722 = pneg %p314
        %p723 = pneg %p338
        %p724 = pneg %p335
        %p725 = pneg %p359
        %p726 = pneg %p356
        %p727 = pneg %p380
        %p728 = pneg %p377
        %p729 = pneg %p401
        %p730 = pneg %p398
        %p731 = pneg %p422
        %p732 = pneg %p419
        %p733 = pneg %p448
        %p734 = pneg %p445
        %s735 = sand.u32 %s435, 1
        %s736 = scalar_lea.sflag [#allocation5], %s735
        %s737 = sand.u32 %s435, 1
        %s738 = smul.addr %s737, 16
        %s739 = scalar_lea.vmem [#allocation18], %s738
        %p740 = pneg %p474
        %p741 = pneg %p471
        %s742 = sand.u32 %s461, 1
        %s743 = scalar_lea.sflag [#allocation20], %s742
        %s744 = sand.u32 %s461, 1
        %s745 = smul.addr %s744, 16
        %s746 = scalar_lea.vmem [#allocation19], %s745
        %s747 = smul.u32 2, %s44
        %s748 = smul.u32 2, %s44
        %v749 = vld [vmem:[%s655] sm:$0xff]
        %v750 = vld [vmem:[%s655 + $0x8] sm:$0xff]
        %v751 = vld [vmem:[%s655 + $0x10] sm:$0xff]
        %v752 = vld [vmem:[%s655 + $0x18] sm:$0xff]
        %v753 = vld [vmem:[%s655 + $0x20] sm:$0xff]
        %v754 = vld [vmem:[%s655 + $0x28] sm:$0xff]
        %v755 = vld [vmem:[%s655 + $0x30] sm:$0xff]
        %v756 = vld [vmem:[%s655 + $0x38] sm:$0xff]
        %v757 = vld [vmem:[%s655 + $0x40] sm:$0xff]
        %v758 = vld [vmem:[%s655 + $0x48] sm:$0xff]
        %v759 = vld [vmem:[%s655 + $0x50] sm:$0xff]
        %v760 = vld [vmem:[%s655 + $0x58] sm:$0xff]
        %v761 = vld [vmem:[%s655 + $0x60] sm:$0xff]
        %v762 = vld [vmem:[%s655 + $0x68] sm:$0xff]
        %v763 = vld [vmem:[%s655 + $0x70] sm:$0xff]
        %v764 = vld [vmem:[%s655 + $0x78] sm:$0xff]
        %v765 = vld [vmem:[#allocation6] sm:$0xff]
        %v766 = vld [vmem:[#allocation6 + $0x8] sm:$0xff]
        %v767 = vld [vmem:[#allocation6 + $0x10] sm:$0xff]
        %v768 = vld [vmem:[#allocation6 + $0x18] sm:$0xff]
        %v769 = vld [vmem:[#allocation6 + $0x20] sm:$0xff]
        %v770 = vld [vmem:[#allocation6 + $0x28] sm:$0xff]
        %v771 = vld [vmem:[#allocation6 + $0x30] sm:$0xff]
        %v772 = vld [vmem:[#allocation6 + $0x38] sm:$0xff]
        %v773 = vld [vmem:[#allocation6 + $0x40] sm:$0xff]
        %v774 = vld [vmem:[#allocation6 + $0x48] sm:$0xff]
        %v775 = vld [vmem:[#allocation6 + $0x50] sm:$0xff]
        %v776 = vld [vmem:[#allocation6 + $0x58] sm:$0xff]
        %v777 = vld [vmem:[#allocation6 + $0x60] sm:$0xff]
        %v778 = vld [vmem:[#allocation6 + $0x68] sm:$0xff]
        %v779 = vld [vmem:[#allocation6 + $0x70] sm:$0xff]
        %v780 = vld [vmem:[#allocation6 + $0x78] sm:$0xff]
        %v781 = vld [vmem:[#allocation6 + $0x80] sm:$0xff]
        %v782 = vld [vmem:[#allocation6 + $0x88] sm:$0xff]
        %v783 = vld [vmem:[#allocation6 + $0x90] sm:$0xff]
        %v784 = vld [vmem:[#allocation6 + $0x98] sm:$0xff]
        %v785 = vld [vmem:[#allocation6 + $0xa0] sm:$0xff]
        %v786 = vld [vmem:[#allocation6 + $0xa8] sm:$0xff]
        %v787 = vld [vmem:[#allocation6 + $0xb0] sm:$0xff]
        %v788 = vld [vmem:[#allocation6 + $0xb8] sm:$0xff]
        %v789 = vld [vmem:[#allocation6 + $0xc0] sm:$0xff]
        %v790 = vld [vmem:[#allocation6 + $0xc8] sm:$0xff]
        %v791 = vld [vmem:[#allocation6 + $0xd0] sm:$0xff]
        %v792 = vld [vmem:[#allocation6 + $0xd8] sm:$0xff]
        %v793 = vld [vmem:[#allocation6 + $0xe0] sm:$0xff]
        %v794 = vld [vmem:[#allocation6 + $0xe8] sm:$0xff]
        %v795 = vld [vmem:[#allocation6 + $0xf0] sm:$0xff]
        %v796 = vld [vmem:[#allocation6 + $0xf8] sm:$0xff]
        %v797 = vld [vmem:[#allocation6 + $0x100] sm:$0xff]
        %v798 = vld [vmem:[#allocation6 + $0x108] sm:$0xff]
        %v799 = vld [vmem:[#allocation6 + $0x110] sm:$0xff]
        %v800 = vld [vmem:[#allocation6 + $0x118] sm:$0xff]
        %v801 = vld [vmem:[#allocation6 + $0x120] sm:$0xff]
        %v802 = vld [vmem:[#allocation6 + $0x128] sm:$0xff]
        %v803 = vld [vmem:[#allocation6 + $0x130] sm:$0xff]
        %v804 = vld [vmem:[#allocation6 + $0x138] sm:$0xff]
        %v805 = vld [vmem:[#allocation6 + $0x140] sm:$0xff]
        %v806 = vld [vmem:[#allocation6 + $0x148] sm:$0xff]
        %v807 = vld [vmem:[#allocation6 + $0x150] sm:$0xff]
        %v808 = vld [vmem:[#allocation6 + $0x158] sm:$0xff]
        %v809 = vld [vmem:[#allocation6 + $0x160] sm:$0xff]
        %v810 = vld [vmem:[#allocation6 + $0x168] sm:$0xff]
        %v811 = vld [vmem:[#allocation6 + $0x170] sm:$0xff]
        %v812 = vld [vmem:[#allocation6 + $0x178] sm:$0xff]
        %v813 = vld [vmem:[#allocation6 + $0x180] sm:$0xff]
        %v814 = vld [vmem:[#allocation6 + $0x188] sm:$0xff]
        %v815 = vld [vmem:[#allocation6 + $0x190] sm:$0xff]
        %v816 = vld [vmem:[#allocation6 + $0x198] sm:$0xff]
        %v817 = vld [vmem:[#allocation6 + $0x1a0] sm:$0xff]
        %v818 = vld [vmem:[#allocation6 + $0x1a8] sm:$0xff]
        %v819 = vld [vmem:[#allocation6 + $0x1b0] sm:$0xff]
        %v820 = vld [vmem:[#allocation6 + $0x1b8] sm:$0xff]
        %v821 = vld [vmem:[#allocation6 + $0x1c0] sm:$0xff]
        %v822 = vld [vmem:[#allocation6 + $0x1c8] sm:$0xff]
        %v823 = vld [vmem:[#allocation6 + $0x1d0] sm:$0xff]
        %v824 = vld [vmem:[#allocation6 + $0x1d8] sm:$0xff]
        %v825 = vld [vmem:[#allocation6 + $0x1e0] sm:$0xff]
        %v826 = vld [vmem:[#allocation6 + $0x1e8] sm:$0xff]
        %v827 = vld [vmem:[#allocation6 + $0x1f0] sm:$0xff]
        %v828 = vld [vmem:[#allocation6 + $0x1f8] sm:$0xff]
        %v829 = vld [vmem:[#allocation6 + $0x200] sm:$0xff]
        %v830 = vld [vmem:[#allocation6 + $0x208] sm:$0xff]
        %v831 = vld [vmem:[#allocation6 + $0x210] sm:$0xff]
        %v832 = vld [vmem:[#allocation6 + $0x218] sm:$0xff]
        %v833 = vld [vmem:[#allocation6 + $0x220] sm:$0xff]
        %v834 = vld [vmem:[#allocation6 + $0x228] sm:$0xff]
        %v835 = vld [vmem:[#allocation6 + $0x230] sm:$0xff]
        %v836 = vld [vmem:[#allocation6 + $0x238] sm:$0xff]
        %v837 = vld [vmem:[#allocation6 + $0x240] sm:$0xff]
        %v838 = vld [vmem:[#allocation6 + $0x248] sm:$0xff]
        %v839 = vld [vmem:[#allocation6 + $0x250] sm:$0xff]
        %v840 = vld [vmem:[#allocation6 + $0x258] sm:$0xff]
        %v841 = vld [vmem:[#allocation6 + $0x260] sm:$0xff]
        %v842 = vld [vmem:[#allocation6 + $0x268] sm:$0xff]
        %v843 = vld [vmem:[#allocation6 + $0x270] sm:$0xff]
        %v844 = vld [vmem:[#allocation6 + $0x278] sm:$0xff]
        %v845 = vld [vmem:[#allocation6 + $0x280] sm:$0xff]
        %v846 = vld [vmem:[#allocation6 + $0x288] sm:$0xff]
        %v847 = vld [vmem:[#allocation6 + $0x290] sm:$0xff]
        %v848 = vld [vmem:[#allocation6 + $0x298] sm:$0xff]
        %v849 = vld [vmem:[#allocation6 + $0x2a0] sm:$0xff]
        %v850 = vld [vmem:[#allocation6 + $0x2a8] sm:$0xff]
        %v851 = vld [vmem:[#allocation6 + $0x2b0] sm:$0xff]
        %v852 = vld [vmem:[#allocation6 + $0x2b8] sm:$0xff]
        %v853 = vld [vmem:[#allocation6 + $0x2c0] sm:$0xff]
        %v854 = vld [vmem:[#allocation6 + $0x2c8] sm:$0xff]
        %v855 = vld [vmem:[#allocation6 + $0x2d0] sm:$0xff]
        %v856 = vld [vmem:[#allocation6 + $0x2d8] sm:$0xff]
        %v857 = vld [vmem:[#allocation6 + $0x2e0] sm:$0xff]
        %v858 = vld [vmem:[#allocation6 + $0x2e8] sm:$0xff]
        %v859 = vld [vmem:[#allocation6 + $0x2f0] sm:$0xff]
        %v860 = vld [vmem:[#allocation6 + $0x2f8] sm:$0xff]
        %v861 = vld [vmem:[#allocation6 + $0x300] sm:$0xff]
        %v862 = vld [vmem:[#allocation6 + $0x308] sm:$0xff]
        %v863 = vld [vmem:[#allocation6 + $0x310] sm:$0xff]
        %v864 = vld [vmem:[#allocation6 + $0x318] sm:$0xff]
        %v865 = vld [vmem:[#allocation6 + $0x320] sm:$0xff]
        %v866 = vld [vmem:[#allocation6 + $0x328] sm:$0xff]
        %v867 = vld [vmem:[#allocation6 + $0x330] sm:$0xff]
        %v868 = vld [vmem:[#allocation6 + $0x338] sm:$0xff]
        %v869 = vld [vmem:[#allocation6 + $0x340] sm:$0xff]
        %v870 = vld [vmem:[#allocation6 + $0x348] sm:$0xff]
        %v871 = vld [vmem:[#allocation6 + $0x350] sm:$0xff]
        %v872 = vld [vmem:[#allocation6 + $0x358] sm:$0xff]
        %v873 = vld [vmem:[#allocation6 + $0x360] sm:$0xff]
        %v874 = vld [vmem:[#allocation6 + $0x368] sm:$0xff]
        %v875 = vld [vmem:[#allocation6 + $0x370] sm:$0xff]
        %v876 = vld [vmem:[#allocation6 + $0x378] sm:$0xff]
        %v877 = vld [vmem:[#allocation6 + $0x380] sm:$0xff]
        %v878 = vld [vmem:[#allocation6 + $0x388] sm:$0xff]
        %v879 = vld [vmem:[#allocation6 + $0x390] sm:$0xff]
        %v880 = vld [vmem:[#allocation6 + $0x398] sm:$0xff]
        %v881 = vld [vmem:[#allocation6 + $0x3a0] sm:$0xff]
        %v882 = vld [vmem:[#allocation6 + $0x3a8] sm:$0xff]
        %v883 = vld [vmem:[#allocation6 + $0x3b0] sm:$0xff]
        %v884 = vld [vmem:[#allocation6 + $0x3b8] sm:$0xff]
        %v885 = vld [vmem:[#allocation6 + $0x3c0] sm:$0xff]
        %v886 = vld [vmem:[#allocation6 + $0x3c8] sm:$0xff]
        %v887 = vld [vmem:[#allocation6 + $0x3d0] sm:$0xff]
        %v888 = vld [vmem:[#allocation6 + $0x3d8] sm:$0xff]
        %v889 = vld [vmem:[#allocation6 + $0x3e0] sm:$0xff]
        %v890 = vld [vmem:[#allocation6 + $0x3e8] sm:$0xff]
        %v891 = vld [vmem:[#allocation6 + $0x3f0] sm:$0xff]
        %v892 = vld [vmem:[#allocation6 + $0x3f8] sm:$0xff]
        %v893 = vld [vmem:[#allocation8] sm:$0x1]
        %v895 = vlaneseq
        %v896 = vshrl.u32 %v895, 7
        %v897 = vsub.s32 0, %v896
        %v898 = vrot.slane %v893, %v897
        %900 = vmatprep.subr.mxu0 0.0
        %901 = vmatpush1.msra.mxu0 %v765
        %902 = vmatprep.subr.mxu0 0.0
        %903 = vmatpush1.msra.mxu0 %v766
        %904 = vmatprep.subr.mxu0 0.0
        %905 = vmatpush1.msra.mxu0 %v767
        %906 = vmatprep.subr.mxu0 0.0
        %907 = vmatpush1.msra.mxu0 %v768
        %908 = vmatprep.subr.mxu0 0.0
        %909 = vmatpush1.msra.mxu0 %v769
        %910 = vmatprep.subr.mxu0 0.0
        %911 = vmatpush1.msra.mxu0 %v770
        %912 = vmatprep.subr.mxu0 0.0
        %913 = vmatpush1.msra.mxu0 %v771
        %914 = vmatprep.subr.mxu0 0.0
        %915 = vmatpush1.msra.mxu0 %v772
        %916 = vmatprep.subr.mxu0 0.0
        %917 = vmatpush1.msra.mxu0 %v773
        %918 = vmatprep.subr.mxu0 0.0
        %919 = vmatpush1.msra.mxu0 %v774
        %920 = vmatprep.subr.mxu0 0.0
        %921 = vmatpush1.msra.mxu0 %v775
        %922 = vmatprep.subr.mxu0 0.0
        %923 = vmatpush1.msra.mxu0 %v776
        %924 = vmatprep.subr.mxu0 0.0
        %925 = vmatpush1.msra.mxu0 %v777
        %926 = vmatprep.subr.mxu0 0.0
        %927 = vmatpush1.msra.mxu0 %v778
        %928 = vmatprep.subr.mxu0 0.0
        %929 = vmatpush1.msra.mxu0 %v779
        %930 = vmatprep.subr.mxu0 0.0
        %931 = vmatpush1.msra.mxu0 %v780
        %932 = vmatprep.subr.mxu0 0.0
        %933 = vmatpush1.msra.mxu0 %v781
        %934 = vmatprep.subr.mxu0 0.0
        %935 = vmatpush1.msra.mxu0 %v782
        %936 = vmatprep.subr.mxu0 0.0
        %937 = vmatpush1.msra.mxu0 %v783
        %938 = vmatprep.subr.mxu0 0.0
        %939 = vmatpush1.msra.mxu0 %v784
        %940 = vmatprep.subr.mxu0 0.0
        %941 = vmatpush1.msra.mxu0 %v785
        %942 = vmatprep.subr.mxu0 0.0
        %943 = vmatpush1.msra.mxu0 %v786
        %944 = vmatprep.subr.mxu0 0.0
        %945 = vmatpush1.msra.mxu0 %v787
        %946 = vmatprep.subr.mxu0 0.0
        %947 = vmatpush1.msra.mxu0 %v788
        %948 = vmatprep.subr.mxu0 0.0
        %949 = vmatpush1.msra.mxu0 %v789
        %950 = vmatprep.subr.mxu0 0.0
        %951 = vmatpush1.msra.mxu0 %v790
        %952 = vmatprep.subr.mxu0 0.0
        %953 = vmatpush1.msra.mxu0 %v791
        %954 = vmatprep.subr.mxu0 0.0
        %955 = vmatpush1.msra.mxu0 %v792
        %956 = vmatprep.subr.mxu0 0.0
        %957 = vmatpush1.msra.mxu0 %v793
        %958 = vmatprep.subr.mxu0 0.0
        %959 = vmatpush1.msra.mxu0 %v794
        %960 = vmatprep.subr.mxu0 0.0
        %961 = vmatpush1.msra.mxu0 %v795
        %962 = vmatprep.subr.mxu0 0.0
        %963 = vmatpush1.msra.mxu0 %v796
        %964 = vmatprep.mubr.f32.mxu0 %v750
        %965 = vmatmul.mubr.f32.gmra.mrb[0].mxu0 %v749
        %v966 = vpop.f32.mrb[0].mxu0
        %v967 = vadd.f32 %v898, %v966
        %v968 = vpop.f32.mrb[0].mxu0
        %969 = vmatprep.mubr.f32.mxu0 %v758
        %970 = vmatmul.mubr.f32.gmra.mrb[0].mxu0 %v757
        %v971 = vpop.f32.mrb[0].mxu0
        %v972 = vadd.f32 %v898, %v971
        %v973 = vpop.f32.mrb[0].mxu0
        %974 = vdwg.mxu0
        %975 = vmatprep.subr.mxu0 0.0
        %976 = vmatpush1.msra.mxu0 %v797
        %977 = vmatprep.subr.mxu0 0.0
        %978 = vmatpush1.msra.mxu0 %v798
        %979 = vmatprep.subr.mxu0 0.0
        %980 = vmatpush1.msra.mxu0 %v799
        %981 = vmatprep.subr.mxu0 0.0
        %982 = vmatpush1.msra.mxu0 %v800
        %983 = vmatprep.subr.mxu0 0.0
        %984 = vmatpush1.msra.mxu0 %v801
        %985 = vmatprep.subr.mxu0 0.0
        %986 = vmatpush1.msra.mxu0 %v802
        %987 = vmatprep.subr.mxu0 0.0
        %988 = vmatpush1.msra.mxu0 %v803
        %989 = vmatprep.subr.mxu0 0.0
        %990 = vmatpush1.msra.mxu0 %v804
        %991 = vmatprep.subr.mxu0 0.0
        %992 = vmatpush1.msra.mxu0 %v805
        %993 = vmatprep.subr.mxu0 0.0
        %994 = vmatpush1.msra.mxu0 %v806
        %995 = vmatprep.subr.mxu0 0.0
        %996 = vmatpush1.msra.mxu0 %v807
        %997 = vmatprep.subr.mxu0 0.0
        %998 = vmatpush1.msra.mxu0 %v808
        %999 = vmatprep.subr.mxu0 0.0
        %1000 = vmatpush1.msra.mxu0 %v809
        %1001 = vmatprep.subr.mxu0 0.0
        %1002 = vmatpush1.msra.mxu0 %v810
        %1003 = vmatprep.subr.mxu0 0.0
        %1004 = vmatpush1.msra.mxu0 %v811
        %1005 = vmatprep.subr.mxu0 0.0
        %1006 = vmatpush1.msra.mxu0 %v812
        %1007 = vmatprep.subr.mxu0 0.0
        %1008 = vmatpush1.msra.mxu0 %v813
        %1009 = vmatprep.subr.mxu0 0.0
        %1010 = vmatpush1.msra.mxu0 %v814
        %1011 = vmatprep.subr.mxu0 0.0
        %1012 = vmatpush1.msra.mxu0 %v815
        %1013 = vmatprep.subr.mxu0 0.0
        %1014 = vmatpush1.msra.mxu0 %v816
        %1015 = vmatprep.subr.mxu0 0.0
        %1016 = vmatpush1.msra.mxu0 %v817
        %1017 = vmatprep.subr.mxu0 0.0
        %1018 = vmatpush1.msra.mxu0 %v818
        %1019 = vmatprep.subr.mxu0 0.0
        %1020 = vmatpush1.msra.mxu0 %v819
        %1021 = vmatprep.subr.mxu0 0.0
        %1022 = vmatpush1.msra.mxu0 %v820
        %1023 = vmatprep.subr.mxu0 0.0
        %1024 = vmatpush1.msra.mxu0 %v821
        %1025 = vmatprep.subr.mxu0 0.0
        %1026 = vmatpush1.msra.mxu0 %v822
        %1027 = vmatprep.subr.mxu0 0.0
        %1028 = vmatpush1.msra.mxu0 %v823
        %1029 = vmatprep.subr.mxu0 0.0
        %1030 = vmatpush1.msra.mxu0 %v824
        %1031 = vmatprep.subr.mxu0 0.0
        %1032 = vmatpush1.msra.mxu0 %v825
        %1033 = vmatprep.subr.mxu0 0.0
        %1034 = vmatpush1.msra.mxu0 %v826
        %1035 = vmatprep.subr.mxu0 0.0
        %1036 = vmatpush1.msra.mxu0 %v827
        %1037 = vmatprep.subr.mxu0 0.0
        %1038 = vmatpush1.msra.mxu0 %v828
        %1039 = vmatprep.mubr.f32.mxu0 %v752
        %1040 = vmatmul.mubr.f32.gmra.mrb[0].mxu0 %v751
        %v1041 = vpop.f32.mrb[0].mxu0
        %v1042 = vadd.f32 %v967, %v1041
        %v1043 = vpop.f32.mrb[0].mxu0
        %1044 = vmatprep.mubr.f32.mxu0 %v760
        %1045 = vmatmul.mubr.f32.gmra.mrb[0].mxu0 %v759
        %v1046 = vpop.f32.mrb[0].mxu0
        %v1047 = vadd.f32 %v972, %v1046
        %v1048 = vpop.f32.mrb[0].mxu0
        %1049 = vdwg.mxu0
        %1050 = vmatprep.subr.mxu0 0.0
        %1051 = vmatpush1.msra.mxu0 %v829
        %1052 = vmatprep.subr.mxu0 0.0
        %1053 = vmatpush1.msra.mxu0 %v830
        %1054 = vmatprep.subr.mxu0 0.0
        %1055 = vmatpush1.msra.mxu0 %v831
        %1056 = vmatprep.subr.mxu0 0.0
        %1057 = vmatpush1.msra.mxu0 %v832
        %1058 = vmatprep.subr.mxu0 0.0
        %1059 = vmatpush1.msra.mxu0 %v833
        %1060 = vmatprep.subr.mxu0 0.0
        %1061 = vmatpush1.msra.mxu0 %v834
        %1062 = vmatprep.subr.mxu0 0.0
        %1063 = vmatpush1.msra.mxu0 %v835
        %1064 = vmatprep.subr.mxu0 0.0
        %1065 = vmatpush1.msra.mxu0 %v836
        %1066 = vmatprep.subr.mxu0 0.0
        %1067 = vmatpush1.msra.mxu0 %v837
        %1068 = vmatprep.subr.mxu0 0.0
        %1069 = vmatpush1.msra.mxu0 %v838
        %1070 = vmatprep.subr.mxu0 0.0
        %1071 = vmatpush1.msra.mxu0 %v839
        %1072 = vmatprep.subr.mxu0 0.0
        %1073 = vmatpush1.msra.mxu0 %v840
        %1074 = vmatprep.subr.mxu0 0.0
        %1075 = vmatpush1.msra.mxu0 %v841
        %1076 = vmatprep.subr.mxu0 0.0
        %1077 = vmatpush1.msra.mxu0 %v842
        %1078 = vmatprep.subr.mxu0 0.0
        %1079 = vmatpush1.msra.mxu0 %v843
        %1080 = vmatprep.subr.mxu0 0.0
        %1081 = vmatpush1.msra.mxu0 %v844
        %1082 = vmatprep.subr.mxu0 0.0
        %1083 = vmatpush1.msra.mxu0 %v845
        %1084 = vmatprep.subr.mxu0 0.0
        %1085 = vmatpush1.msra.mxu0 %v846
        %1086 = vmatprep.subr.mxu0 0.0
        %1087 = vmatpush1.msra.mxu0 %v847
        %1088 = vmatprep.subr.mxu0 0.0
        %1089 = vmatpush1.msra.mxu0 %v848
        %1090 = vmatprep.subr.mxu0 0.0
        %1091 = vmatpush1.msra.mxu0 %v849
        %1092 = vmatprep.subr.mxu0 0.0
        %1093 = vmatpush1.msra.mxu0 %v850
        %1094 = vmatprep.subr.mxu0 0.0
        %1095 = vmatpush1.msra.mxu0 %v851
        %1096 = vmatprep.subr.mxu0 0.0
        %1097 = vmatpush1.msra.mxu0 %v852
        %1098 = vmatprep.subr.mxu0 0.0
        %1099 = vmatpush1.msra.mxu0 %v853
        %1100 = vmatprep.subr.mxu0 0.0
        %1101 = vmatpush1.msra.mxu0 %v854
        %1102 = vmatprep.subr.mxu0 0.0
        %1103 = vmatpush1.msra.mxu0 %v855
        %1104 = vmatprep.subr.mxu0 0.0
        %1105 = vmatpush1.msra.mxu0 %v856
        %1106 = vmatprep.subr.mxu0 0.0
        %1107 = vmatpush1.msra.mxu0 %v857
        %1108 = vmatprep.subr.mxu0 0.0
        %1109 = vmatpush1.msra.mxu0 %v858
        %1110 = vmatprep.subr.mxu0 0.0
        %1111 = vmatpush1.msra.mxu0 %v859
        %1112 = vmatprep.subr.mxu0 0.0
        %1113 = vmatpush1.msra.mxu0 %v860
        %1114 = vmatprep.mubr.f32.mxu0 %v754
        %1115 = vmatmul.mubr.f32.gmra.mrb[0].mxu0 %v753
        %v1116 = vpop.f32.mrb[0].mxu0
        %v1117 = vadd.f32 %v1042, %v1116
        %v1118 = vpop.f32.mrb[0].mxu0
        %1119 = vmatprep.mubr.f32.mxu0 %v762
        %1120 = vmatmul.mubr.f32.gmra.mrb[0].mxu0 %v761
        %v1121 = vpop.f32.mrb[0].mxu0
        %v1122 = vadd.f32 %v1047, %v1121
        %v1123 = vpop.f32.mrb[0].mxu0
        %1124 = vdwg.mxu0
        %1125 = vmatprep.subr.mxu0 0.0
        %1126 = vmatpush1.msra.mxu0 %v861
        %1127 = vmatprep.subr.mxu0 0.0
        %1128 = vmatpush1.msra.mxu0 %v862
        %1129 = vmatprep.subr.mxu0 0.0
        %1130 = vmatpush1.msra.mxu0 %v863
        %1131 = vmatprep.subr.mxu0 0.0
        %1132 = vmatpush1.msra.mxu0 %v864
        %1133 = vmatprep.subr.mxu0 0.0
        %1134 = vmatpush1.msra.mxu0 %v865
        %1135 = vmatprep.subr.mxu0 0.0
        %1136 = vmatpush1.msra.mxu0 %v866
        %1137 = vmatprep.subr.mxu0 0.0
        %1138 = vmatpush1.msra.mxu0 %v867
        %1139 = vmatprep.subr.mxu0 0.0
        %1140 = vmatpush1.msra.mxu0 %v868
        %1141 = vmatprep.subr.mxu0 0.0
        %1142 = vmatpush1.msra.mxu0 %v869
        %1143 = vmatprep.subr.mxu0 0.0
        %1144 = vmatpush1.msra.mxu0 %v870
        %1145 = vmatprep.subr.mxu0 0.0
        %1146 = vmatpush1.msra.mxu0 %v871
        %1147 = vmatprep.subr.mxu0 0.0
        %1148 = vmatpush1.msra.mxu0 %v872
        %1149 = vmatprep.subr.mxu0 0.0
        %1150 = vmatpush1.msra.mxu0 %v873
        %1151 = vmatprep.subr.mxu0 0.0
        %1152 = vmatpush1.msra.mxu0 %v874
        %1153 = vmatprep.subr.mxu0 0.0
        %1154 = vmatpush1.msra.mxu0 %v875
        %1155 = vmatprep.subr.mxu0 0.0
        %1156 = vmatpush1.msra.mxu0 %v876
        %1157 = vmatprep.subr.mxu0 0.0
        %1158 = vmatpush1.msra.mxu0 %v877
        %1159 = vmatprep.subr.mxu0 0.0
        %1160 = vmatpush1.msra.mxu0 %v878
        %1161 = vmatprep.subr.mxu0 0.0
        %1162 = vmatpush1.msra.mxu0 %v879
        %1163 = vmatprep.subr.mxu0 0.0
        %1164 = vmatpush1.msra.mxu0 %v880
        %1165 = vmatprep.subr.mxu0 0.0
        %1166 = vmatpush1.msra.mxu0 %v881
        %1167 = vmatprep.subr.mxu0 0.0
        %1168 = vmatpush1.msra.mxu0 %v882
        %1169 = vmatprep.subr.mxu0 0.0
        %1170 = vmatpush1.msra.mxu0 %v883
        %1171 = vmatprep.subr.mxu0 0.0
        %1172 = vmatpush1.msra.mxu0 %v884
        %1173 = vmatprep.subr.mxu0 0.0
        %1174 = vmatpush1.msra.mxu0 %v885
        %1175 = vmatprep.subr.mxu0 0.0
        %1176 = vmatpush1.msra.mxu0 %v886
        %1177 = vmatprep.subr.mxu0 0.0
        %1178 = vmatpush1.msra.mxu0 %v887
        %1179 = vmatprep.subr.mxu0 0.0
        %1180 = vmatpush1.msra.mxu0 %v888
        %1181 = vmatprep.subr.mxu0 0.0
        %1182 = vmatpush1.msra.mxu0 %v889
        %1183 = vmatprep.subr.mxu0 0.0
        %1184 = vmatpush1.msra.mxu0 %v890
        %1185 = vmatprep.subr.mxu0 0.0
        %1186 = vmatpush1.msra.mxu0 %v891
        %1187 = vmatprep.subr.mxu0 0.0
        %1188 = vmatpush1.msra.mxu0 %v892
        %1189 = vmatprep.mubr.f32.mxu0 %v756
        %1190 = vmatmul.mubr.f32.gmra.mrb[0].mxu0 %v755
        %v1191 = vpop.f32.mrb[0].mxu0
        %v1192 = vadd.f32 %v1117, %v1191
        %v1193 = vpop.f32.mrb[0].mxu0
        %1194 = vmatprep.mubr.f32.mxu0 %v764
        %1195 = vmatmul.mubr.f32.gmra.mrb[0].mxu0 %v763
        %v1196 = vpop.f32.mrb[0].mxu0
        %v1197 = vadd.f32 %v1122, %v1196
        %v1198 = vpop.f32.mrb[0].mxu0
        %1199 = vdwg.mxu0
        %v1200 = vld [vmem:[#allocation9] sm:$0xff]
        %v1201 = vld [vmem:[#allocation9 + $0x8] sm:$0xff]
        %v1202 = vadd.f32 %v1192, %v1200
        %v1203 = vadd.f32 %v1197, %v1201
        %v1204 = vld [vmem:[#allocation11] sm:$0xff]
        %v1205 = vld [vmem:[#allocation11 + $0x8] sm:$0xff]
        %v1206 = vld [vmem:[#allocation11 + $0x10] sm:$0xff]
        %v1207 = vld [vmem:[#allocation11 + $0x18] sm:$0xff]
        %v1208 = vld [vmem:[#allocation11 + $0x20] sm:$0xff]
        %v1209 = vld [vmem:[#allocation11 + $0x28] sm:$0xff]
        %v1210 = vld [vmem:[#allocation11 + $0x30] sm:$0xff]
        %v1211 = vld [vmem:[#allocation11 + $0x38] sm:$0xff]
        %v1212 = vld [vmem:[#allocation11 + $0x40] sm:$0xff]
        %v1213 = vld [vmem:[#allocation11 + $0x48] sm:$0xff]
        %v1214 = vld [vmem:[#allocation11 + $0x50] sm:$0xff]
        %v1215 = vld [vmem:[#allocation11 + $0x58] sm:$0xff]
        %v1216 = vld [vmem:[#allocation11 + $0x60] sm:$0xff]
        %v1217 = vld [vmem:[#allocation11 + $0x68] sm:$0xff]
        %v1218 = vld [vmem:[#allocation11 + $0x70] sm:$0xff]
        %v1219 = vld [vmem:[#allocation11 + $0x78] sm:$0xff]
        %v1220 = vld [vmem:[#allocation11 + $0x80] sm:$0xff]
        %v1221 = vld [vmem:[#allocation11 + $0x88] sm:$0xff]
        %v1222 = vld [vmem:[#allocation11 + $0x90] sm:$0xff]
        %v1223 = vld [vmem:[#allocation11 + $0x98] sm:$0xff]
        %v1224 = vld [vmem:[#allocation11 + $0xa0] sm:$0xff]
        %v1225 = vld [vmem:[#allocation11 + $0xa8] sm:$0xff]
        %v1226 = vld [vmem:[#allocation11 + $0xb0] sm:$0xff]
        %v1227 = vld [vmem:[#allocation11 + $0xb8] sm:$0xff]
        %v1228 = vld [vmem:[#allocation11 + $0xc0] sm:$0xff]
        %v1229 = vld [vmem:[#allocation11 + $0xc8] sm:$0xff]
        %v1230 = vld [vmem:[#allocation11 + $0xd0] sm:$0xff]
        %v1231 = vld [vmem:[#allocation11 + $0xd8] sm:$0xff]
        %v1232 = vld [vmem:[#allocation11 + $0xe0] sm:$0xff]
        %v1233 = vld [vmem:[#allocation11 + $0xe8] sm:$0xff]
        %v1234 = vld [vmem:[#allocation11 + $0xf0] sm:$0xff]
        %v1235 = vld [vmem:[#allocation11 + $0xf8] sm:$0xff]
        %v1236 = vld [vmem:[#allocation11 + $0x100] sm:$0xff]
        %v1237 = vld [vmem:[#allocation11 + $0x108] sm:$0xff]
        %v1238 = vld [vmem:[#allocation11 + $0x110] sm:$0xff]
        %v1239 = vld [vmem:[#allocation11 + $0x118] sm:$0xff]
        %v1240 = vld [vmem:[#allocation11 + $0x120] sm:$0xff]
        %v1241 = vld [vmem:[#allocation11 + $0x128] sm:$0xff]
        %v1242 = vld [vmem:[#allocation11 + $0x130] sm:$0xff]
        %v1243 = vld [vmem:[#allocation11 + $0x138] sm:$0xff]
        %v1244 = vld [vmem:[#allocation11 + $0x140] sm:$0xff]
        %v1245 = vld [vmem:[#allocation11 + $0x148] sm:$0xff]
        %v1246 = vld [vmem:[#allocation11 + $0x150] sm:$0xff]
        %v1247 = vld [vmem:[#allocation11 + $0x158] sm:$0xff]
        %v1248 = vld [vmem:[#allocation11 + $0x160] sm:$0xff]
        %v1249 = vld [vmem:[#allocation11 + $0x168] sm:$0xff]
        %v1250 = vld [vmem:[#allocation11 + $0x170] sm:$0xff]
        %v1251 = vld [vmem:[#allocation11 + $0x178] sm:$0xff]
        %v1252 = vld [vmem:[%s5] sm:$0x7]
        %v1254 = vlaneseq
        %v1255 = vshrl.u32 %v1254, 7
        %v1256 = vsub.s32 0, %v1255
        %v1257 = vrot.slane %v1252, %v1256
        %v1258 = vlaneseq
        %v1259 = vshrl.u32 %v1258, 7
        %v1260 = vsub.s32 1, %v1259
        %v1261 = vrot.slane %v1252, %v1260
        %v1262 = vlaneseq
        %v1263 = vshrl.u32 %v1262, 7
        %v1264 = vsub.s32 2, %v1263
        %v1265 = vrot.slane %v1252, %v1264
        %1269 = vmatprep.subr.mxu0 %v1205
        %1270 = vmatpush1.msra.mxu0 %v1204
        %1271 = vmatprep.subr.mxu0 %v1208
        %1272 = vmatpush1.msra.mxu0 %v1207
        %1273 = vmatprep.subr.mxu0 %v1211
        %1274 = vmatpush1.msra.mxu0 %v1210
        %1275 = vmatprep.subr.mxu0 %v1214
        %1276 = vmatpush1.msra.mxu0 %v1213
        %1277 = vmatprep.subr.mxu0 %v1217
        %1278 = vmatpush1.msra.mxu0 %v1216
        %1279 = vmatprep.subr.mxu0 %v1220
        %1280 = vmatpush1.msra.mxu0 %v1219
        %1281 = vmatprep.subr.mxu0 %v1223
        %1282 = vmatpush1.msra.mxu0 %v1222
        %1283 = vmatprep.subr.mxu0 %v1226
        %1284 = vmatpush1.msra.mxu0 %v1225
        %1285 = vmatprep.subr.mxu0 %v1229
        %1286 = vmatpush1.msra.mxu0 %v1228
        %1287 = vmatprep.subr.mxu0 %v1232
        %1288 = vmatpush1.msra.mxu0 %v1231
        %1289 = vmatprep.subr.mxu0 %v1235
        %1290 = vmatpush1.msra.mxu0 %v1234
        %1291 = vmatprep.subr.mxu0 %v1238
        %1292 = vmatpush1.msra.mxu0 %v1237
        %1293 = vmatprep.subr.mxu0 %v1241
        %1294 = vmatpush1.msra.mxu0 %v1240
        %1295 = vmatprep.subr.mxu0 %v1244
        %1296 = vmatpush1.msra.mxu0 %v1243
        %1297 = vmatprep.subr.mxu0 %v1247
        %1298 = vmatpush1.msra.mxu0 %v1246
        %1299 = vmatprep.subr.mxu0 %v1250
        %1300 = vmatpush1.msra.mxu0 %v1249
        %1301 = vmatprep.subr.mxu0 0.0
        %1302 = vmatpush1.msra.mxu0 0.0
        %1303 = vmatprep.subr.mxu0 0.0
        %1304 = vmatpush1.msra.mxu0 0.0
        %1305 = vmatprep.subr.mxu0 0.0
        %1306 = vmatpush1.msra.mxu0 0.0
        %1307 = vmatprep.subr.mxu0 0.0
        %1308 = vmatpush1.msra.mxu0 0.0
        %1309 = vmatprep.subr.mxu0 0.0
        %1310 = vmatpush1.msra.mxu0 0.0
        %1311 = vmatprep.subr.mxu0 0.0
        %1312 = vmatpush1.msra.mxu0 0.0
        %1313 = vmatprep.subr.mxu0 0.0
        %1314 = vmatpush1.msra.mxu0 0.0
        %1315 = vmatprep.subr.mxu0 0.0
        %1316 = vmatpush1.msra.mxu0 0.0
        %1317 = vmatprep.subr.mxu0 0.0
        %1318 = vmatpush1.msra.mxu0 0.0
        %1319 = vmatprep.subr.mxu0 0.0
        %1320 = vmatpush1.msra.mxu0 0.0
        %1321 = vmatprep.subr.mxu0 0.0
        %1322 = vmatpush1.msra.mxu0 0.0
        %1323 = vmatprep.subr.mxu0 0.0
        %1324 = vmatpush1.msra.mxu0 0.0
        %1325 = vmatprep.subr.mxu0 0.0
        %1326 = vmatpush1.msra.mxu0 0.0
        %1327 = vmatprep.subr.mxu0 0.0
        %1328 = vmatpush1.msra.mxu0 0.0
        %1329 = vmatprep.subr.mxu0 0.0
        %1330 = vmatpush1.msra.mxu0 0.0
        %1331 = vmatprep.subr.mxu0 0.0
        %1332 = vmatpush1.msra.mxu0 0.0
        %1333 = vmatprep.mubr.f32.mxu0 0.0
        %1334 = vmatmul.mubr.f32.gmra.mrb[0].mxu0 %v1202
        %v1335 = vpop.f32.mrb[0].mxu0
        %v1336 = vadd.f32 %v1257, %v1335
        %v1337 = vpop.f32.mrb[0].mxu0
        %v1338 = vadd.f32 %v1261, %v1337
        %1339 = vmatprep.mubr.f32.mxu0 0.0
        %1340 = vmatmul.mubr.f32.gmra.mrb[0].mxu0 %v1203
        %v1341 = vpop.f32.mrb[0].mxu0
        %v1342 = vadd.f32 %v1257, %v1341
        %v1343 = vpop.f32.mrb[0].mxu0
        %v1344 = vadd.f32 %v1261, %v1343
        %1345 = vdwg.mxu0
        %1346 = vmatprep.subr.mxu0 0.0
        %1347 = vmatpush1.msra.mxu0 %v1206
        %1348 = vmatprep.subr.mxu0 0.0
        %1349 = vmatpush1.msra.mxu0 %v1209
        %1350 = vmatprep.subr.mxu0 0.0
        %1351 = vmatpush1.msra.mxu0 %v1212
        %1352 = vmatprep.subr.mxu0 0.0
        %1353 = vmatpush1.msra.mxu0 %v1215
        %1354 = vmatprep.subr.mxu0 0.0
        %1355 = vmatpush1.msra.mxu0 %v1218
        %1356 = vmatprep.subr.mxu0 0.0
        %1357 = vmatpush1.msra.mxu0 %v1221
        %1358 = vmatprep.subr.mxu0 0.0
        %1359 = vmatpush1.msra.mxu0 %v1224
        %1360 = vmatprep.subr.mxu0 0.0
        %1361 = vmatpush1.msra.mxu0 %v1227
        %1362 = vmatprep.subr.mxu0 0.0
        %1363 = vmatpush1.msra.mxu0 %v1230
        %1364 = vmatprep.subr.mxu0 0.0
        %1365 = vmatpush1.msra.mxu0 %v1233
        %1366 = vmatprep.subr.mxu0 0.0
        %1367 = vmatpush1.msra.mxu0 %v1236
        %1368 = vmatprep.subr.mxu0 0.0
        %1369 = vmatpush1.msra.mxu0 %v1239
        %1370 = vmatprep.subr.mxu0 0.0
        %1371 = vmatpush1.msra.mxu0 %v1242
        %1372 = vmatprep.subr.mxu0 0.0
        %1373 = vmatpush1.msra.mxu0 %v1245
        %1374 = vmatprep.subr.mxu0 0.0
        %1375 = vmatpush1.msra.mxu0 %v1248
        %1376 = vmatprep.subr.mxu0 0.0
        %1377 = vmatpush1.msra.mxu0 %v1251
        %1378 = vmatprep.subr.mxu0 0.0
        %1379 = vmatpush1.msra.mxu0 0.0
        %1380 = vmatprep.subr.mxu0 0.0
        %1381 = vmatpush1.msra.mxu0 0.0
        %1382 = vmatprep.subr.mxu0 0.0
        %1383 = vmatpush1.msra.mxu0 0.0
        %1384 = vmatprep.subr.mxu0 0.0
        %1385 = vmatpush1.msra.mxu0 0.0
        %1386 = vmatprep.subr.mxu0 0.0
        %1387 = vmatpush1.msra.mxu0 0.0
        %1388 = vmatprep.subr.mxu0 0.0
        %1389 = vmatpush1.msra.mxu0 0.0
        %1390 = vmatprep.subr.mxu0 0.0
        %1391 = vmatpush1.msra.mxu0 0.0
        %1392 = vmatprep.subr.mxu0 0.0
        %1393 = vmatpush1.msra.mxu0 0.0
        %1394 = vmatprep.subr.mxu0 0.0
        %1395 = vmatpush1.msra.mxu0 0.0
        %1396 = vmatprep.subr.mxu0 0.0
        %1397 = vmatpush1.msra.mxu0 0.0
        %1398 = vmatprep.subr.mxu0 0.0
        %1399 = vmatpush1.msra.mxu0 0.0
        %1400 = vmatprep.subr.mxu0 0.0
        %1401 = vmatpush1.msra.mxu0 0.0
        %1402 = vmatprep.subr.mxu0 0.0
        %1403 = vmatpush1.msra.mxu0 0.0
        %1404 = vmatprep.subr.mxu0 0.0
        %1405 = vmatpush1.msra.mxu0 0.0
        %1406 = vmatprep.subr.mxu0 0.0
        %1407 = vmatpush1.msra.mxu0 0.0
        %1408 = vmatprep.subr.mxu0 0.0
        %1409 = vmatpush1.msra.mxu0 0.0
        %1410 = vmatprep.mubr.f32.mxu0 0.0
        %1411 = vmatmul.mubr.f32.gmra.mrb[0].mxu0 %v1202
        %v1412 = vpop.f32.mrb[0].mxu0
        %v1413 = vadd.f32 %v1265, %v1412
        %v1414 = vpop.f32.mrb[0].mxu0
        %1415 = vmatprep.mubr.f32.mxu0 0.0
        %1416 = vmatmul.mubr.f32.gmra.mrb[0].mxu0 %v1203
        %v1417 = vpop.f32.mrb[0].mxu0
        %v1418 = vadd.f32 %v1265, %v1417
        %v1419 = vpop.f32.mrb[0].mxu0
        %1420 = vdwg.mxu0
        %v1421 = vmul.f32 %v1336, 0.25
        %v1422 = vmul.f32 %v1342, 0.25
        %1425 = vrot.lane.b32.xlu0 %v1421, 112
        %v1426 = vpop.permute.xlu0 %1425
        %1427 = vrot.lane.b32.xlu0 %v1422, 112
        %v1428 = vpop.permute.xlu0 %1427
        %1429 = vrot.lane.b32.xlu0 %v1421, 96
        %v1430 = vpop.permute.xlu0 %1429
        %1431 = vrot.lane.b32.xlu0 %v1422, 96
        %v1432 = vpop.permute.xlu0 %1431
        %1433 = vrot.lane.b32.xlu0 %v1421, 80
        %v1434 = vpop.permute.xlu0 %1433
        %1435 = vrot.lane.b32.xlu0 %v1422, 80
        %v1436 = vpop.permute.xlu0 %1435
        %1437 = vrot.lane.b32.xlu0 %v1421, 64
        %v1438 = vpop.permute.xlu0 %1437
        %1439 = vrot.lane.b32.xlu0 %v1422, 64
        %v1440 = vpop.permute.xlu0 %1439
        %1441 = vrot.lane.b32.xlu0 %v1421, 48
        %v1442 = vpop.permute.xlu0 %1441
        %1443 = vrot.lane.b32.xlu0 %v1422, 48
        %v1444 = vpop.permute.xlu0 %1443
        %1445 = vrot.lane.b32.xlu0 %v1421, 32
        %v1446 = vpop.permute.xlu0 %1445
        %1447 = vrot.lane.b32.xlu0 %v1422, 32
        %v1448 = vpop.permute.xlu0 %1447
        %1449 = vrot.lane.b32.xlu0 %v1421, 16
        %v1450 = vpop.permute.xlu0 %1449
        %1451 = vrot.lane.b32.xlu0 %v1422, 16
        %v1452 = vpop.permute.xlu0 %1451
        %1455 = vrot.lane.b32.xlu0 %v1338, 112
        %v1456 = vpop.permute.xlu0 %1455
        %1457 = vrot.lane.b32.xlu0 %v1344, 112
        %v1458 = vpop.permute.xlu0 %1457
        %1459 = vrot.lane.b32.xlu0 %v1338, 96
        %v1460 = vpop.permute.xlu0 %1459
        %1461 = vrot.lane.b32.xlu0 %v1344, 96
        %v1462 = vpop.permute.xlu0 %1461
        %1463 = vrot.lane.b32.xlu0 %v1338, 80
        %v1464 = vpop.permute.xlu0 %1463
        %1465 = vrot.lane.b32.xlu0 %v1344, 80
        %v1466 = vpop.permute.xlu0 %1465
        %1467 = vrot.lane.b32.xlu0 %v1338, 64
        %v1468 = vpop.permute.xlu0 %1467
        %1469 = vrot.lane.b32.xlu0 %v1344, 64
        %v1470 = vpop.permute.xlu0 %1469
        %1471 = vrot.lane.b32.xlu0 %v1338, 48
        %v1472 = vpop.permute.xlu0 %1471
        %1473 = vrot.lane.b32.xlu0 %v1344, 48
        %v1474 = vpop.permute.xlu0 %1473
        %1475 = vrot.lane.b32.xlu0 %v1338, 32
        %v1476 = vpop.permute.xlu0 %1475
        %1477 = vrot.lane.b32.xlu0 %v1344, 32
        %v1478 = vpop.permute.xlu0 %1477
        %1479 = vrot.lane.b32.xlu0 %v1338, 16
        %v1480 = vpop.permute.xlu0 %1479
        %1481 = vrot.lane.b32.xlu0 %v1344, 16
        %v1482 = vpop.permute.xlu0 %1481
        %1485 = vrot.lane.b32.xlu0 %v1413, 112
        %v1486 = vpop.permute.xlu0 %1485
        %1487 = vrot.lane.b32.xlu0 %v1418, 112
        %v1488 = vpop.permute.xlu0 %1487
        %1491 = vrot.lane.b32.xlu0 %v1413, 96
        %v1492 = vpop.permute.xlu0 %1491
        %1493 = vrot.lane.b32.xlu0 %v1418, 96
        %v1494 = vpop.permute.xlu0 %1493
        %1497 = vrot.lane.b32.xlu0 %v1413, 80
        %v1498 = vpop.permute.xlu0 %1497
        %1499 = vrot.lane.b32.xlu0 %v1418, 80
        %v1500 = vpop.permute.xlu0 %1499
        %1503 = vrot.lane.b32.xlu0 %v1413, 64
        %v1504 = vpop.permute.xlu0 %1503
        %1505 = vrot.lane.b32.xlu0 %v1418, 64
        %v1506 = vpop.permute.xlu0 %1505
        %1509 = vrot.lane.b32.xlu0 %v1413, 48
        %v1510 = vpop.permute.xlu0 %1509
        %1511 = vrot.lane.b32.xlu0 %v1418, 48
        %v1512 = vpop.permute.xlu0 %1511
        %1515 = vrot.lane.b32.xlu0 %v1413, 32
        %v1516 = vpop.permute.xlu0 %1515
        %1517 = vrot.lane.b32.xlu0 %v1418, 32
        %v1518 = vpop.permute.xlu0 %1517
        %1521 = vrot.lane.b32.xlu0 %v1413, 16
        %v1522 = vpop.permute.xlu0 %1521
        %1523 = vrot.lane.b32.xlu0 %v1418, 16
        %v1524 = vpop.permute.xlu0 %1523
        %vm1527 = vcmask 130048
        %v1528 = vsel %vm1527, %v1421, 0
        %v1530 = vsel %vm1527, %v1422, 0
        %v1532 = vsel %vm1527, %v1338, 0
        %v1534 = vsel %vm1527, %v1344, 0
        %1536 = vmatprep.subr.mxu0 0.0
        %1537 = vmatpush1.xpose.msra.mxu0 %v1532
        %1538 = vmatprep.subr.mxu0 0.0
        %1539 = vmatpush1.xpose.msra.mxu0 %v1534
        %1540 = vmatprep.subr.mxu0 0.0
        %1541 = vmatpush1.xpose.msra.mxu0 0.0
        %1542 = vmatprep.subr.mxu0 0.0
        %1543 = vmatpush1.xpose.msra.mxu0 0.0
        %1544 = vmatprep.subr.mxu0 0.0
        %1545 = vmatpush1.xpose.msra.mxu0 0.0
        %1546 = vmatprep.subr.mxu0 0.0
        %1547 = vmatpush1.xpose.msra.mxu0 0.0
        %1548 = vmatprep.subr.mxu0 0.0
        %1549 = vmatpush1.xpose.msra.mxu0 0.0
        %1550 = vmatprep.subr.mxu0 0.0
        %1551 = vmatpush1.xpose.msra.mxu0 0.0
        %1552 = vmatprep.subr.mxu0 0.0
        %1553 = vmatpush1.xpose.msra.mxu0 0.0
        %1554 = vmatprep.subr.mxu0 0.0
        %1555 = vmatpush1.xpose.msra.mxu0 0.0
        %1556 = vmatprep.subr.mxu0 0.0
        %1557 = vmatpush1.xpose.msra.mxu0 0.0
        %1558 = vmatprep.subr.mxu0 0.0
        %1559 = vmatpush1.xpose.msra.mxu0 0.0
        %1560 = vmatprep.subr.mxu0 0.0
        %1561 = vmatpush1.xpose.msra.mxu0 0.0
        %1562 = vmatprep.subr.mxu0 0.0
        %1563 = vmatpush1.xpose.msra.mxu0 0.0
        %1564 = vmatprep.subr.mxu0 0.0
        %1565 = vmatpush1.xpose.msra.mxu0 0.0
        %1566 = vmatprep.subr.mxu0 0.0
        %1567 = vmatpush1.xpose.msra.mxu0 0.0
        %1568 = vmatprep.subr.mxu0 0.0
        %1569 = vmatpush1.xpose.msra.mxu0 0.0
        %1570 = vmatprep.subr.mxu0 0.0
        %1571 = vmatpush1.xpose.msra.mxu0 0.0
        %1572 = vmatprep.subr.mxu0 0.0
        %1573 = vmatpush1.xpose.msra.mxu0 0.0
        %1574 = vmatprep.subr.mxu0 0.0
        %1575 = vmatpush1.xpose.msra.mxu0 0.0
        %1576 = vmatprep.subr.mxu0 0.0
        %1577 = vmatpush1.xpose.msra.mxu0 0.0
        %1578 = vmatprep.subr.mxu0 0.0
        %1579 = vmatpush1.xpose.msra.mxu0 0.0
        %1580 = vmatprep.subr.mxu0 0.0
        %1581 = vmatpush1.xpose.msra.mxu0 0.0
        %1582 = vmatprep.subr.mxu0 0.0
        %1583 = vmatpush1.xpose.msra.mxu0 0.0
        %1584 = vmatprep.subr.mxu0 0.0
        %1585 = vmatpush1.xpose.msra.mxu0 0.0
        %1586 = vmatprep.subr.mxu0 0.0
        %1587 = vmatpush1.xpose.msra.mxu0 0.0
        %1588 = vmatprep.subr.mxu0 0.0
        %1589 = vmatpush1.xpose.msra.mxu0 0.0
        %1590 = vmatprep.subr.mxu0 0.0
        %1591 = vmatpush1.xpose.msra.mxu0 0.0
        %1592 = vmatprep.subr.mxu0 0.0
        %1593 = vmatpush1.xpose.msra.mxu0 0.0
        %1594 = vmatprep.subr.mxu0 0.0
        %1595 = vmatpush1.xpose.msra.mxu0 0.0
        %1596 = vmatprep.subr.mxu0 0.0
        %1597 = vmatpush1.xpose.msra.mxu0 0.0
        %1598 = vmatprep.subr.mxu0 0.0
        %1599 = vmatpush1.xpose.msra.mxu0 0.0
        %1600 = vmatprep.mubr.f32.mxu0 0.0
        %1601 = vmatmul.mubr.f32.gmra.mrb[0].mxu0 %v1528
        %v1602 = vpop.f32.mrb[0].mxu0
        %v1603 = vadd.f32 0.0, %v1602
        %v1604 = vpop.f32.mrb[0].mxu0
        %1605 = vmatprep.mubr.f32.mxu0 0.0
        %1606 = vmatmul.mubr.f32.gmra.mrb[0].mxu0 %v1530
        %v1607 = vpop.f32.mrb[0].mxu0
        %v1608 = vadd.f32 0.0, %v1607
        %v1609 = vpop.f32.mrb[0].mxu0
        %1610 = vdwg.mxu0
        %v1611 = vsel %vm1527, %v1426, 0
        %v1613 = vsel %vm1527, %v1428, 0
        %v1615 = vsel %vm1527, %v1456, 0
        %v1617 = vsel %vm1527, %v1458, 0
        %1619 = vmatprep.subr.mxu0 0.0
        %1620 = vmatpush1.xpose.msra.mxu0 %v1615
        %1621 = vmatprep.subr.mxu0 0.0
        %1622 = vmatpush1.xpose.msra.mxu0 %v1617
        %1623 = vmatprep.subr.mxu0 0.0
        %1624 = vmatpush1.xpose.msra.mxu0 0.0
        %1625 = vmatprep.subr.mxu0 0.0
        %1626 = vmatpush1.xpose.msra.mxu0 0.0
        %1627 = vmatprep.subr.mxu0 0.0
        %1628 = vmatpush1.xpose.msra.mxu0 0.0
        %1629 = vmatprep.subr.mxu0 0.0
        %1630 = vmatpush1.xpose.msra.mxu0 0.0
        %1631 = vmatprep.subr.mxu0 0.0
        %1632 = vmatpush1.xpose.msra.mxu0 0.0
        %1633 = vmatprep.subr.mxu0 0.0
        %1634 = vmatpush1.xpose.msra.mxu0 0.0
        %1635 = vmatprep.subr.mxu0 0.0
        %1636 = vmatpush1.xpose.msra.mxu0 0.0
        %1637 = vmatprep.subr.mxu0 0.0
        %1638 = vmatpush1.xpose.msra.mxu0 0.0
        %1639 = vmatprep.subr.mxu0 0.0
        %1640 = vmatpush1.xpose.msra.mxu0 0.0
        %1641 = vmatprep.subr.mxu0 0.0
        %1642 = vmatpush1.xpose.msra.mxu0 0.0
        %1643 = vmatprep.subr.mxu0 0.0
        %1644 = vmatpush1.xpose.msra.mxu0 0.0
        %1645 = vmatprep.subr.mxu0 0.0
        %1646 = vmatpush1.xpose.msra.mxu0 0.0
        %1647 = vmatprep.subr.mxu0 0.0
        %1648 = vmatpush1.xpose.msra.mxu0 0.0
        %1649 = vmatprep.subr.mxu0 0.0
        %1650 = vmatpush1.xpose.msra.mxu0 0.0
        %1651 = vmatprep.subr.mxu0 0.0
        %1652 = vmatpush1.xpose.msra.mxu0 0.0
        %1653 = vmatprep.subr.mxu0 0.0
        %1654 = vmatpush1.xpose.msra.mxu0 0.0
        %1655 = vmatprep.subr.mxu0 0.0
        %1656 = vmatpush1.xpose.msra.mxu0 0.0
        %1657 = vmatprep.subr.mxu0 0.0
        %1658 = vmatpush1.xpose.msra.mxu0 0.0
        %1659 = vmatprep.subr.mxu0 0.0
        %1660 = vmatpush1.xpose.msra.mxu0 0.0
        %1661 = vmatprep.subr.mxu0 0.0
        %1662 = vmatpush1.xpose.msra.mxu0 0.0
        %1663 = vmatprep.subr.mxu0 0.0
        %1664 = vmatpush1.xpose.msra.mxu0 0.0
        %1665 = vmatprep.subr.mxu0 0.0
        %1666 = vmatpush1.xpose.msra.mxu0 0.0
        %1667 = vmatprep.subr.mxu0 0.0
        %1668 = vmatpush1.xpose.msra.mxu0 0.0
        %1669 = vmatprep.subr.mxu0 0.0
        %1670 = vmatpush1.xpose.msra.mxu0 0.0
        %1671 = vmatprep.subr.mxu0 0.0
        %1672 = vmatpush1.xpose.msra.mxu0 0.0
        %1673 = vmatprep.subr.mxu0 0.0
        %1674 = vmatpush1.xpose.msra.mxu0 0.0
        %1675 = vmatprep.subr.mxu0 0.0
        %1676 = vmatpush1.xpose.msra.mxu0 0.0
        %1677 = vmatprep.subr.mxu0 0.0
        %1678 = vmatpush1.xpose.msra.mxu0 0.0
        %1679 = vmatprep.subr.mxu0 0.0
        %1680 = vmatpush1.xpose.msra.mxu0 0.0
        %1681 = vmatprep.subr.mxu0 0.0
        %1682 = vmatpush1.xpose.msra.mxu0 0.0
        %1683 = vmatprep.mubr.f32.mxu0 0.0
        %1684 = vmatmul.mubr.f32.gmra.mrb[0].mxu0 %v1611
        %v1685 = vpop.f32.mrb[0].mxu0
        %v1686 = vadd.f32 0.0, %v1685
        %v1687 = vpop.f32.mrb[0].mxu0
        %1688 = vmatprep.mubr.f32.mxu0 0.0
        %1689 = vmatmul.mubr.f32.gmra.mrb[0].mxu0 %v1613
        %v1690 = vpop.f32.mrb[0].mxu0
        %v1691 = vadd.f32 0.0, %v1690
        %v1692 = vpop.f32.mrb[0].mxu0
        %1693 = vdwg.mxu0
        %v1694 = vsel %vm1527, %v1430, 0
        %v1696 = vsel %vm1527, %v1432, 0
        %v1698 = vsel %vm1527, %v1460, 0
        %v1700 = vsel %vm1527, %v1462, 0
        %1702 = vmatprep.subr.mxu0 0.0
        %1703 = vmatpush1.xpose.msra.mxu0 %v1698
        %1704 = vmatprep.subr.mxu0 0.0
        %1705 = vmatpush1.xpose.msra.mxu0 %v1700
        %1706 = vmatprep.subr.mxu0 0.0
        %1707 = vmatpush1.xpose.msra.mxu0 0.0
        %1708 = vmatprep.subr.mxu0 0.0
        %1709 = vmatpush1.xpose.msra.mxu0 0.0
        %1710 = vmatprep.subr.mxu0 0.0
        %1711 = vmatpush1.xpose.msra.mxu0 0.0
        %1712 = vmatprep.subr.mxu0 0.0
        %1713 = vmatpush1.xpose.msra.mxu0 0.0
        %1714 = vmatprep.subr.mxu0 0.0
        %1715 = vmatpush1.xpose.msra.mxu0 0.0
        %1716 = vmatprep.subr.mxu0 0.0
        %1717 = vmatpush1.xpose.msra.mxu0 0.0
        %1718 = vmatprep.subr.mxu0 0.0
        %1719 = vmatpush1.xpose.msra.mxu0 0.0
        %1720 = vmatprep.subr.mxu0 0.0
        %1721 = vmatpush1.xpose.msra.mxu0 0.0
        %1722 = vmatprep.subr.mxu0 0.0
        %1723 = vmatpush1.xpose.msra.mxu0 0.0
        %1724 = vmatprep.subr.mxu0 0.0
        %1725 = vmatpush1.xpose.msra.mxu0 0.0
        %1726 = vmatprep.subr.mxu0 0.0
        %1727 = vmatpush1.xpose.msra.mxu0 0.0
        %1728 = vmatprep.subr.mxu0 0.0
        %1729 = vmatpush1.xpose.msra.mxu0 0.0
        %1730 = vmatprep.subr.mxu0 0.0
        %1731 = vmatpush1.xpose.msra.mxu0 0.0
        %1732 = vmatprep.subr.mxu0 0.0
        %1733 = vmatpush1.xpose.msra.mxu0 0.0
        %1734 = vmatprep.subr.mxu0 0.0
        %1735 = vmatpush1.xpose.msra.mxu0 0.0
        %1736 = vmatprep.subr.mxu0 0.0
        %1737 = vmatpush1.xpose.msra.mxu0 0.0
        %1738 = vmatprep.subr.mxu0 0.0
        %1739 = vmatpush1.xpose.msra.mxu0 0.0
        %1740 = vmatprep.subr.mxu0 0.0
        %1741 = vmatpush1.xpose.msra.mxu0 0.0
        %1742 = vmatprep.subr.mxu0 0.0
        %1743 = vmatpush1.xpose.msra.mxu0 0.0
        %1744 = vmatprep.subr.mxu0 0.0
        %1745 = vmatpush1.xpose.msra.mxu0 0.0
        %1746 = vmatprep.subr.mxu0 0.0
        %1747 = vmatpush1.xpose.msra.mxu0 0.0
        %1748 = vmatprep.subr.mxu0 0.0
        %1749 = vmatpush1.xpose.msra.mxu0 0.0
        %1750 = vmatprep.subr.mxu0 0.0
        %1751 = vmatpush1.xpose.msra.mxu0 0.0
        %1752 = vmatprep.subr.mxu0 0.0
        %1753 = vmatpush1.xpose.msra.mxu0 0.0
        %1754 = vmatprep.subr.mxu0 0.0
        %1755 = vmatpush1.xpose.msra.mxu0 0.0
        %1756 = vmatprep.subr.mxu0 0.0
        %1757 = vmatpush1.xpose.msra.mxu0 0.0
        %1758 = vmatprep.subr.mxu0 0.0
        %1759 = vmatpush1.xpose.msra.mxu0 0.0
        %1760 = vmatprep.subr.mxu0 0.0
        %1761 = vmatpush1.xpose.msra.mxu0 0.0
        %1762 = vmatprep.subr.mxu0 0.0
        %1763 = vmatpush1.xpose.msra.mxu0 0.0
        %1764 = vmatprep.subr.mxu0 0.0
        %1765 = vmatpush1.xpose.msra.mxu0 0.0
        %1766 = vmatprep.mubr.f32.mxu0 0.0
        %1767 = vmatmul.mubr.f32.gmra.mrb[0].mxu0 %v1694
        %v1768 = vpop.f32.mrb[0].mxu0
        %v1769 = vadd.f32 0.0, %v1768
        %v1770 = vpop.f32.mrb[0].mxu0
        %1771 = vmatprep.mubr.f32.mxu0 0.0
        %1772 = vmatmul.mubr.f32.gmra.mrb[0].mxu0 %v1696
        %v1773 = vpop.f32.mrb[0].mxu0
        %v1774 = vadd.f32 0.0, %v1773
        %v1775 = vpop.f32.mrb[0].mxu0
        %1776 = vdwg.mxu0
        %v1777 = vsel %vm1527, %v1434, 0
        %v1779 = vsel %vm1527, %v1436, 0
        %v1781 = vsel %vm1527, %v1464, 0
        %v1783 = vsel %vm1527, %v1466, 0
        %1785 = vmatprep.subr.mxu0 0.0
        %1786 = vmatpush1.xpose.msra.mxu0 %v1781
        %1787 = vmatprep.subr.mxu0 0.0
        %1788 = vmatpush1.xpose.msra.mxu0 %v1783
        %1789 = vmatprep.subr.mxu0 0.0
        %1790 = vmatpush1.xpose.msra.mxu0 0.0
        %1791 = vmatprep.subr.mxu0 0.0
        %1792 = vmatpush1.xpose.msra.mxu0 0.0
        %1793 = vmatprep.subr.mxu0 0.0
        %1794 = vmatpush1.xpose.msra.mxu0 0.0
        %1795 = vmatprep.subr.mxu0 0.0
        %1796 = vmatpush1.xpose.msra.mxu0 0.0
        %1797 = vmatprep.subr.mxu0 0.0
        %1798 = vmatpush1.xpose.msra.mxu0 0.0
        %1799 = vmatprep.subr.mxu0 0.0
        %1800 = vmatpush1.xpose.msra.mxu0 0.0
        %1801 = vmatprep.subr.mxu0 0.0
        %1802 = vmatpush1.xpose.msra.mxu0 0.0
        %1803 = vmatprep.subr.mxu0 0.0
        %1804 = vmatpush1.xpose.msra.mxu0 0.0
        %1805 = vmatprep.subr.mxu0 0.0
        %1806 = vmatpush1.xpose.msra.mxu0 0.0
        %1807 = vmatprep.subr.mxu0 0.0
        %1808 = vmatpush1.xpose.msra.mxu0 0.0
        %1809 = vmatprep.subr.mxu0 0.0
        %1810 = vmatpush1.xpose.msra.mxu0 0.0
        %1811 = vmatprep.subr.mxu0 0.0
        %1812 = vmatpush1.xpose.msra.mxu0 0.0
        %1813 = vmatprep.subr.mxu0 0.0
        %1814 = vmatpush1.xpose.msra.mxu0 0.0
        %1815 = vmatprep.subr.mxu0 0.0
        %1816 = vmatpush1.xpose.msra.mxu0 0.0
        %1817 = vmatprep.subr.mxu0 0.0
        %1818 = vmatpush1.xpose.msra.mxu0 0.0
        %1819 = vmatprep.subr.mxu0 0.0
        %1820 = vmatpush1.xpose.msra.mxu0 0.0
        %1821 = vmatprep.subr.mxu0 0.0
        %1822 = vmatpush1.xpose.msra.mxu0 0.0
        %1823 = vmatprep.subr.mxu0 0.0
        %1824 = vmatpush1.xpose.msra.mxu0 0.0
        %1825 = vmatprep.subr.mxu0 0.0
        %1826 = vmatpush1.xpose.msra.mxu0 0.0
        %1827 = vmatprep.subr.mxu0 0.0
        %1828 = vmatpush1.xpose.msra.mxu0 0.0
        %1829 = vmatprep.subr.mxu0 0.0
        %1830 = vmatpush1.xpose.msra.mxu0 0.0
        %1831 = vmatprep.subr.mxu0 0.0
        %1832 = vmatpush1.xpose.msra.mxu0 0.0
        %1833 = vmatprep.subr.mxu0 0.0
        %1834 = vmatpush1.xpose.msra.mxu0 0.0
        %1835 = vmatprep.subr.mxu0 0.0
        %1836 = vmatpush1.xpose.msra.mxu0 0.0
        %1837 = vmatprep.subr.mxu0 0.0
        %1838 = vmatpush1.xpose.msra.mxu0 0.0
        %1839 = vmatprep.subr.mxu0 0.0
        %1840 = vmatpush1.xpose.msra.mxu0 0.0
        %1841 = vmatprep.subr.mxu0 0.0
        %1842 = vmatpush1.xpose.msra.mxu0 0.0
        %1843 = vmatprep.subr.mxu0 0.0
        %1844 = vmatpush1.xpose.msra.mxu0 0.0
        %1845 = vmatprep.subr.mxu0 0.0
        %1846 = vmatpush1.xpose.msra.mxu0 0.0
        %1847 = vmatprep.subr.mxu0 0.0
        %1848 = vmatpush1.xpose.msra.mxu0 0.0
        %1849 = vmatprep.mubr.f32.mxu0 0.0
        %1850 = vmatmul.mubr.f32.gmra.mrb[0].mxu0 %v1777
        %v1851 = vpop.f32.mrb[0].mxu0
        %v1852 = vadd.f32 0.0, %v1851
        %v1853 = vpop.f32.mrb[0].mxu0
        %1854 = vmatprep.mubr.f32.mxu0 0.0
        %1855 = vmatmul.mubr.f32.gmra.mrb[0].mxu0 %v1779
        %v1856 = vpop.f32.mrb[0].mxu0
        %v1857 = vadd.f32 0.0, %v1856
        %v1858 = vpop.f32.mrb[0].mxu0
        %1859 = vdwg.mxu0
        %v1860 = vsel %vm1527, %v1438, 0
        %v1862 = vsel %vm1527, %v1440, 0
        %v1864 = vsel %vm1527, %v1468, 0
        %v1866 = vsel %vm1527, %v1470, 0
        %1868 = vmatprep.subr.mxu0 0.0
        %1869 = vmatpush1.xpose.msra.mxu0 %v1864
        %1870 = vmatprep.subr.mxu0 0.0
        %1871 = vmatpush1.xpose.msra.mxu0 %v1866
        %1872 = vmatprep.subr.mxu0 0.0
        %1873 = vmatpush1.xpose.msra.mxu0 0.0
        %1874 = vmatprep.subr.mxu0 0.0
        %1875 = vmatpush1.xpose.msra.mxu0 0.0
        %1876 = vmatprep.subr.mxu0 0.0
        %1877 = vmatpush1.xpose.msra.mxu0 0.0
        %1878 = vmatprep.subr.mxu0 0.0
        %1879 = vmatpush1.xpose.msra.mxu0 0.0
        %1880 = vmatprep.subr.mxu0 0.0
        %1881 = vmatpush1.xpose.msra.mxu0 0.0
        %1882 = vmatprep.subr.mxu0 0.0
        %1883 = vmatpush1.xpose.msra.mxu0 0.0
        %1884 = vmatprep.subr.mxu0 0.0
        %1885 = vmatpush1.xpose.msra.mxu0 0.0
        %1886 = vmatprep.subr.mxu0 0.0
        %1887 = vmatpush1.xpose.msra.mxu0 0.0
        %1888 = vmatprep.subr.mxu0 0.0
        %1889 = vmatpush1.xpose.msra.mxu0 0.0
        %1890 = vmatprep.subr.mxu0 0.0
        %1891 = vmatpush1.xpose.msra.mxu0 0.0
        %1892 = vmatprep.subr.mxu0 0.0
        %1893 = vmatpush1.xpose.msra.mxu0 0.0
        %1894 = vmatprep.subr.mxu0 0.0
        %1895 = vmatpush1.xpose.msra.mxu0 0.0
        %1896 = vmatprep.subr.mxu0 0.0
        %1897 = vmatpush1.xpose.msra.mxu0 0.0
        %1898 = vmatprep.subr.mxu0 0.0
        %1899 = vmatpush1.xpose.msra.mxu0 0.0
        %1900 = vmatprep.subr.mxu0 0.0
        %1901 = vmatpush1.xpose.msra.mxu0 0.0
        %1902 = vmatprep.subr.mxu0 0.0
        %1903 = vmatpush1.xpose.msra.mxu0 0.0
        %1904 = vmatprep.subr.mxu0 0.0
        %1905 = vmatpush1.xpose.msra.mxu0 0.0
        %1906 = vmatprep.subr.mxu0 0.0
        %1907 = vmatpush1.xpose.msra.mxu0 0.0
        %1908 = vmatprep.subr.mxu0 0.0
        %1909 = vmatpush1.xpose.msra.mxu0 0.0
        %1910 = vmatprep.subr.mxu0 0.0
        %1911 = vmatpush1.xpose.msra.mxu0 0.0
        %1912 = vmatprep.subr.mxu0 0.0
        %1913 = vmatpush1.xpose.msra.mxu0 0.0
        %1914 = vmatprep.subr.mxu0 0.0
        %1915 = vmatpush1.xpose.msra.mxu0 0.0
        %1916 = vmatprep.subr.mxu0 0.0
        %1917 = vmatpush1.xpose.msra.mxu0 0.0
        %1918 = vmatprep.subr.mxu0 0.0
        %1919 = vmatpush1.xpose.msra.mxu0 0.0
        %1920 = vmatprep.subr.mxu0 0.0
        %1921 = vmatpush1.xpose.msra.mxu0 0.0
        %1922 = vmatprep.subr.mxu0 0.0
        %1923 = vmatpush1.xpose.msra.mxu0 0.0
        %1924 = vmatprep.subr.mxu0 0.0
        %1925 = vmatpush1.xpose.msra.mxu0 0.0
        %1926 = vmatprep.subr.mxu0 0.0
        %1927 = vmatpush1.xpose.msra.mxu0 0.0
        %1928 = vmatprep.subr.mxu0 0.0
        %1929 = vmatpush1.xpose.msra.mxu0 0.0
        %1930 = vmatprep.subr.mxu0 0.0
        %1931 = vmatpush1.xpose.msra.mxu0 0.0
        %1932 = vmatprep.mubr.f32.mxu0 0.0
        %1933 = vmatmul.mubr.f32.gmra.mrb[0].mxu0 %v1860
        %v1934 = vpop.f32.mrb[0].mxu0
        %v1935 = vadd.f32 0.0, %v1934
        %v1936 = vpop.f32.mrb[0].mxu0
        %1937 = vmatprep.mubr.f32.mxu0 0.0
        %1938 = vmatmul.mubr.f32.gmra.mrb[0].mxu0 %v1862
        %v1939 = vpop.f32.mrb[0].mxu0
        %v1940 = vadd.f32 0.0, %v1939
        %v1941 = vpop.f32.mrb[0].mxu0
        %1942 = vdwg.mxu0
        %v1943 = vsel %vm1527, %v1442, 0
        %v1945 = vsel %vm1527, %v1444, 0
        %v1947 = vsel %vm1527, %v1472, 0
        %v1949 = vsel %vm1527, %v1474, 0
        %1951 = vmatprep.subr.mxu0 0.0
        %1952 = vmatpush1.xpose.msra.mxu0 %v1947
        %1953 = vmatprep.subr.mxu0 0.0
        %1954 = vmatpush1.xpose.msra.mxu0 %v1949
        %1955 = vmatprep.subr.mxu0 0.0
        %1956 = vmatpush1.xpose.msra.mxu0 0.0
        %1957 = vmatprep.subr.mxu0 0.0
        %1958 = vmatpush1.xpose.msra.mxu0 0.0
        %1959 = vmatprep.subr.mxu0 0.0
        %1960 = vmatpush1.xpose.msra.mxu0 0.0
        %1961 = vmatprep.subr.mxu0 0.0
        %1962 = vmatpush1.xpose.msra.mxu0 0.0
        %1963 = vmatprep.subr.mxu0 0.0
        %1964 = vmatpush1.xpose.msra.mxu0 0.0
        %1965 = vmatprep.subr.mxu0 0.0
        %1966 = vmatpush1.xpose.msra.mxu0 0.0
        %1967 = vmatprep.subr.mxu0 0.0
        %1968 = vmatpush1.xpose.msra.mxu0 0.0
        %1969 = vmatprep.subr.mxu0 0.0
        %1970 = vmatpush1.xpose.msra.mxu0 0.0
        %1971 = vmatprep.subr.mxu0 0.0
        %1972 = vmatpush1.xpose.msra.mxu0 0.0
        %1973 = vmatprep.subr.mxu0 0.0
        %1974 = vmatpush1.xpose.msra.mxu0 0.0
        %1975 = vmatprep.subr.mxu0 0.0
        %1976 = vmatpush1.xpose.msra.mxu0 0.0
        %1977 = vmatprep.subr.mxu0 0.0
        %1978 = vmatpush1.xpose.msra.mxu0 0.0
        %1979 = vmatprep.subr.mxu0 0.0
        %1980 = vmatpush1.xpose.msra.mxu0 0.0
        %1981 = vmatprep.subr.mxu0 0.0
        %1982 = vmatpush1.xpose.msra.mxu0 0.0
        %1983 = vmatprep.subr.mxu0 0.0
        %1984 = vmatpush1.xpose.msra.mxu0 0.0
        %1985 = vmatprep.subr.mxu0 0.0
        %1986 = vmatpush1.xpose.msra.mxu0 0.0
        %1987 = vmatprep.subr.mxu0 0.0
        %1988 = vmatpush1.xpose.msra.mxu0 0.0
        %1989 = vmatprep.subr.mxu0 0.0
        %1990 = vmatpush1.xpose.msra.mxu0 0.0
        %1991 = vmatprep.subr.mxu0 0.0
        %1992 = vmatpush1.xpose.msra.mxu0 0.0
        %1993 = vmatprep.subr.mxu0 0.0
        %1994 = vmatpush1.xpose.msra.mxu0 0.0
        %1995 = vmatprep.subr.mxu0 0.0
        %1996 = vmatpush1.xpose.msra.mxu0 0.0
        %1997 = vmatprep.subr.mxu0 0.0
        %1998 = vmatpush1.xpose.msra.mxu0 0.0
        %1999 = vmatprep.subr.mxu0 0.0
        %2000 = vmatpush1.xpose.msra.mxu0 0.0
        %2001 = vmatprep.subr.mxu0 0.0
        %2002 = vmatpush1.xpose.msra.mxu0 0.0
        %2003 = vmatprep.subr.mxu0 0.0
        %2004 = vmatpush1.xpose.msra.mxu0 0.0
        %2005 = vmatprep.subr.mxu0 0.0
        %2006 = vmatpush1.xpose.msra.mxu0 0.0
        %2007 = vmatprep.subr.mxu0 0.0
        %2008 = vmatpush1.xpose.msra.mxu0 0.0
        %2009 = vmatprep.subr.mxu0 0.0
        %2010 = vmatpush1.xpose.msra.mxu0 0.0
        %2011 = vmatprep.subr.mxu0 0.0
        %2012 = vmatpush1.xpose.msra.mxu0 0.0
        %2013 = vmatprep.subr.mxu0 0.0
        %2014 = vmatpush1.xpose.msra.mxu0 0.0
        %2015 = vmatprep.mubr.f32.mxu0 0.0
        %2016 = vmatmul.mubr.f32.gmra.mrb[0].mxu0 %v1943
        %v2017 = vpop.f32.mrb[0].mxu0
        %v2018 = vadd.f32 0.0, %v2017
        %v2019 = vpop.f32.mrb[0].mxu0
        %2020 = vmatprep.mubr.f32.mxu0 0.0
        %2021 = vmatmul.mubr.f32.gmra.mrb[0].mxu0 %v1945
        %v2022 = vpop.f32.mrb[0].mxu0
        %v2023 = vadd.f32 0.0, %v2022
        %v2024 = vpop.f32.mrb[0].mxu0
        %2025 = vdwg.mxu0
        %v2026 = vsel %vm1527, %v1446, 0
        %v2028 = vsel %vm1527, %v1448, 0
        %v2030 = vsel %vm1527, %v1476, 0
        %v2032 = vsel %vm1527, %v1478, 0
        %2034 = vmatprep.subr.mxu0 0.0
        %2035 = vmatpush1.xpose.msra.mxu0 %v2030
        %2036 = vmatprep.subr.mxu0 0.0
        %2037 = vmatpush1.xpose.msra.mxu0 %v2032
        %2038 = vmatprep.subr.mxu0 0.0
        %2039 = vmatpush1.xpose.msra.mxu0 0.0
        %2040 = vmatprep.subr.mxu0 0.0
        %2041 = vmatpush1.xpose.msra.mxu0 0.0
        %2042 = vmatprep.subr.mxu0 0.0
        %2043 = vmatpush1.xpose.msra.mxu0 0.0
        %2044 = vmatprep.subr.mxu0 0.0
        %2045 = vmatpush1.xpose.msra.mxu0 0.0
        %2046 = vmatprep.subr.mxu0 0.0
        %2047 = vmatpush1.xpose.msra.mxu0 0.0
        %2048 = vmatprep.subr.mxu0 0.0
        %2049 = vmatpush1.xpose.msra.mxu0 0.0
        %2050 = vmatprep.subr.mxu0 0.0
        %2051 = vmatpush1.xpose.msra.mxu0 0.0
        %2052 = vmatprep.subr.mxu0 0.0
        %2053 = vmatpush1.xpose.msra.mxu0 0.0
        %2054 = vmatprep.subr.mxu0 0.0
        %2055 = vmatpush1.xpose.msra.mxu0 0.0
        %2056 = vmatprep.subr.mxu0 0.0
        %2057 = vmatpush1.xpose.msra.mxu0 0.0
        %2058 = vmatprep.subr.mxu0 0.0
        %2059 = vmatpush1.xpose.msra.mxu0 0.0
        %2060 = vmatprep.subr.mxu0 0.0
        %2061 = vmatpush1.xpose.msra.mxu0 0.0
        %2062 = vmatprep.subr.mxu0 0.0
        %2063 = vmatpush1.xpose.msra.mxu0 0.0
        %2064 = vmatprep.subr.mxu0 0.0
        %2065 = vmatpush1.xpose.msra.mxu0 0.0
        %2066 = vmatprep.subr.mxu0 0.0
        %2067 = vmatpush1.xpose.msra.mxu0 0.0
        %2068 = vmatprep.subr.mxu0 0.0
        %2069 = vmatpush1.xpose.msra.mxu0 0.0
        %2070 = vmatprep.subr.mxu0 0.0
        %2071 = vmatpush1.xpose.msra.mxu0 0.0
        %2072 = vmatprep.subr.mxu0 0.0
        %2073 = vmatpush1.xpose.msra.mxu0 0.0
        %2074 = vmatprep.subr.mxu0 0.0
        %2075 = vmatpush1.xpose.msra.mxu0 0.0
        %2076 = vmatprep.subr.mxu0 0.0
        %2077 = vmatpush1.xpose.msra.mxu0 0.0
        %2078 = vmatprep.subr.mxu0 0.0
        %2079 = vmatpush1.xpose.msra.mxu0 0.0
        %2080 = vmatprep.subr.mxu0 0.0
        %2081 = vmatpush1.xpose.msra.mxu0 0.0
        %2082 = vmatprep.subr.mxu0 0.0
        %2083 = vmatpush1.xpose.msra.mxu0 0.0
        %2084 = vmatprep.subr.mxu0 0.0
        %2085 = vmatpush1.xpose.msra.mxu0 0.0
        %2086 = vmatprep.subr.mxu0 0.0
        %2087 = vmatpush1.xpose.msra.mxu0 0.0
        %2088 = vmatprep.subr.mxu0 0.0
        %2089 = vmatpush1.xpose.msra.mxu0 0.0
        %2090 = vmatprep.subr.mxu0 0.0
        %2091 = vmatpush1.xpose.msra.mxu0 0.0
        %2092 = vmatprep.subr.mxu0 0.0
        %2093 = vmatpush1.xpose.msra.mxu0 0.0
        %2094 = vmatprep.subr.mxu0 0.0
        %2095 = vmatpush1.xpose.msra.mxu0 0.0
        %2096 = vmatprep.subr.mxu0 0.0
        %2097 = vmatpush1.xpose.msra.mxu0 0.0
        %2098 = vmatprep.mubr.f32.mxu0 0.0
        %2099 = vmatmul.mubr.f32.gmra.mrb[0].mxu0 %v2026
        %v2100 = vpop.f32.mrb[0].mxu0
        %v2101 = vadd.f32 0.0, %v2100
        %v2102 = vpop.f32.mrb[0].mxu0
        %2103 = vmatprep.mubr.f32.mxu0 0.0
        %2104 = vmatmul.mubr.f32.gmra.mrb[0].mxu0 %v2028
        %v2105 = vpop.f32.mrb[0].mxu0
        %v2106 = vadd.f32 0.0, %v2105
        %v2107 = vpop.f32.mrb[0].mxu0
        %2108 = vdwg.mxu0
        %v2109 = vsel %vm1527, %v1450, 0
        %v2111 = vsel %vm1527, %v1452, 0
        %v2113 = vsel %vm1527, %v1480, 0
        %v2115 = vsel %vm1527, %v1482, 0
        %2117 = vmatprep.subr.mxu0 0.0
        %2118 = vmatpush1.xpose.msra.mxu0 %v2113
        %2119 = vmatprep.subr.mxu0 0.0
        %2120 = vmatpush1.xpose.msra.mxu0 %v2115
        %2121 = vmatprep.subr.mxu0 0.0
        %2122 = vmatpush1.xpose.msra.mxu0 0.0
        %2123 = vmatprep.subr.mxu0 0.0
        %2124 = vmatpush1.xpose.msra.mxu0 0.0
        %2125 = vmatprep.subr.mxu0 0.0
        %2126 = vmatpush1.xpose.msra.mxu0 0.0
        %2127 = vmatprep.subr.mxu0 0.0
        %2128 = vmatpush1.xpose.msra.mxu0 0.0
        %2129 = vmatprep.subr.mxu0 0.0
        %2130 = vmatpush1.xpose.msra.mxu0 0.0
        %2131 = vmatprep.subr.mxu0 0.0
        %2132 = vmatpush1.xpose.msra.mxu0 0.0
        %2133 = vmatprep.subr.mxu0 0.0
        %2134 = vmatpush1.xpose.msra.mxu0 0.0
        %2135 = vmatprep.subr.mxu0 0.0
        %2136 = vmatpush1.xpose.msra.mxu0 0.0
        %2137 = vmatprep.subr.mxu0 0.0
        %2138 = vmatpush1.xpose.msra.mxu0 0.0
        %2139 = vmatprep.subr.mxu0 0.0
        %2140 = vmatpush1.xpose.msra.mxu0 0.0
        %2141 = vmatprep.subr.mxu0 0.0
        %2142 = vmatpush1.xpose.msra.mxu0 0.0
        %2143 = vmatprep.subr.mxu0 0.0
        %2144 = vmatpush1.xpose.msra.mxu0 0.0
        %2145 = vmatprep.subr.mxu0 0.0
        %2146 = vmatpush1.xpose.msra.mxu0 0.0
        %2147 = vmatprep.subr.mxu0 0.0
        %2148 = vmatpush1.xpose.msra.mxu0 0.0
        %2149 = vmatprep.subr.mxu0 0.0
        %2150 = vmatpush1.xpose.msra.mxu0 0.0
        %2151 = vmatprep.subr.mxu0 0.0
        %2152 = vmatpush1.xpose.msra.mxu0 0.0
        %2153 = vmatprep.subr.mxu0 0.0
        %2154 = vmatpush1.xpose.msra.mxu0 0.0
        %2155 = vmatprep.subr.mxu0 0.0
        %2156 = vmatpush1.xpose.msra.mxu0 0.0
        %2157 = vmatprep.subr.mxu0 0.0
        %2158 = vmatpush1.xpose.msra.mxu0 0.0
        %2159 = vmatprep.subr.mxu0 0.0
        %2160 = vmatpush1.xpose.msra.mxu0 0.0
        %2161 = vmatprep.subr.mxu0 0.0
        %2162 = vmatpush1.xpose.msra.mxu0 0.0
        %2163 = vmatprep.subr.mxu0 0.0
        %2164 = vmatpush1.xpose.msra.mxu0 0.0
        %2165 = vmatprep.subr.mxu0 0.0
        %2166 = vmatpush1.xpose.msra.mxu0 0.0
        %2167 = vmatprep.subr.mxu0 0.0
        %2168 = vmatpush1.xpose.msra.mxu0 0.0
        %2169 = vmatprep.subr.mxu0 0.0
        %2170 = vmatpush1.xpose.msra.mxu0 0.0
        %2171 = vmatprep.subr.mxu0 0.0
        %2172 = vmatpush1.xpose.msra.mxu0 0.0
        %2173 = vmatprep.subr.mxu0 0.0
        %2174 = vmatpush1.xpose.msra.mxu0 0.0
        %2175 = vmatprep.subr.mxu0 0.0
        %2176 = vmatpush1.xpose.msra.mxu0 0.0
        %2177 = vmatprep.subr.mxu0 0.0
        %2178 = vmatpush1.xpose.msra.mxu0 0.0
        %2179 = vmatprep.subr.mxu0 0.0
        %2180 = vmatpush1.xpose.msra.mxu0 0.0
        %2181 = vmatprep.mubr.f32.mxu0 0.0
        %2182 = vmatmul.mubr.f32.gmra.mrb[0].mxu0 %v2109
        %v2183 = vpop.f32.mrb[0].mxu0
        %v2184 = vadd.f32 0.0, %v2183
        %v2185 = vpop.f32.mrb[0].mxu0
        %2186 = vmatprep.mubr.f32.mxu0 0.0
        %2187 = vmatmul.mubr.f32.gmra.mrb[0].mxu0 %v2111
        %v2188 = vpop.f32.mrb[0].mxu0
        %v2189 = vadd.f32 0.0, %v2188
        %v2190 = vpop.f32.mrb[0].mxu0
        %2191 = vdwg.mxu0
        %v2192 = vlaneseq
        %v2193 = vand.u32 %v2192, 127
        %vm2194 = vcmp.lt.s32.totalorder %v2193, 15
        %v2195 = vsel %vm2194, %v1603, -1e+30
        %v2196 = vsel %vm2194, %v1608, -1e+30
        %v2197 = vsel %vm2194, %v1686, -1e+30
        %v2198 = vsel %vm2194, %v1691, -1e+30
        %v2199 = vsel %vm2194, %v1769, -1e+30
        %v2200 = vsel %vm2194, %v1774, -1e+30
        %v2201 = vsel %vm2194, %v1852, -1e+30
        %v2202 = vsel %vm2194, %v1857, -1e+30
        %v2203 = vsel %vm2194, %v1935, -1e+30
        %v2204 = vsel %vm2194, %v1940, -1e+30
        %v2205 = vsel %vm2194, %v2018, -1e+30
        %v2206 = vsel %vm2194, %v2023, -1e+30
        %v2207 = vsel %vm2194, %v2101, -1e+30
        %v2208 = vsel %vm2194, %v2106, -1e+30
        %v2209 = vsel %vm2194, %v2184, -1e+30
        %v2210 = vsel %vm2194, %v2189, -1e+30
        %v2211 = vsel %vm1527, %v2195, -inf
        %2212 = vmax.xlane.f32.xlu0 %v2211
        %v2213 = vpop.xlane.xlu0 %2212
        %v2214 = vsel %vm1527, %v2196, -inf
        %2215 = vmax.xlane.f32.xlu0 %v2214
        %v2216 = vpop.xlane.xlu0 %2215
        %v2217 = vsel %vm1527, %v2197, -inf
        %2218 = vmax.xlane.f32.xlu0 %v2217
        %v2219 = vpop.xlane.xlu0 %2218
        %v2220 = vsel %vm1527, %v2198, -inf
        %2221 = vmax.xlane.f32.xlu0 %v2220
        %v2222 = vpop.xlane.xlu0 %2221
        %v2223 = vsel %vm1527, %v2199, -inf
        %2224 = vmax.xlane.f32.xlu0 %v2223
        %v2225 = vpop.xlane.xlu0 %2224
        %v2226 = vsel %vm1527, %v2200, -inf
        %2227 = vmax.xlane.f32.xlu0 %v2226
        %v2228 = vpop.xlane.xlu0 %2227
        %v2229 = vsel %vm1527, %v2201, -inf
        %2230 = vmax.xlane.f32.xlu0 %v2229
        %v2231 = vpop.xlane.xlu0 %2230
        %v2232 = vsel %vm1527, %v2202, -inf
        %2233 = vmax.xlane.f32.xlu0 %v2232
        %v2234 = vpop.xlane.xlu0 %2233
        %v2235 = vsel %vm1527, %v2203, -inf
        %2236 = vmax.xlane.f32.xlu0 %v2235
        %v2237 = vpop.xlane.xlu0 %2236
        %v2238 = vsel %vm1527, %v2204, -inf
        %2239 = vmax.xlane.f32.xlu0 %v2238
        %v2240 = vpop.xlane.xlu0 %2239
        %v2241 = vsel %vm1527, %v2205, -inf
        %2242 = vmax.xlane.f32.xlu0 %v2241
        %v2243 = vpop.xlane.xlu0 %2242
        %v2244 = vsel %vm1527, %v2206, -inf
        %2245 = vmax.xlane.f32.xlu0 %v2244
        %v2246 = vpop.xlane.xlu0 %2245
        %v2247 = vsel %vm1527, %v2207, -inf
        %2248 = vmax.xlane.f32.xlu0 %v2247
        %v2249 = vpop.xlane.xlu0 %2248
        %v2250 = vsel %vm1527, %v2208, -inf
        %2251 = vmax.xlane.f32.xlu0 %v2250
        %v2252 = vpop.xlane.xlu0 %2251
        %v2253 = vsel %vm1527, %v2209, -inf
        %2254 = vmax.xlane.f32.xlu0 %v2253
        %v2255 = vpop.xlane.xlu0 %2254
        %v2256 = vsel %vm1527, %v2210, -inf
        %2257 = vmax.xlane.f32.xlu0 %v2256
        %v2258 = vpop.xlane.xlu0 %2257
        %v2259 = vsub.f32 %v2195, %v2213
        %v2260 = vsub.f32 %v2196, %v2216
        %v2261 = vsub.f32 %v2197, %v2219
        %v2262 = vsub.f32 %v2198, %v2222
        %v2263 = vsub.f32 %v2199, %v2225
        %v2264 = vsub.f32 %v2200, %v2228
        %v2265 = vsub.f32 %v2201, %v2231
        %v2266 = vsub.f32 %v2202, %v2234
        %v2267 = vsub.f32 %v2203, %v2237
        %v2268 = vsub.f32 %v2204, %v2240
        %v2269 = vsub.f32 %v2205, %v2243
        %v2270 = vsub.f32 %v2206, %v2246
        %v2271 = vsub.f32 %v2207, %v2249
        %v2272 = vsub.f32 %v2208, %v2252
        %v2273 = vsub.f32 %v2209, %v2255
        %v2274 = vsub.f32 %v2210, %v2258
        %v2275 = vmul.f32 %v2259, 1.442695
        %v2276 = vpow.pop %v2275
        %v2277 = vmul.f32 %v2260, 1.442695
        %v2278 = vpow.pop %v2277
        %v2279 = vmul.f32 %v2261, 1.442695
        %v2280 = vpow.pop %v2279
        %v2281 = vmul.f32 %v2262, 1.442695
        %v2282 = vpow.pop %v2281
        %v2283 = vmul.f32 %v2263, 1.442695
        %v2284 = vpow.pop %v2283
        %v2285 = vmul.f32 %v2264, 1.442695
        %v2286 = vpow.pop %v2285
        %v2287 = vmul.f32 %v2265, 1.442695
        %v2288 = vpow.pop %v2287
        %v2289 = vmul.f32 %v2266, 1.442695
        %v2290 = vpow.pop %v2289
        %v2291 = vmul.f32 %v2267, 1.442695
        %v2292 = vpow.pop %v2291
        %v2293 = vmul.f32 %v2268, 1.442695
        %v2294 = vpow.pop %v2293
        %v2295 = vmul.f32 %v2269, 1.442695
        %v2296 = vpow.pop %v2295
        %v2297 = vmul.f32 %v2270, 1.442695
        %v2298 = vpow.pop %v2297
        %v2299 = vmul.f32 %v2271, 1.442695
        %v2300 = vpow.pop %v2299
        %v2301 = vmul.f32 %v2272, 1.442695
        %v2302 = vpow.pop %v2301
        %v2303 = vmul.f32 %v2273, 1.442695
        %v2304 = vpow.pop %v2303
        %v2305 = vmul.f32 %v2274, 1.442695
        %v2306 = vpow.pop %v2305
        %v2307 = vsel %vm1527, %v2276, 0.0
        %2308 = vadd.xlane.f32.xlu0 %v2307
        %v2309 = vpop.xlane.xlu0 %2308
        %v2310 = vsel %vm1527, %v2278, 0.0
        %2311 = vadd.xlane.f32.xlu0 %v2310
        %v2312 = vpop.xlane.xlu0 %2311
        %v2313 = vsel %vm1527, %v2280, 0.0
        %2314 = vadd.xlane.f32.xlu0 %v2313
        %v2315 = vpop.xlane.xlu0 %2314
        %v2316 = vsel %vm1527, %v2282, 0.0
        %2317 = vadd.xlane.f32.xlu0 %v2316
        %v2318 = vpop.xlane.xlu0 %2317
        %v2319 = vsel %vm1527, %v2284, 0.0
        %2320 = vadd.xlane.f32.xlu0 %v2319
        %v2321 = vpop.xlane.xlu0 %2320
        %v2322 = vsel %vm1527, %v2286, 0.0
        %2323 = vadd.xlane.f32.xlu0 %v2322
        %v2324 = vpop.xlane.xlu0 %2323
        %v2325 = vsel %vm1527, %v2288, 0.0
        %2326 = vadd.xlane.f32.xlu0 %v2325
        %v2327 = vpop.xlane.xlu0 %2326
        %v2328 = vsel %vm1527, %v2290, 0.0
        %2329 = vadd.xlane.f32.xlu0 %v2328
        %v2330 = vpop.xlane.xlu0 %2329
        %v2331 = vsel %vm1527, %v2292, 0.0
        %2332 = vadd.xlane.f32.xlu0 %v2331
        %v2333 = vpop.xlane.xlu0 %2332
        %v2334 = vsel %vm1527, %v2294, 0.0
        %2335 = vadd.xlane.f32.xlu0 %v2334
        %v2336 = vpop.xlane.xlu0 %2335
        %v2337 = vsel %vm1527, %v2296, 0.0
        %2338 = vadd.xlane.f32.xlu0 %v2337
        %v2339 = vpop.xlane.xlu0 %2338
        %v2340 = vsel %vm1527, %v2298, 0.0
        %2341 = vadd.xlane.f32.xlu0 %v2340
        %v2342 = vpop.xlane.xlu0 %2341
        %v2343 = vsel %vm1527, %v2300, 0.0
        %2344 = vadd.xlane.f32.xlu0 %v2343
        %v2345 = vpop.xlane.xlu0 %2344
        %v2346 = vsel %vm1527, %v2302, 0.0
        %2347 = vadd.xlane.f32.xlu0 %v2346
        %v2348 = vpop.xlane.xlu0 %2347
        %v2349 = vsel %vm1527, %v2304, 0.0
        %2350 = vadd.xlane.f32.xlu0 %v2349
        %v2351 = vpop.xlane.xlu0 %2350
        %v2352 = vsel %vm1527, %v2306, 0.0
        %2353 = vadd.xlane.f32.xlu0 %v2352
        %v2354 = vpop.xlane.xlu0 %2353
        %v2355 = vrcp.pop %v2309
        %v2356 = vrcp.pop %v2312
        %v2357 = vrcp.pop %v2315
        %v2358 = vrcp.pop %v2318
        %v2359 = vrcp.pop %v2321
        %v2360 = vrcp.pop %v2324
        %v2361 = vrcp.pop %v2327
        %v2362 = vrcp.pop %v2330
        %v2363 = vrcp.pop %v2333
        %v2364 = vrcp.pop %v2336
        %v2365 = vrcp.pop %v2339
        %v2366 = vrcp.pop %v2342
        %v2367 = vrcp.pop %v2345
        %v2368 = vrcp.pop %v2348
        %v2369 = vrcp.pop %v2351
        %v2370 = vrcp.pop %v2354
        %v2371 = vmul.f32 %v2276, %v2355
        %v2372 = vmul.f32 %v2278, %v2356
        %v2373 = vmul.f32 %v2280, %v2357
        %v2374 = vmul.f32 %v2282, %v2358
        %v2375 = vmul.f32 %v2284, %v2359
        %v2376 = vmul.f32 %v2286, %v2360
        %v2377 = vmul.f32 %v2288, %v2361
        %v2378 = vmul.f32 %v2290, %v2362
        %v2379 = vmul.f32 %v2292, %v2363
        %v2380 = vmul.f32 %v2294, %v2364
        %v2381 = vmul.f32 %v2296, %v2365
        %v2382 = vmul.f32 %v2298, %v2366
        %v2383 = vmul.f32 %v2300, %v2367
        %v2384 = vmul.f32 %v2302, %v2368
        %v2385 = vmul.f32 %v2304, %v2369
        %v2386 = vmul.f32 %v2306, %v2370
        %v2387 = vsel %vm1527, %v2371, 0.0
        %v2388 = vsel %vm1527, %v2373, 0.0
        %v2389 = vadd.f32 %v2387, %v2388
        %v2390 = vsel %vm1527, %v2375, 0.0
        %v2391 = vadd.f32 %v2389, %v2390
        %v2392 = vsel %vm1527, %v2377, 0.0
        %v2393 = vadd.f32 %v2391, %v2392
        %v2394 = vsel %vm1527, %v2379, 0.0
        %v2395 = vadd.f32 %v2393, %v2394
        %v2396 = vsel %vm1527, %v2381, 0.0
        %v2397 = vadd.f32 %v2395, %v2396
        %v2398 = vsel %vm1527, %v2383, 0.0
        %v2399 = vadd.f32 %v2397, %v2398
        %v2400 = vsel %vm1527, %v2385, 0.0
        %v2401 = vadd.f32 %v2399, %v2400
        %v2402 = vsel %vm1527, %v2372, 0.0
        %v2403 = vsel %vm1527, %v2374, 0.0
        %v2404 = vadd.f32 %v2402, %v2403
        %v2405 = vsel %vm1527, %v2376, 0.0
        %v2406 = vadd.f32 %v2404, %v2405
        %v2407 = vsel %vm1527, %v2378, 0.0
        %v2408 = vadd.f32 %v2406, %v2407
        %v2409 = vsel %vm1527, %v2380, 0.0
        %v2410 = vadd.f32 %v2408, %v2409
        %v2411 = vsel %vm1527, %v2382, 0.0
        %v2412 = vadd.f32 %v2410, %v2411
        %v2413 = vsel %vm1527, %v2384, 0.0
        %v2414 = vadd.f32 %v2412, %v2413
        %v2415 = vsel %vm1527, %v2386, 0.0
        %v2416 = vadd.f32 %v2414, %v2415
        %v2417 = vrcp.pop 8.0
        %v2418 = vmul.f32 %v2401, %v2417
        %v2419 = vmul.f32 %v2416, %v2417
        %v2420 = vsel %vm1527, %v2418, 0.0
        %v2421 = vsel %vm1527, %v2419, 0.0
        %2422 = vst [vmem:[%s739] sm:$0xff] %v2420
        %2423 = vst [vmem:[%s739 + $0x8] sm:$0xff] %v2421
        %v2425 = vsel %vm1527, %v2371, 0
        %v2428 = vsel %vm1527, %v2372, 0
        %2430 = vmatprep.subr.mxu0 0.0
        %2431 = vmatpush1.msra.mxu0 %v1413
        %2432 = vmatprep.subr.mxu0 0.0
        %2433 = vmatpush1.msra.mxu0 %v1418
        %2434 = vmatprep.subr.mxu0 0.0
        %2435 = vmatpush1.msra.mxu0 0.0
        %2436 = vmatprep.subr.mxu0 0.0
        %2437 = vmatpush1.msra.mxu0 0.0
        %2438 = vmatprep.subr.mxu0 0.0
        %2439 = vmatpush1.msra.mxu0 0.0
        %2440 = vmatprep.subr.mxu0 0.0
        %2441 = vmatpush1.msra.mxu0 0.0
        %2442 = vmatprep.subr.mxu0 0.0
        %2443 = vmatpush1.msra.mxu0 0.0
        %2444 = vmatprep.subr.mxu0 0.0
        %2445 = vmatpush1.msra.mxu0 0.0
        %2446 = vmatprep.subr.mxu0 0.0
        %2447 = vmatpush1.msra.mxu0 0.0
        %2448 = vmatprep.subr.mxu0 0.0
        %2449 = vmatpush1.msra.mxu0 0.0
        %2450 = vmatprep.subr.mxu0 0.0
        %2451 = vmatpush1.msra.mxu0 0.0
        %2452 = vmatprep.subr.mxu0 0.0
        %2453 = vmatpush1.msra.mxu0 0.0
        %2454 = vmatprep.subr.mxu0 0.0
        %2455 = vmatpush1.msra.mxu0 0.0
        %2456 = vmatprep.subr.mxu0 0.0
        %2457 = vmatpush1.msra.mxu0 0.0
        %2458 = vmatprep.subr.mxu0 0.0
        %2459 = vmatpush1.msra.mxu0 0.0
        %2460 = vmatprep.subr.mxu0 0.0
        %2461 = vmatpush1.msra.mxu0 0.0
        %2462 = vmatprep.subr.mxu0 0.0
        %2463 = vmatpush1.msra.mxu0 0.0
        %2464 = vmatprep.subr.mxu0 0.0
        %2465 = vmatpush1.msra.mxu0 0.0
        %2466 = vmatprep.subr.mxu0 0.0
        %2467 = vmatpush1.msra.mxu0 0.0
        %2468 = vmatprep.subr.mxu0 0.0
        %2469 = vmatpush1.msra.mxu0 0.0
        %2470 = vmatprep.subr.mxu0 0.0
        %2471 = vmatpush1.msra.mxu0 0.0
        %2472 = vmatprep.subr.mxu0 0.0
        %2473 = vmatpush1.msra.mxu0 0.0
        %2474 = vmatprep.subr.mxu0 0.0
        %2475 = vmatpush1.msra.mxu0 0.0
        %2476 = vmatprep.subr.mxu0 0.0
        %2477 = vmatpush1.msra.mxu0 0.0
        %2478 = vmatprep.subr.mxu0 0.0
        %2479 = vmatpush1.msra.mxu0 0.0
        %2480 = vmatprep.subr.mxu0 0.0
        %2481 = vmatpush1.msra.mxu0 0.0
        %2482 = vmatprep.subr.mxu0 0.0
        %2483 = vmatpush1.msra.mxu0 0.0
        %2484 = vmatprep.subr.mxu0 0.0
        %2485 = vmatpush1.msra.mxu0 0.0
        %2486 = vmatprep.subr.mxu0 0.0
        %2487 = vmatpush1.msra.mxu0 0.0
        %2488 = vmatprep.subr.mxu0 0.0
        %2489 = vmatpush1.msra.mxu0 0.0
        %2490 = vmatprep.subr.mxu0 0.0
        %2491 = vmatpush1.msra.mxu0 0.0
        %2492 = vmatprep.subr.mxu0 0.0
        %2493 = vmatpush1.msra.mxu0 0.0
        %2494 = vmatprep.mubr.f32.mxu0 0.0
        %2495 = vmatmul.mubr.f32.gmra.mrb[0].mxu0 %v2425
        %v2496 = vpop.f32.mrb[0].mxu0
        %v2497 = vadd.f32 0.0, %v2496
        %v2498 = vpop.f32.mrb[0].mxu0
        %2499 = vmatprep.mubr.f32.mxu0 0.0
        %2500 = vmatmul.mubr.f32.gmra.mrb[0].mxu0 %v2428
        %v2501 = vpop.f32.mrb[0].mxu0
        %v2502 = vadd.f32 0.0, %v2501
        %v2503 = vpop.f32.mrb[0].mxu0
        %2504 = vdwg.mxu0
        %v2506 = vsel %vm1527, %v2373, 0
        %v2509 = vsel %vm1527, %v2374, 0
        %2511 = vmatprep.subr.mxu0 0.0
        %2512 = vmatpush1.msra.mxu0 %v1486
        %2513 = vmatprep.subr.mxu0 0.0
        %2514 = vmatpush1.msra.mxu0 %v1488
        %2515 = vmatprep.subr.mxu0 0.0
        %2516 = vmatpush1.msra.mxu0 0.0
        %2517 = vmatprep.subr.mxu0 0.0
        %2518 = vmatpush1.msra.mxu0 0.0
        %2519 = vmatprep.subr.mxu0 0.0
        %2520 = vmatpush1.msra.mxu0 0.0
        %2521 = vmatprep.subr.mxu0 0.0
        %2522 = vmatpush1.msra.mxu0 0.0
        %2523 = vmatprep.subr.mxu0 0.0
        %2524 = vmatpush1.msra.mxu0 0.0
        %2525 = vmatprep.subr.mxu0 0.0
        %2526 = vmatpush1.msra.mxu0 0.0
        %2527 = vmatprep.subr.mxu0 0.0
        %2528 = vmatpush1.msra.mxu0 0.0
        %2529 = vmatprep.subr.mxu0 0.0
        %2530 = vmatpush1.msra.mxu0 0.0
        %2531 = vmatprep.subr.mxu0 0.0
        %2532 = vmatpush1.msra.mxu0 0.0
        %2533 = vmatprep.subr.mxu0 0.0
        %2534 = vmatpush1.msra.mxu0 0.0
        %2535 = vmatprep.subr.mxu0 0.0
        %2536 = vmatpush1.msra.mxu0 0.0
        %2537 = vmatprep.subr.mxu0 0.0
        %2538 = vmatpush1.msra.mxu0 0.0
        %2539 = vmatprep.subr.mxu0 0.0
        %2540 = vmatpush1.msra.mxu0 0.0
        %2541 = vmatprep.subr.mxu0 0.0
        %2542 = vmatpush1.msra.mxu0 0.0
        %2543 = vmatprep.subr.mxu0 0.0
        %2544 = vmatpush1.msra.mxu0 0.0
        %2545 = vmatprep.subr.mxu0 0.0
        %2546 = vmatpush1.msra.mxu0 0.0
        %2547 = vmatprep.subr.mxu0 0.0
        %2548 = vmatpush1.msra.mxu0 0.0
        %2549 = vmatprep.subr.mxu0 0.0
        %2550 = vmatpush1.msra.mxu0 0.0
        %2551 = vmatprep.subr.mxu0 0.0
        %2552 = vmatpush1.msra.mxu0 0.0
        %2553 = vmatprep.subr.mxu0 0.0
        %2554 = vmatpush1.msra.mxu0 0.0
        %2555 = vmatprep.subr.mxu0 0.0
        %2556 = vmatpush1.msra.mxu0 0.0
        %2557 = vmatprep.subr.mxu0 0.0
        %2558 = vmatpush1.msra.mxu0 0.0
        %2559 = vmatprep.subr.mxu0 0.0
        %2560 = vmatpush1.msra.mxu0 0.0
        %2561 = vmatprep.subr.mxu0 0.0
        %2562 = vmatpush1.msra.mxu0 0.0
        %2563 = vmatprep.subr.mxu0 0.0
        %2564 = vmatpush1.msra.mxu0 0.0
        %2565 = vmatprep.subr.mxu0 0.0
        %2566 = vmatpush1.msra.mxu0 0.0
        %2567 = vmatprep.subr.mxu0 0.0
        %2568 = vmatpush1.msra.mxu0 0.0
        %2569 = vmatprep.subr.mxu0 0.0
        %2570 = vmatpush1.msra.mxu0 0.0
        %2571 = vmatprep.subr.mxu0 0.0
        %2572 = vmatpush1.msra.mxu0 0.0
        %2573 = vmatprep.subr.mxu0 0.0
        %2574 = vmatpush1.msra.mxu0 0.0
        %2575 = vmatprep.mubr.f32.mxu0 0.0
        %2576 = vmatmul.mubr.f32.gmra.mrb[0].mxu0 %v2506
        %v2577 = vpop.f32.mrb[0].mxu0
        %v2578 = vadd.f32 0.0, %v2577
        %v2579 = vpop.f32.mrb[0].mxu0
        %2580 = vmatprep.mubr.f32.mxu0 0.0
        %2581 = vmatmul.mubr.f32.gmra.mrb[0].mxu0 %v2509
        %v2582 = vpop.f32.mrb[0].mxu0
        %v2583 = vadd.f32 0.0, %v2582
        %v2584 = vpop.f32.mrb[0].mxu0
        %2585 = vdwg.mxu0
        %v2587 = vsel %vm1527, %v2375, 0
        %v2590 = vsel %vm1527, %v2376, 0
        %2592 = vmatprep.subr.mxu0 0.0
        %2593 = vmatpush1.msra.mxu0 %v1492
        %2594 = vmatprep.subr.mxu0 0.0
        %2595 = vmatpush1.msra.mxu0 %v1494
        %2596 = vmatprep.subr.mxu0 0.0
        %2597 = vmatpush1.msra.mxu0 0.0
        %2598 = vmatprep.subr.mxu0 0.0
        %2599 = vmatpush1.msra.mxu0 0.0
        %2600 = vmatprep.subr.mxu0 0.0
        %2601 = vmatpush1.msra.mxu0 0.0
        %2602 = vmatprep.subr.mxu0 0.0
        %2603 = vmatpush1.msra.mxu0 0.0
        %2604 = vmatprep.subr.mxu0 0.0
        %2605 = vmatpush1.msra.mxu0 0.0
        %2606 = vmatprep.subr.mxu0 0.0
        %2607 = vmatpush1.msra.mxu0 0.0
        %2608 = vmatprep.subr.mxu0 0.0
        %2609 = vmatpush1.msra.mxu0 0.0
        %2610 = vmatprep.subr.mxu0 0.0
        %2611 = vmatpush1.msra.mxu0 0.0
        %2612 = vmatprep.subr.mxu0 0.0
        %2613 = vmatpush1.msra.mxu0 0.0
        %2614 = vmatprep.subr.mxu0 0.0
        %2615 = vmatpush1.msra.mxu0 0.0
        %2616 = vmatprep.subr.mxu0 0.0
        %2617 = vmatpush1.msra.mxu0 0.0
        %2618 = vmatprep.subr.mxu0 0.0
        %2619 = vmatpush1.msra.mxu0 0.0
        %2620 = vmatprep.subr.mxu0 0.0
        %2621 = vmatpush1.msra.mxu0 0.0
        %2622 = vmatprep.subr.mxu0 0.0
        %2623 = vmatpush1.msra.mxu0 0.0
        %2624 = vmatprep.subr.mxu0 0.0
        %2625 = vmatpush1.msra.mxu0 0.0
        %2626 = vmatprep.subr.mxu0 0.0
        %2627 = vmatpush1.msra.mxu0 0.0
        %2628 = vmatprep.subr.mxu0 0.0
        %2629 = vmatpush1.msra.mxu0 0.0
        %2630 = vmatprep.subr.mxu0 0.0
        %2631 = vmatpush1.msra.mxu0 0.0
        %2632 = vmatprep.subr.mxu0 0.0
        %2633 = vmatpush1.msra.mxu0 0.0
        %2634 = vmatprep.subr.mxu0 0.0
        %2635 = vmatpush1.msra.mxu0 0.0
        %2636 = vmatprep.subr.mxu0 0.0
        %2637 = vmatpush1.msra.mxu0 0.0
        %2638 = vmatprep.subr.mxu0 0.0
        %2639 = vmatpush1.msra.mxu0 0.0
        %2640 = vmatprep.subr.mxu0 0.0
        %2641 = vmatpush1.msra.mxu0 0.0
        %2642 = vmatprep.subr.mxu0 0.0
        %2643 = vmatpush1.msra.mxu0 0.0
        %2644 = vmatprep.subr.mxu0 0.0
        %2645 = vmatpush1.msra.mxu0 0.0
        %2646 = vmatprep.subr.mxu0 0.0
        %2647 = vmatpush1.msra.mxu0 0.0
        %2648 = vmatprep.subr.mxu0 0.0
        %2649 = vmatpush1.msra.mxu0 0.0
        %2650 = vmatprep.subr.mxu0 0.0
        %2651 = vmatpush1.msra.mxu0 0.0
        %2652 = vmatprep.subr.mxu0 0.0
        %2653 = vmatpush1.msra.mxu0 0.0
        %2654 = vmatprep.subr.mxu0 0.0
        %2655 = vmatpush1.msra.mxu0 0.0
        %2656 = vmatprep.mubr.f32.mxu0 0.0
        %2657 = vmatmul.mubr.f32.gmra.mrb[0].mxu0 %v2587
        %v2658 = vpop.f32.mrb[0].mxu0
        %v2659 = vadd.f32 0.0, %v2658
        %v2660 = vpop.f32.mrb[0].mxu0
        %2661 = vmatprep.mubr.f32.mxu0 0.0
        %2662 = vmatmul.mubr.f32.gmra.mrb[0].mxu0 %v2590
        %v2663 = vpop.f32.mrb[0].mxu0
        %v2664 = vadd.f32 0.0, %v2663
        %v2665 = vpop.f32.mrb[0].mxu0
        %2666 = vdwg.mxu0
        %v2668 = vsel %vm1527, %v2377, 0
        %v2671 = vsel %vm1527, %v2378, 0
        %2673 = vmatprep.subr.mxu0 0.0
        %2674 = vmatpush1.msra.mxu0 %v1498
        %2675 = vmatprep.subr.mxu0 0.0
        %2676 = vmatpush1.msra.mxu0 %v1500
        %2677 = vmatprep.subr.mxu0 0.0
        %2678 = vmatpush1.msra.mxu0 0.0
        %2679 = vmatprep.subr.mxu0 0.0
        %2680 = vmatpush1.msra.mxu0 0.0
        %2681 = vmatprep.subr.mxu0 0.0
        %2682 = vmatpush1.msra.mxu0 0.0
        %2683 = vmatprep.subr.mxu0 0.0
        %2684 = vmatpush1.msra.mxu0 0.0
        %2685 = vmatprep.subr.mxu0 0.0
        %2686 = vmatpush1.msra.mxu0 0.0
        %2687 = vmatprep.subr.mxu0 0.0
        %2688 = vmatpush1.msra.mxu0 0.0
        %2689 = vmatprep.subr.mxu0 0.0
        %2690 = vmatpush1.msra.mxu0 0.0
        %2691 = vmatprep.subr.mxu0 0.0
        %2692 = vmatpush1.msra.mxu0 0.0
        %2693 = vmatprep.subr.mxu0 0.0
        %2694 = vmatpush1.msra.mxu0 0.0
        %2695 = vmatprep.subr.mxu0 0.0
        %2696 = vmatpush1.msra.mxu0 0.0
        %2697 = vmatprep.subr.mxu0 0.0
        %2698 = vmatpush1.msra.mxu0 0.0
        %2699 = vmatprep.subr.mxu0 0.0
        %2700 = vmatpush1.msra.mxu0 0.0
        %2701 = vmatprep.subr.mxu0 0.0
        %2702 = vmatpush1.msra.mxu0 0.0
        %2703 = vmatprep.subr.mxu0 0.0
        %2704 = vmatpush1.msra.mxu0 0.0
        %2705 = vmatprep.subr.mxu0 0.0
        %2706 = vmatpush1.msra.mxu0 0.0
        %2707 = vmatprep.subr.mxu0 0.0
        %2708 = vmatpush1.msra.mxu0 0.0
        %2709 = vmatprep.subr.mxu0 0.0
        %2710 = vmatpush1.msra.mxu0 0.0
        %2711 = vmatprep.subr.mxu0 0.0
        %2712 = vmatpush1.msra.mxu0 0.0
        %2713 = vmatprep.subr.mxu0 0.0
        %2714 = vmatpush1.msra.mxu0 0.0
        %2715 = vmatprep.subr.mxu0 0.0
        %2716 = vmatpush1.msra.mxu0 0.0
        %2717 = vmatprep.subr.mxu0 0.0
        %2718 = vmatpush1.msra.mxu0 0.0
        %2719 = vmatprep.subr.mxu0 0.0
        %2720 = vmatpush1.msra.mxu0 0.0
        %2721 = vmatprep.subr.mxu0 0.0
        %2722 = vmatpush1.msra.mxu0 0.0
        %2723 = vmatprep.subr.mxu0 0.0
        %2724 = vmatpush1.msra.mxu0 0.0
        %2725 = vmatprep.subr.mxu0 0.0
        %2726 = vmatpush1.msra.mxu0 0.0
        %2727 = vmatprep.subr.mxu0 0.0
        %2728 = vmatpush1.msra.mxu0 0.0
        %2729 = vmatprep.subr.mxu0 0.0
        %2730 = vmatpush1.msra.mxu0 0.0
        %2731 = vmatprep.subr.mxu0 0.0
        %2732 = vmatpush1.msra.mxu0 0.0
        %2733 = vmatprep.subr.mxu0 0.0
        %2734 = vmatpush1.msra.mxu0 0.0
        %2735 = vmatprep.subr.mxu0 0.0
        %2736 = vmatpush1.msra.mxu0 0.0
        %2737 = vmatprep.mubr.f32.mxu0 0.0
        %2738 = vmatmul.mubr.f32.gmra.mrb[0].mxu0 %v2668
        %v2739 = vpop.f32.mrb[0].mxu0
        %v2740 = vadd.f32 0.0, %v2739
        %v2741 = vpop.f32.mrb[0].mxu0
        %2742 = vmatprep.mubr.f32.mxu0 0.0
        %2743 = vmatmul.mubr.f32.gmra.mrb[0].mxu0 %v2671
        %v2744 = vpop.f32.mrb[0].mxu0
        %v2745 = vadd.f32 0.0, %v2744
        %v2746 = vpop.f32.mrb[0].mxu0
        %2747 = vdwg.mxu0
        %v2749 = vsel %vm1527, %v2379, 0
        %v2752 = vsel %vm1527, %v2380, 0
        %2754 = vmatprep.subr.mxu0 0.0
        %2755 = vmatpush1.msra.mxu0 %v1504
        %2756 = vmatprep.subr.mxu0 0.0
        %2757 = vmatpush1.msra.mxu0 %v1506
        %2758 = vmatprep.subr.mxu0 0.0
        %2759 = vmatpush1.msra.mxu0 0.0
        %2760 = vmatprep.subr.mxu0 0.0
        %2761 = vmatpush1.msra.mxu0 0.0
        %2762 = vmatprep.subr.mxu0 0.0
        %2763 = vmatpush1.msra.mxu0 0.0
        %2764 = vmatprep.subr.mxu0 0.0
        %2765 = vmatpush1.msra.mxu0 0.0
        %2766 = vmatprep.subr.mxu0 0.0
        %2767 = vmatpush1.msra.mxu0 0.0
        %2768 = vmatprep.subr.mxu0 0.0
        %2769 = vmatpush1.msra.mxu0 0.0
        %2770 = vmatprep.subr.mxu0 0.0
        %2771 = vmatpush1.msra.mxu0 0.0
        %2772 = vmatprep.subr.mxu0 0.0
        %2773 = vmatpush1.msra.mxu0 0.0
        %2774 = vmatprep.subr.mxu0 0.0
        %2775 = vmatpush1.msra.mxu0 0.0
        %2776 = vmatprep.subr.mxu0 0.0
        %2777 = vmatpush1.msra.mxu0 0.0
        %2778 = vmatprep.subr.mxu0 0.0
        %2779 = vmatpush1.msra.mxu0 0.0
        %2780 = vmatprep.subr.mxu0 0.0
        %2781 = vmatpush1.msra.mxu0 0.0
        %2782 = vmatprep.subr.mxu0 0.0
        %2783 = vmatpush1.msra.mxu0 0.0
        %2784 = vmatprep.subr.mxu0 0.0
        %2785 = vmatpush1.msra.mxu0 0.0
        %2786 = vmatprep.subr.mxu0 0.0
        %2787 = vmatpush1.msra.mxu0 0.0
        %2788 = vmatprep.subr.mxu0 0.0
        %2789 = vmatpush1.msra.mxu0 0.0
        %2790 = vmatprep.subr.mxu0 0.0
        %2791 = vmatpush1.msra.mxu0 0.0
        %2792 = vmatprep.subr.mxu0 0.0
        %2793 = vmatpush1.msra.mxu0 0.0
        %2794 = vmatprep.subr.mxu0 0.0
        %2795 = vmatpush1.msra.mxu0 0.0
        %2796 = vmatprep.subr.mxu0 0.0
        %2797 = vmatpush1.msra.mxu0 0.0
        %2798 = vmatprep.subr.mxu0 0.0
        %2799 = vmatpush1.msra.mxu0 0.0
        %2800 = vmatprep.subr.mxu0 0.0
        %2801 = vmatpush1.msra.mxu0 0.0
        %2802 = vmatprep.subr.mxu0 0.0
        %2803 = vmatpush1.msra.mxu0 0.0
        %2804 = vmatprep.subr.mxu0 0.0
        %2805 = vmatpush1.msra.mxu0 0.0
        %2806 = vmatprep.subr.mxu0 0.0
        %2807 = vmatpush1.msra.mxu0 0.0
        %2808 = vmatprep.subr.mxu0 0.0
        %2809 = vmatpush1.msra.mxu0 0.0
        %2810 = vmatprep.subr.mxu0 0.0
        %2811 = vmatpush1.msra.mxu0 0.0
        %2812 = vmatprep.subr.mxu0 0.0
        %2813 = vmatpush1.msra.mxu0 0.0
        %2814 = vmatprep.subr.mxu0 0.0
        %2815 = vmatpush1.msra.mxu0 0.0
        %2816 = vmatprep.subr.mxu0 0.0
        %2817 = vmatpush1.msra.mxu0 0.0
        %2818 = vmatprep.mubr.f32.mxu0 0.0
        %2819 = vmatmul.mubr.f32.gmra.mrb[0].mxu0 %v2749
        %v2820 = vpop.f32.mrb[0].mxu0
        %v2821 = vadd.f32 0.0, %v2820
        %v2822 = vpop.f32.mrb[0].mxu0
        %2823 = vmatprep.mubr.f32.mxu0 0.0
        %2824 = vmatmul.mubr.f32.gmra.mrb[0].mxu0 %v2752
        %v2825 = vpop.f32.mrb[0].mxu0
        %v2826 = vadd.f32 0.0, %v2825
        %v2827 = vpop.f32.mrb[0].mxu0
        %2828 = vdwg.mxu0
        %v2830 = vsel %vm1527, %v2381, 0
        %v2833 = vsel %vm1527, %v2382, 0
        %2835 = vmatprep.subr.mxu0 0.0
        %2836 = vmatpush1.msra.mxu0 %v1510
        %2837 = vmatprep.subr.mxu0 0.0
        %2838 = vmatpush1.msra.mxu0 %v1512
        %2839 = vmatprep.subr.mxu0 0.0
        %2840 = vmatpush1.msra.mxu0 0.0
        %2841 = vmatprep.subr.mxu0 0.0
        %2842 = vmatpush1.msra.mxu0 0.0
        %2843 = vmatprep.subr.mxu0 0.0
        %2844 = vmatpush1.msra.mxu0 0.0
        %2845 = vmatprep.subr.mxu0 0.0
        %2846 = vmatpush1.msra.mxu0 0.0
        %2847 = vmatprep.subr.mxu0 0.0
        %2848 = vmatpush1.msra.mxu0 0.0
        %2849 = vmatprep.subr.mxu0 0.0
        %2850 = vmatpush1.msra.mxu0 0.0
        %2851 = vmatprep.subr.mxu0 0.0
        %2852 = vmatpush1.msra.mxu0 0.0
        %2853 = vmatprep.subr.mxu0 0.0
        %2854 = vmatpush1.msra.mxu0 0.0
        %2855 = vmatprep.subr.mxu0 0.0
        %2856 = vmatpush1.msra.mxu0 0.0
        %2857 = vmatprep.subr.mxu0 0.0
        %2858 = vmatpush1.msra.mxu0 0.0
        %2859 = vmatprep.subr.mxu0 0.0
        %2860 = vmatpush1.msra.mxu0 0.0
        %2861 = vmatprep.subr.mxu0 0.0
        %2862 = vmatpush1.msra.mxu0 0.0
        %2863 = vmatprep.subr.mxu0 0.0
        %2864 = vmatpush1.msra.mxu0 0.0
        %2865 = vmatprep.subr.mxu0 0.0
        %2866 = vmatpush1.msra.mxu0 0.0
        %2867 = vmatprep.subr.mxu0 0.0
        %2868 = vmatpush1.msra.mxu0 0.0
        %2869 = vmatprep.subr.mxu0 0.0
        %2870 = vmatpush1.msra.mxu0 0.0
        %2871 = vmatprep.subr.mxu0 0.0
        %2872 = vmatpush1.msra.mxu0 0.0
        %2873 = vmatprep.subr.mxu0 0.0
        %2874 = vmatpush1.msra.mxu0 0.0
        %2875 = vmatprep.subr.mxu0 0.0
        %2876 = vmatpush1.msra.mxu0 0.0
        %2877 = vmatprep.subr.mxu0 0.0
        %2878 = vmatpush1.msra.mxu0 0.0
        %2879 = vmatprep.subr.mxu0 0.0
        %2880 = vmatpush1.msra.mxu0 0.0
        %2881 = vmatprep.subr.mxu0 0.0
        %2882 = vmatpush1.msra.mxu0 0.0
        %2883 = vmatprep.subr.mxu0 0.0
        %2884 = vmatpush1.msra.mxu0 0.0
        %2885 = vmatprep.subr.mxu0 0.0
        %2886 = vmatpush1.msra.mxu0 0.0
        %2887 = vmatprep.subr.mxu0 0.0
        %2888 = vmatpush1.msra.mxu0 0.0
        %2889 = vmatprep.subr.mxu0 0.0
        %2890 = vmatpush1.msra.mxu0 0.0
        %2891 = vmatprep.subr.mxu0 0.0
        %2892 = vmatpush1.msra.mxu0 0.0
        %2893 = vmatprep.subr.mxu0 0.0
        %2894 = vmatpush1.msra.mxu0 0.0
        %2895 = vmatprep.subr.mxu0 0.0
        %2896 = vmatpush1.msra.mxu0 0.0
        %2897 = vmatprep.subr.mxu0 0.0
        %2898 = vmatpush1.msra.mxu0 0.0
        %2899 = vmatprep.mubr.f32.mxu0 0.0
        %2900 = vmatmul.mubr.f32.gmra.mrb[0].mxu0 %v2830
        %v2901 = vpop.f32.mrb[0].mxu0
        %v2902 = vadd.f32 0.0, %v2901
        %v2903 = vpop.f32.mrb[0].mxu0
        %2904 = vmatprep.mubr.f32.mxu0 0.0
        %2905 = vmatmul.mubr.f32.gmra.mrb[0].mxu0 %v2833
        %v2906 = vpop.f32.mrb[0].mxu0
        %v2907 = vadd.f32 0.0, %v2906
        %v2908 = vpop.f32.mrb[0].mxu0
        %2909 = vdwg.mxu0
        %v2911 = vsel %vm1527, %v2383, 0
        %v2914 = vsel %vm1527, %v2384, 0
        %2916 = vmatprep.subr.mxu0 0.0
        %2917 = vmatpush1.msra.mxu0 %v1516
        %2918 = vmatprep.subr.mxu0 0.0
        %2919 = vmatpush1.msra.mxu0 %v1518
        %2920 = vmatprep.subr.mxu0 0.0
        %2921 = vmatpush1.msra.mxu0 0.0
        %2922 = vmatprep.subr.mxu0 0.0
        %2923 = vmatpush1.msra.mxu0 0.0
        %2924 = vmatprep.subr.mxu0 0.0
        %2925 = vmatpush1.msra.mxu0 0.0
        %2926 = vmatprep.subr.mxu0 0.0
        %2927 = vmatpush1.msra.mxu0 0.0
        %2928 = vmatprep.subr.mxu0 0.0
        %2929 = vmatpush1.msra.mxu0 0.0
        %2930 = vmatprep.subr.mxu0 0.0
        %2931 = vmatpush1.msra.mxu0 0.0
        %2932 = vmatprep.subr.mxu0 0.0
        %2933 = vmatpush1.msra.mxu0 0.0
        %2934 = vmatprep.subr.mxu0 0.0
        %2935 = vmatpush1.msra.mxu0 0.0
        %2936 = vmatprep.subr.mxu0 0.0
        %2937 = vmatpush1.msra.mxu0 0.0
        %2938 = vmatprep.subr.mxu0 0.0
        %2939 = vmatpush1.msra.mxu0 0.0
        %2940 = vmatprep.subr.mxu0 0.0
        %2941 = vmatpush1.msra.mxu0 0.0
        %2942 = vmatprep.subr.mxu0 0.0
        %2943 = vmatpush1.msra.mxu0 0.0
        %2944 = vmatprep.subr.mxu0 0.0
        %2945 = vmatpush1.msra.mxu0 0.0
        %2946 = vmatprep.subr.mxu0 0.0
        %2947 = vmatpush1.msra.mxu0 0.0
        %2948 = vmatprep.subr.mxu0 0.0
        %2949 = vmatpush1.msra.mxu0 0.0
        %2950 = vmatprep.subr.mxu0 0.0
        %2951 = vmatpush1.msra.mxu0 0.0
        %2952 = vmatprep.subr.mxu0 0.0
        %2953 = vmatpush1.msra.mxu0 0.0
        %2954 = vmatprep.subr.mxu0 0.0
        %2955 = vmatpush1.msra.mxu0 0.0
        %2956 = vmatprep.subr.mxu0 0.0
        %2957 = vmatpush1.msra.mxu0 0.0
        %2958 = vmatprep.subr.mxu0 0.0
        %2959 = vmatpush1.msra.mxu0 0.0
        %2960 = vmatprep.subr.mxu0 0.0
        %2961 = vmatpush1.msra.mxu0 0.0
        %2962 = vmatprep.subr.mxu0 0.0
        %2963 = vmatpush1.msra.mxu0 0.0
        %2964 = vmatprep.subr.mxu0 0.0
        %2965 = vmatpush1.msra.mxu0 0.0
        %2966 = vmatprep.subr.mxu0 0.0
        %2967 = vmatpush1.msra.mxu0 0.0
        %2968 = vmatprep.subr.mxu0 0.0
        %2969 = vmatpush1.msra.mxu0 0.0
        %2970 = vmatprep.subr.mxu0 0.0
        %2971 = vmatpush1.msra.mxu0 0.0
        %2972 = vmatprep.subr.mxu0 0.0
        %2973 = vmatpush1.msra.mxu0 0.0
        %2974 = vmatprep.subr.mxu0 0.0
        %2975 = vmatpush1.msra.mxu0 0.0
        %2976 = vmatprep.subr.mxu0 0.0
        %2977 = vmatpush1.msra.mxu0 0.0
        %2978 = vmatprep.subr.mxu0 0.0
        %2979 = vmatpush1.msra.mxu0 0.0
        %2980 = vmatprep.mubr.f32.mxu0 0.0
        %2981 = vmatmul.mubr.f32.gmra.mrb[0].mxu0 %v2911
        %v2982 = vpop.f32.mrb[0].mxu0
        %v2983 = vadd.f32 0.0, %v2982
        %v2984 = vpop.f32.mrb[0].mxu0
        %2985 = vmatprep.mubr.f32.mxu0 0.0
        %2986 = vmatmul.mubr.f32.gmra.mrb[0].mxu0 %v2914
        %v2987 = vpop.f32.mrb[0].mxu0
        %v2988 = vadd.f32 0.0, %v2987
        %v2989 = vpop.f32.mrb[0].mxu0
        %2990 = vdwg.mxu0
        %v2992 = vsel %vm1527, %v2385, 0
        %v2995 = vsel %vm1527, %v2386, 0
        %2997 = vmatprep.subr.mxu0 0.0
        %2998 = vmatpush1.msra.mxu0 %v1522
        %2999 = vmatprep.subr.mxu0 0.0
        %3000 = vmatpush1.msra.mxu0 %v1524
        %3001 = vmatprep.subr.mxu0 0.0
        %3002 = vmatpush1.msra.mxu0 0.0
        %3003 = vmatprep.subr.mxu0 0.0
        %3004 = vmatpush1.msra.mxu0 0.0
        %3005 = vmatprep.subr.mxu0 0.0
        %3006 = vmatpush1.msra.mxu0 0.0
        %3007 = vmatprep.subr.mxu0 0.0
        %3008 = vmatpush1.msra.mxu0 0.0
        %3009 = vmatprep.subr.mxu0 0.0
        %3010 = vmatpush1.msra.mxu0 0.0
        %3011 = vmatprep.subr.mxu0 0.0
        %3012 = vmatpush1.msra.mxu0 0.0
        %3013 = vmatprep.subr.mxu0 0.0
        %3014 = vmatpush1.msra.mxu0 0.0
        %3015 = vmatprep.subr.mxu0 0.0
        %3016 = vmatpush1.msra.mxu0 0.0
        %3017 = vmatprep.subr.mxu0 0.0
        %3018 = vmatpush1.msra.mxu0 0.0
        %3019 = vmatprep.subr.mxu0 0.0
        %3020 = vmatpush1.msra.mxu0 0.0
        %3021 = vmatprep.subr.mxu0 0.0
        %3022 = vmatpush1.msra.mxu0 0.0
        %3023 = vmatprep.subr.mxu0 0.0
        %3024 = vmatpush1.msra.mxu0 0.0
        %3025 = vmatprep.subr.mxu0 0.0
        %3026 = vmatpush1.msra.mxu0 0.0
        %3027 = vmatprep.subr.mxu0 0.0
        %3028 = vmatpush1.msra.mxu0 0.0
        %3029 = vmatprep.subr.mxu0 0.0
        %3030 = vmatpush1.msra.mxu0 0.0
        %3031 = vmatprep.subr.mxu0 0.0
        %3032 = vmatpush1.msra.mxu0 0.0
        %3033 = vmatprep.subr.mxu0 0.0
        %3034 = vmatpush1.msra.mxu0 0.0
        %3035 = vmatprep.subr.mxu0 0.0
        %3036 = vmatpush1.msra.mxu0 0.0
        %3037 = vmatprep.subr.mxu0 0.0
        %3038 = vmatpush1.msra.mxu0 0.0
        %3039 = vmatprep.subr.mxu0 0.0
        %3040 = vmatpush1.msra.mxu0 0.0
        %3041 = vmatprep.subr.mxu0 0.0
        %3042 = vmatpush1.msra.mxu0 0.0
        %3043 = vmatprep.subr.mxu0 0.0
        %3044 = vmatpush1.msra.mxu0 0.0
        %3045 = vmatprep.subr.mxu0 0.0
        %3046 = vmatpush1.msra.mxu0 0.0
        %3047 = vmatprep.subr.mxu0 0.0
        %3048 = vmatpush1.msra.mxu0 0.0
        %3049 = vmatprep.subr.mxu0 0.0
        %3050 = vmatpush1.msra.mxu0 0.0
        %3051 = vmatprep.subr.mxu0 0.0
        %3052 = vmatpush1.msra.mxu0 0.0
        %3053 = vmatprep.subr.mxu0 0.0
        %3054 = vmatpush1.msra.mxu0 0.0
        %3055 = vmatprep.subr.mxu0 0.0
        %3056 = vmatpush1.msra.mxu0 0.0
        %3057 = vmatprep.subr.mxu0 0.0
        %3058 = vmatpush1.msra.mxu0 0.0
        %3059 = vmatprep.subr.mxu0 0.0
        %3060 = vmatpush1.msra.mxu0 0.0
        %3061 = vmatprep.mubr.f32.mxu0 0.0
        %3062 = vmatmul.mubr.f32.gmra.mrb[0].mxu0 %v2992
        %v3063 = vpop.f32.mrb[0].mxu0
        %v3064 = vadd.f32 0.0, %v3063
        %v3065 = vpop.f32.mrb[0].mxu0
        %3066 = vmatprep.mubr.f32.mxu0 0.0
        %3067 = vmatmul.mubr.f32.gmra.mrb[0].mxu0 %v2995
        %v3068 = vpop.f32.mrb[0].mxu0
        %v3069 = vadd.f32 0.0, %v3068
        %v3070 = vpop.f32.mrb[0].mxu0
        %3071 = vdwg.mxu0
        %3072 = vst.msk [vmem:[#allocation2] sm:$0xff] %vm1527, %v2497
        %3073 = vst.msk [vmem:[#allocation2 + $0x8] sm:$0xff] %vm1527, %v2502
        %3076 = vrot.lane.b32.xlu0 %v2578, 16
        %v3077 = vpop.permute.xlu0 %3076
        %3078 = vrot.lane.b32.xlu0 %v2583, 16
        %v3079 = vpop.permute.xlu0 %3078
        %vm3082 = vcmask 261248
        %3083 = vst.msk [vmem:[#allocation2] sm:$0xff] %vm3082, %v3077
        %3084 = vst.msk [vmem:[#allocation2 + $0x8] sm:$0xff] %vm3082, %v3079
        %3087 = vrot.lane.b32.xlu0 %v2659, 32
        %v3088 = vpop.permute.xlu0 %3087
        %3089 = vrot.lane.b32.xlu0 %v2664, 32
        %v3090 = vpop.permute.xlu0 %3089
        %vm3093 = vcmask 392448
        %3094 = vst.msk [vmem:[#allocation2] sm:$0xff] %vm3093, %v3088
        %3095 = vst.msk [vmem:[#allocation2 + $0x8] sm:$0xff] %vm3093, %v3090
        %3098 = vrot.lane.b32.xlu0 %v2740, 48
        %v3099 = vpop.permute.xlu0 %3098
        %3100 = vrot.lane.b32.xlu0 %v2745, 48
        %v3101 = vpop.permute.xlu0 %3100
        %vm3104 = vcmask 523648
        %3105 = vst.msk [vmem:[#allocation2] sm:$0xff] %vm3104, %v3099
        %3106 = vst.msk [vmem:[#allocation2 + $0x8] sm:$0xff] %vm3104, %v3101
        %3109 = vrot.lane.b32.xlu0 %v2821, 64
        %v3110 = vpop.permute.xlu0 %3109
        %3111 = vrot.lane.b32.xlu0 %v2826, 64
        %v3112 = vpop.permute.xlu0 %3111
        %vm3115 = vcmask 654848
        %3116 = vst.msk [vmem:[#allocation2] sm:$0xff] %vm3115, %v3110
        %3117 = vst.msk [vmem:[#allocation2 + $0x8] sm:$0xff] %vm3115, %v3112
        %3120 = vrot.lane.b32.xlu0 %v2902, 80
        %v3121 = vpop.permute.xlu0 %3120
        %3122 = vrot.lane.b32.xlu0 %v2907, 80
        %v3123 = vpop.permute.xlu0 %3122
        %vm3126 = vcmask 786048
        %3127 = vst.msk [vmem:[#allocation2] sm:$0xff] %vm3126, %v3121
        %3128 = vst.msk [vmem:[#allocation2 + $0x8] sm:$0xff] %vm3126, %v3123
        %3131 = vrot.lane.b32.xlu0 %v2983, 96
        %v3132 = vpop.permute.xlu0 %3131
        %3133 = vrot.lane.b32.xlu0 %v2988, 96
        %v3134 = vpop.permute.xlu0 %3133
        %vm3137 = vcmask 917248
        %3138 = vst.msk [vmem:[#allocation2] sm:$0xff] %vm3137, %v3132
        %3139 = vst.msk [vmem:[#allocation2 + $0x8] sm:$0xff] %vm3137, %v3134
        %3142 = vrot.lane.b32.xlu0 %v3064, 112
        %v3143 = vpop.permute.xlu0 %3142
        %3144 = vrot.lane.b32.xlu0 %v3069, 112
        %v3145 = vpop.permute.xlu0 %3144
        %vm3148 = vcmask 1048448
        %3149 = vst.msk [vmem:[#allocation2] sm:$0xff] %vm3148, %v3143
        %3150 = vst.msk [vmem:[#allocation2 + $0x8] sm:$0xff] %vm3148, %v3145
        %v3151 = vld [vmem:[#allocation2] sm:$0xff]
        %v3152 = vld [vmem:[#allocation2 + $0x8] sm:$0xff]
        %v3153 = vld [vmem:[#allocation12] sm:$0xff]
        %v3154 = vld [vmem:[#allocation12 + $0x8] sm:$0xff]
        %v3155 = vld [vmem:[#allocation12 + $0x10] sm:$0xff]
        %v3156 = vld [vmem:[#allocation12 + $0x18] sm:$0xff]
        %v3157 = vld [vmem:[#allocation12 + $0x20] sm:$0xff]
        %v3158 = vld [vmem:[#allocation12 + $0x28] sm:$0xff]
        %v3159 = vld [vmem:[#allocation12 + $0x30] sm:$0xff]
        %v3160 = vld [vmem:[#allocation12 + $0x38] sm:$0xff]
        %v3161 = vld [vmem:[#allocation12 + $0x40] sm:$0xff]
        %v3162 = vld [vmem:[#allocation12 + $0x48] sm:$0xff]
        %v3163 = vld [vmem:[#allocation12 + $0x50] sm:$0xff]
        %v3164 = vld [vmem:[#allocation12 + $0x58] sm:$0xff]
        %v3165 = vld [vmem:[#allocation12 + $0x60] sm:$0xff]
        %v3166 = vld [vmem:[#allocation12 + $0x68] sm:$0xff]
        %v3167 = vld [vmem:[#allocation12 + $0x70] sm:$0xff]
        %v3168 = vld [vmem:[#allocation12 + $0x78] sm:$0xff]
        %v3169 = vld [vmem:[%s7] sm:$0x1]
        %v3171 = vlaneseq
        %v3172 = vshrl.u32 %v3171, 7
        %v3173 = vsub.s32 0, %v3172
        %v3174 = vrot.slane %v3169, %v3173
        %3176 = vmatprep.subr.mxu0 0.0
        %3177 = vmatpush1.msra.mxu0 %v3153
        %3178 = vmatprep.subr.mxu0 0.0
        %3179 = vmatpush1.msra.mxu0 %v3154
        %3180 = vmatprep.subr.mxu0 0.0
        %3181 = vmatpush1.msra.mxu0 %v3155
        %3182 = vmatprep.subr.mxu0 0.0
        %3183 = vmatpush1.msra.mxu0 %v3156
        %3184 = vmatprep.subr.mxu0 0.0
        %3185 = vmatpush1.msra.mxu0 %v3157
        %3186 = vmatprep.subr.mxu0 0.0
        %3187 = vmatpush1.msra.mxu0 %v3158
        %3188 = vmatprep.subr.mxu0 0.0
        %3189 = vmatpush1.msra.mxu0 %v3159
        %3190 = vmatprep.subr.mxu0 0.0
        %3191 = vmatpush1.msra.mxu0 %v3160
        %3192 = vmatprep.subr.mxu0 0.0
        %3193 = vmatpush1.msra.mxu0 %v3161
        %3194 = vmatprep.subr.mxu0 0.0
        %3195 = vmatpush1.msra.mxu0 %v3162
        %3196 = vmatprep.subr.mxu0 0.0
        %3197 = vmatpush1.msra.mxu0 %v3163
        %3198 = vmatprep.subr.mxu0 0.0
        %3199 = vmatpush1.msra.mxu0 %v3164
        %3200 = vmatprep.subr.mxu0 0.0
        %3201 = vmatpush1.msra.mxu0 %v3165
        %3202 = vmatprep.subr.mxu0 0.0
        %3203 = vmatpush1.msra.mxu0 %v3166
        %3204 = vmatprep.subr.mxu0 0.0
        %3205 = vmatpush1.msra.mxu0 %v3167
        %3206 = vmatprep.subr.mxu0 0.0
        %3207 = vmatpush1.msra.mxu0 %v3168
        %3208 = vmatprep.subr.mxu0 0.0
        %3209 = vmatpush1.msra.mxu0 0.0
        %3210 = vmatprep.subr.mxu0 0.0
        %3211 = vmatpush1.msra.mxu0 0.0
        %3212 = vmatprep.subr.mxu0 0.0
        %3213 = vmatpush1.msra.mxu0 0.0
        %3214 = vmatprep.subr.mxu0 0.0
        %3215 = vmatpush1.msra.mxu0 0.0
        %3216 = vmatprep.subr.mxu0 0.0
        %3217 = vmatpush1.msra.mxu0 0.0
        %3218 = vmatprep.subr.mxu0 0.0
        %3219 = vmatpush1.msra.mxu0 0.0
        %3220 = vmatprep.subr.mxu0 0.0
        %3221 = vmatpush1.msra.mxu0 0.0
        %3222 = vmatprep.subr.mxu0 0.0
        %3223 = vmatpush1.msra.mxu0 0.0
        %3224 = vmatprep.subr.mxu0 0.0
        %3225 = vmatpush1.msra.mxu0 0.0
        %3226 = vmatprep.subr.mxu0 0.0
        %3227 = vmatpush1.msra.mxu0 0.0
        %3228 = vmatprep.subr.mxu0 0.0
        %3229 = vmatpush1.msra.mxu0 0.0
        %3230 = vmatprep.subr.mxu0 0.0
        %3231 = vmatpush1.msra.mxu0 0.0
        %3232 = vmatprep.subr.mxu0 0.0
        %3233 = vmatpush1.msra.mxu0 0.0
        %3234 = vmatprep.subr.mxu0 0.0
        %3235 = vmatpush1.msra.mxu0 0.0
        %3236 = vmatprep.subr.mxu0 0.0
        %3237 = vmatpush1.msra.mxu0 0.0
        %3238 = vmatprep.subr.mxu0 0.0
        %3239 = vmatpush1.msra.mxu0 0.0
        %3240 = vmatprep.mubr.f32.mxu0 0.0
        %3241 = vmatmul.mubr.f32.gmra.mrb[0].mxu0 %v3151
        %v3242 = vpop.f32.mrb[0].mxu0
        %v3243 = vadd.f32 %v3174, %v3242
        %v3244 = vpop.f32.mrb[0].mxu0
        %3245 = vmatprep.mubr.f32.mxu0 0.0
        %3246 = vmatmul.mubr.f32.gmra.mrb[0].mxu0 %v3152
        %v3247 = vpop.f32.mrb[0].mxu0
        %v3248 = vadd.f32 %v3174, %v3247
        %v3249 = vpop.f32.mrb[0].mxu0
        %3250 = vdwg.mxu0
        %v3251 = vadd.f32 %v1202, %v3243
        %v3252 = vadd.f32 %v1203, %v3248
        %v3253 = vld [vmem:[%s8] sm:$0x1]
        %v3254 = vld [vmem:[%s9] sm:$0x1]
        %3255 = vadd.xlane.f32.xlu0 %v3251
        %v3256 = vpop.xlane.xlu0 %3255
        %3257 = vadd.xlane.f32.xlu0 %v3252
        %v3258 = vpop.xlane.xlu0 %3257
        %v3259 = vrcp.pop 128.0
        %v3260 = vmul.f32 %v3256, %v3259
        %v3261 = vmul.f32 %v3258, %v3259
        %v3262 = vsub.f32 %v3251, %v3260
        %v3263 = vsub.f32 %v3252, %v3261
        %v3264 = vmul.f32 %v3262, %v3262
        %v3265 = vmul.f32 %v3263, %v3263
        %3266 = vadd.xlane.f32.xlu0 %v3264
        %v3267 = vpop.xlane.xlu0 %3266
        %3268 = vadd.xlane.f32.xlu0 %v3265
        %v3269 = vpop.xlane.xlu0 %3268
        %v3270 = vmul.f32 %v3267, %v3259
        %v3271 = vmul.f32 %v3269, %v3259
        %v3272 = vadd.f32 %v3270, 1e-05
        %v3273 = vadd.f32 %v3271, 1e-05
        %v3274 = vrsqrt.pop %v3272
        %v3275 = vrsqrt.pop %v3273
        %v3276 = vmul.f32 %v3262, %v3274
        %v3277 = vmul.f32 %v3263, %v3275
        %v3279 = vlaneseq
        %v3280 = vshrl.u32 %v3279, 7
        %v3281 = vsub.s32 0, %v3280
        %v3282 = vrot.slane %v3253, %v3281
        %v3284 = vmul.f32 %v3276, %v3282
        %v3285 = vmul.f32 %v3277, %v3282
        %v3287 = vlaneseq
        %v3288 = vshrl.u32 %v3287, 7
        %v3289 = vsub.s32 0, %v3288
        %v3290 = vrot.slane %v3254, %v3289
        %v3292 = vadd.f32 %v3284, %v3290
        %v3293 = vadd.f32 %v3285, %v3290
        %v3294 = vld [vmem:[#allocation14] sm:$0xff]
        %v3295 = vld [vmem:[#allocation14 + $0x8] sm:$0xff]
        %v3296 = vld [vmem:[#allocation14 + $0x10] sm:$0xff]
        %v3297 = vld [vmem:[#allocation14 + $0x18] sm:$0xff]
        %v3298 = vld [vmem:[#allocation14 + $0x20] sm:$0xff]
        %v3299 = vld [vmem:[#allocation14 + $0x28] sm:$0xff]
        %v3300 = vld [vmem:[#allocation14 + $0x30] sm:$0xff]
        %v3301 = vld [vmem:[#allocation14 + $0x38] sm:$0xff]
        %v3302 = vld [vmem:[#allocation14 + $0x40] sm:$0xff]
        %v3303 = vld [vmem:[#allocation14 + $0x48] sm:$0xff]
        %v3304 = vld [vmem:[#allocation14 + $0x50] sm:$0xff]
        %v3305 = vld [vmem:[#allocation14 + $0x58] sm:$0xff]
        %v3306 = vld [vmem:[#allocation14 + $0x60] sm:$0xff]
        %v3307 = vld [vmem:[#allocation14 + $0x68] sm:$0xff]
        %v3308 = vld [vmem:[#allocation14 + $0x70] sm:$0xff]
        %v3309 = vld [vmem:[#allocation14 + $0x78] sm:$0xff]
        %v3310 = vld [vmem:[#allocation14 + $0x80] sm:$0xff]
        %v3311 = vld [vmem:[#allocation14 + $0x88] sm:$0xff]
        %v3312 = vld [vmem:[#allocation14 + $0x90] sm:$0xff]
        %v3313 = vld [vmem:[#allocation14 + $0x98] sm:$0xff]
        %v3314 = vld [vmem:[#allocation14 + $0xa0] sm:$0xff]
        %v3315 = vld [vmem:[#allocation14 + $0xa8] sm:$0xff]
        %v3316 = vld [vmem:[#allocation14 + $0xb0] sm:$0xff]
        %v3317 = vld [vmem:[#allocation14 + $0xb8] sm:$0xff]
        %v3318 = vld [vmem:[#allocation14 + $0xc0] sm:$0xff]
        %v3319 = vld [vmem:[#allocation14 + $0xc8] sm:$0xff]
        %v3320 = vld [vmem:[#allocation14 + $0xd0] sm:$0xff]
        %v3321 = vld [vmem:[#allocation14 + $0xd8] sm:$0xff]
        %v3322 = vld [vmem:[#allocation14 + $0xe0] sm:$0xff]
        %v3323 = vld [vmem:[#allocation14 + $0xe8] sm:$0xff]
        %v3324 = vld [vmem:[#allocation14 + $0xf0] sm:$0xff]
        %v3325 = vld [vmem:[#allocation14 + $0xf8] sm:$0xff]
        %v3326 = vld [vmem:[#allocation14 + $0x100] sm:$0xff]
        %v3327 = vld [vmem:[#allocation14 + $0x108] sm:$0xff]
        %v3328 = vld [vmem:[#allocation14 + $0x110] sm:$0xff]
        %v3329 = vld [vmem:[#allocation14 + $0x118] sm:$0xff]
        %v3330 = vld [vmem:[#allocation14 + $0x120] sm:$0xff]
        %v3331 = vld [vmem:[#allocation14 + $0x128] sm:$0xff]
        %v3332 = vld [vmem:[#allocation14 + $0x130] sm:$0xff]
        %v3333 = vld [vmem:[#allocation14 + $0x138] sm:$0xff]
        %v3334 = vld [vmem:[#allocation14 + $0x140] sm:$0xff]
        %v3335 = vld [vmem:[#allocation14 + $0x148] sm:$0xff]
        %v3336 = vld [vmem:[#allocation14 + $0x150] sm:$0xff]
        %v3337 = vld [vmem:[#allocation14 + $0x158] sm:$0xff]
        %v3338 = vld [vmem:[#allocation14 + $0x160] sm:$0xff]
        %v3339 = vld [vmem:[#allocation14 + $0x168] sm:$0xff]
        %v3340 = vld [vmem:[#allocation14 + $0x170] sm:$0xff]
        %v3341 = vld [vmem:[#allocation14 + $0x178] sm:$0xff]
        %v3342 = vld [vmem:[#allocation14 + $0x180] sm:$0xff]
        %v3343 = vld [vmem:[#allocation14 + $0x188] sm:$0xff]
        %v3344 = vld [vmem:[#allocation14 + $0x190] sm:$0xff]
        %v3345 = vld [vmem:[#allocation14 + $0x198] sm:$0xff]
        %v3346 = vld [vmem:[#allocation14 + $0x1a0] sm:$0xff]
        %v3347 = vld [vmem:[#allocation14 + $0x1a8] sm:$0xff]
        %v3348 = vld [vmem:[#allocation14 + $0x1b0] sm:$0xff]
        %v3349 = vld [vmem:[#allocation14 + $0x1b8] sm:$0xff]
        %v3350 = vld [vmem:[#allocation14 + $0x1c0] sm:$0xff]
        %v3351 = vld [vmem:[#allocation14 + $0x1c8] sm:$0xff]
        %v3352 = vld [vmem:[#allocation14 + $0x1d0] sm:$0xff]
        %v3353 = vld [vmem:[#allocation14 + $0x1d8] sm:$0xff]
        %v3354 = vld [vmem:[#allocation14 + $0x1e0] sm:$0xff]
        %v3355 = vld [vmem:[#allocation14 + $0x1e8] sm:$0xff]
        %v3356 = vld [vmem:[#allocation14 + $0x1f0] sm:$0xff]
        %v3357 = vld [vmem:[#allocation14 + $0x1f8] sm:$0xff]
        %v3358 = vld [vmem:[%s11] sm:$0xf]
        %v3360 = vlaneseq
        %v3361 = vshrl.u32 %v3360, 7
        %v3362 = vsub.s32 0, %v3361
        %v3363 = vrot.slane %v3358, %v3362
        %v3364 = vlaneseq
        %v3365 = vshrl.u32 %v3364, 7
        %v3366 = vsub.s32 1, %v3365
        %v3367 = vrot.slane %v3358, %v3366
        %v3368 = vlaneseq
        %v3369 = vshrl.u32 %v3368, 7
        %v3370 = vsub.s32 2, %v3369
        %v3371 = vrot.slane %v3358, %v3370
        %v3372 = vlaneseq
        %v3373 = vshrl.u32 %v3372, 7
        %v3374 = vsub.s32 3, %v3373
        %v3375 = vrot.slane %v3358, %v3374
        %3380 = vmatprep.subr.mxu0 %v3295
        %3381 = vmatpush1.msra.mxu0 %v3294
        %3382 = vmatprep.subr.mxu0 %v3299
        %3383 = vmatpush1.msra.mxu0 %v3298
        %3384 = vmatprep.subr.mxu0 %v3303
        %3385 = vmatpush1.msra.mxu0 %v3302
        %3386 = vmatprep.subr.mxu0 %v3307
        %3387 = vmatpush1.msra.mxu0 %v3306
        %3388 = vmatprep.subr.mxu0 %v3311
        %3389 = vmatpush1.msra.mxu0 %v3310
        %3390 = vmatprep.subr.mxu0 %v3315
        %3391 = vmatpush1.msra.mxu0 %v3314
        %3392 = vmatprep.subr.mxu0 %v3319
        %3393 = vmatpush1.msra.mxu0 %v3318
        %3394 = vmatprep.subr.mxu0 %v3323
        %3395 = vmatpush1.msra.mxu0 %v3322
        %3396 = vmatprep.subr.mxu0 %v3327
        %3397 = vmatpush1.msra.mxu0 %v3326
        %3398 = vmatprep.subr.mxu0 %v3331
        %3399 = vmatpush1.msra.mxu0 %v3330
        %3400 = vmatprep.subr.mxu0 %v3335
        %3401 = vmatpush1.msra.mxu0 %v3334
        %3402 = vmatprep.subr.mxu0 %v3339
        %3403 = vmatpush1.msra.mxu0 %v3338
        %3404 = vmatprep.subr.mxu0 %v3343
        %3405 = vmatpush1.msra.mxu0 %v3342
        %3406 = vmatprep.subr.mxu0 %v3347
        %3407 = vmatpush1.msra.mxu0 %v3346
        %3408 = vmatprep.subr.mxu0 %v3351
        %3409 = vmatpush1.msra.mxu0 %v3350
        %3410 = vmatprep.subr.mxu0 %v3355
        %3411 = vmatpush1.msra.mxu0 %v3354
        %3412 = vmatprep.subr.mxu0 0.0
        %3413 = vmatpush1.msra.mxu0 0.0
        %3414 = vmatprep.subr.mxu0 0.0
        %3415 = vmatpush1.msra.mxu0 0.0
        %3416 = vmatprep.subr.mxu0 0.0
        %3417 = vmatpush1.msra.mxu0 0.0
        %3418 = vmatprep.subr.mxu0 0.0
        %3419 = vmatpush1.msra.mxu0 0.0
        %3420 = vmatprep.subr.mxu0 0.0
        %3421 = vmatpush1.msra.mxu0 0.0
        %3422 = vmatprep.subr.mxu0 0.0
        %3423 = vmatpush1.msra.mxu0 0.0
        %3424 = vmatprep.subr.mxu0 0.0
        %3425 = vmatpush1.msra.mxu0 0.0
        %3426 = vmatprep.subr.mxu0 0.0
        %3427 = vmatpush1.msra.mxu0 0.0
        %3428 = vmatprep.subr.mxu0 0.0
        %3429 = vmatpush1.msra.mxu0 0.0
        %3430 = vmatprep.subr.mxu0 0.0
        %3431 = vmatpush1.msra.mxu0 0.0
        %3432 = vmatprep.subr.mxu0 0.0
        %3433 = vmatpush1.msra.mxu0 0.0
        %3434 = vmatprep.subr.mxu0 0.0
        %3435 = vmatpush1.msra.mxu0 0.0
        %3436 = vmatprep.subr.mxu0 0.0
        %3437 = vmatpush1.msra.mxu0 0.0
        %3438 = vmatprep.subr.mxu0 0.0
        %3439 = vmatpush1.msra.mxu0 0.0
        %3440 = vmatprep.subr.mxu0 0.0
        %3441 = vmatpush1.msra.mxu0 0.0
        %3442 = vmatprep.subr.mxu0 0.0
        %3443 = vmatpush1.msra.mxu0 0.0
        %3444 = vmatprep.mubr.f32.mxu0 0.0
        %3445 = vmatmul.mubr.f32.gmra.mrb[0].mxu0 %v3292
        %v3446 = vpop.f32.mrb[0].mxu0
        %v3447 = vadd.f32 %v3363, %v3446
        %v3448 = vpop.f32.mrb[0].mxu0
        %v3449 = vadd.f32 %v3367, %v3448
        %3450 = vmatprep.mubr.f32.mxu0 0.0
        %3451 = vmatmul.mubr.f32.gmra.mrb[0].mxu0 %v3293
        %v3452 = vpop.f32.mrb[0].mxu0
        %v3453 = vadd.f32 %v3363, %v3452
        %v3454 = vpop.f32.mrb[0].mxu0
        %v3455 = vadd.f32 %v3367, %v3454
        %3456 = vdwg.mxu0
        %3457 = vmatprep.subr.mxu0 %v3297
        %3458 = vmatpush1.msra.mxu0 %v3296
        %3459 = vmatprep.subr.mxu0 %v3301
        %3460 = vmatpush1.msra.mxu0 %v3300
        %3461 = vmatprep.subr.mxu0 %v3305
        %3462 = vmatpush1.msra.mxu0 %v3304
        %3463 = vmatprep.subr.mxu0 %v3309
        %3464 = vmatpush1.msra.mxu0 %v3308
        %3465 = vmatprep.subr.mxu0 %v3313
        %3466 = vmatpush1.msra.mxu0 %v3312
        %3467 = vmatprep.subr.mxu0 %v3317
        %3468 = vmatpush1.msra.mxu0 %v3316
        %3469 = vmatprep.subr.mxu0 %v3321
        %3470 = vmatpush1.msra.mxu0 %v3320
        %3471 = vmatprep.subr.mxu0 %v3325
        %3472 = vmatpush1.msra.mxu0 %v3324
        %3473 = vmatprep.subr.mxu0 %v3329
        %3474 = vmatpush1.msra.mxu0 %v3328
        %3475 = vmatprep.subr.mxu0 %v3333
        %3476 = vmatpush1.msra.mxu0 %v3332
        %3477 = vmatprep.subr.mxu0 %v3337
        %3478 = vmatpush1.msra.mxu0 %v3336
        %3479 = vmatprep.subr.mxu0 %v3341
        %3480 = vmatpush1.msra.mxu0 %v3340
        %3481 = vmatprep.subr.mxu0 %v3345
        %3482 = vmatpush1.msra.mxu0 %v3344
        %3483 = vmatprep.subr.mxu0 %v3349
        %3484 = vmatpush1.msra.mxu0 %v3348
        %3485 = vmatprep.subr.mxu0 %v3353
        %3486 = vmatpush1.msra.mxu0 %v3352
        %3487 = vmatprep.subr.mxu0 %v3357
        %3488 = vmatpush1.msra.mxu0 %v3356
        %3489 = vmatprep.subr.mxu0 0.0
        %3490 = vmatpush1.msra.mxu0 0.0
        %3491 = vmatprep.subr.mxu0 0.0
        %3492 = vmatpush1.msra.mxu0 0.0
        %3493 = vmatprep.subr.mxu0 0.0
        %3494 = vmatpush1.msra.mxu0 0.0
        %3495 = vmatprep.subr.mxu0 0.0
        %3496 = vmatpush1.msra.mxu0 0.0
        %3497 = vmatprep.subr.mxu0 0.0
        %3498 = vmatpush1.msra.mxu0 0.0
        %3499 = vmatprep.subr.mxu0 0.0
        %3500 = vmatpush1.msra.mxu0 0.0
        %3501 = vmatprep.subr.mxu0 0.0
        %3502 = vmatpush1.msra.mxu0 0.0
        %3503 = vmatprep.subr.mxu0 0.0
        %3504 = vmatpush1.msra.mxu0 0.0
        %3505 = vmatprep.subr.mxu0 0.0
        %3506 = vmatpush1.msra.mxu0 0.0
        %3507 = vmatprep.subr.mxu0 0.0
        %3508 = vmatpush1.msra.mxu0 0.0
        %3509 = vmatprep.subr.mxu0 0.0
        %3510 = vmatpush1.msra.mxu0 0.0
        %3511 = vmatprep.subr.mxu0 0.0
        %3512 = vmatpush1.msra.mxu0 0.0
        %3513 = vmatprep.subr.mxu0 0.0
        %3514 = vmatpush1.msra.mxu0 0.0
        %3515 = vmatprep.subr.mxu0 0.0
        %3516 = vmatpush1.msra.mxu0 0.0
        %3517 = vmatprep.subr.mxu0 0.0
        %3518 = vmatpush1.msra.mxu0 0.0
        %3519 = vmatprep.subr.mxu0 0.0
        %3520 = vmatpush1.msra.mxu0 0.0
        %3521 = vmatprep.mubr.f32.mxu0 0.0
        %3522 = vmatmul.mubr.f32.gmra.mrb[0].mxu0 %v3292
        %v3523 = vpop.f32.mrb[0].mxu0
        %v3524 = vadd.f32 %v3371, %v3523
        %v3525 = vpop.f32.mrb[0].mxu0
        %v3526 = vadd.f32 %v3375, %v3525
        %3527 = vmatprep.mubr.f32.mxu0 0.0
        %3528 = vmatmul.mubr.f32.gmra.mrb[0].mxu0 %v3293
        %v3529 = vpop.f32.mrb[0].mxu0
        %v3530 = vadd.f32 %v3371, %v3529
        %v3531 = vpop.f32.mrb[0].mxu0
        %v3532 = vadd.f32 %v3375, %v3531
        %3533 = vdwg.mxu0
        %v3534 = vmax.f32 %v3447, 0.0
        %v3535 = vmax.f32 %v3449, 0.0
        %v3536 = vmax.f32 %v3524, 0.0
        %v3537 = vmax.f32 %v3526, 0.0
        %v3538 = vmax.f32 %v3453, 0.0
        %v3539 = vmax.f32 %v3455, 0.0
        %v3540 = vmax.f32 %v3530, 0.0
        %v3541 = vmax.f32 %v3532, 0.0
        %v3542 = vld [vmem:[#allocation15] sm:$0xff]
        %v3543 = vld [vmem:[#allocation15 + $0x8] sm:$0xff]
        %v3544 = vld [vmem:[#allocation15 + $0x10] sm:$0xff]
        %v3545 = vld [vmem:[#allocation15 + $0x18] sm:$0xff]
        %v3546 = vld [vmem:[#allocation15 + $0x20] sm:$0xff]
        %v3547 = vld [vmem:[#allocation15 + $0x28] sm:$0xff]
        %v3548 = vld [vmem:[#allocation15 + $0x30] sm:$0xff]
        %v3549 = vld [vmem:[#allocation15 + $0x38] sm:$0xff]
        %v3550 = vld [vmem:[#allocation15 + $0x40] sm:$0xff]
        %v3551 = vld [vmem:[#allocation15 + $0x48] sm:$0xff]
        %v3552 = vld [vmem:[#allocation15 + $0x50] sm:$0xff]
        %v3553 = vld [vmem:[#allocation15 + $0x58] sm:$0xff]
        %v3554 = vld [vmem:[#allocation15 + $0x60] sm:$0xff]
        %v3555 = vld [vmem:[#allocation15 + $0x68] sm:$0xff]
        %v3556 = vld [vmem:[#allocation15 + $0x70] sm:$0xff]
        %v3557 = vld [vmem:[#allocation15 + $0x78] sm:$0xff]
        %v3558 = vld [vmem:[#allocation15 + $0x80] sm:$0xff]
        %v3559 = vld [vmem:[#allocation15 + $0x88] sm:$0xff]
        %v3560 = vld [vmem:[#allocation15 + $0x90] sm:$0xff]
        %v3561 = vld [vmem:[#allocation15 + $0x98] sm:$0xff]
        %v3562 = vld [vmem:[#allocation15 + $0xa0] sm:$0xff]
        %v3563 = vld [vmem:[#allocation15 + $0xa8] sm:$0xff]
        %v3564 = vld [vmem:[#allocation15 + $0xb0] sm:$0xff]
        %v3565 = vld [vmem:[#allocation15 + $0xb8] sm:$0xff]
        %v3566 = vld [vmem:[#allocation15 + $0xc0] sm:$0xff]
        %v3567 = vld [vmem:[#allocation15 + $0xc8] sm:$0xff]
        %v3568 = vld [vmem:[#allocation15 + $0xd0] sm:$0xff]
        %v3569 = vld [vmem:[#allocation15 + $0xd8] sm:$0xff]
        %v3570 = vld [vmem:[#allocation15 + $0xe0] sm:$0xff]
        %v3571 = vld [vmem:[#allocation15 + $0xe8] sm:$0xff]
        %v3572 = vld [vmem:[#allocation15 + $0xf0] sm:$0xff]
        %v3573 = vld [vmem:[#allocation15 + $0xf8] sm:$0xff]
        %v3574 = vld [vmem:[#allocation15 + $0x100] sm:$0xff]
        %v3575 = vld [vmem:[#allocation15 + $0x108] sm:$0xff]
        %v3576 = vld [vmem:[#allocation15 + $0x110] sm:$0xff]
        %v3577 = vld [vmem:[#allocation15 + $0x118] sm:$0xff]
        %v3578 = vld [vmem:[#allocation15 + $0x120] sm:$0xff]
        %v3579 = vld [vmem:[#allocation15 + $0x128] sm:$0xff]
        %v3580 = vld [vmem:[#allocation15 + $0x130] sm:$0xff]
        %v3581 = vld [vmem:[#allocation15 + $0x138] sm:$0xff]
        %v3582 = vld [vmem:[#allocation15 + $0x140] sm:$0xff]
        %v3583 = vld [vmem:[#allocation15 + $0x148] sm:$0xff]
        %v3584 = vld [vmem:[#allocation15 + $0x150] sm:$0xff]
        %v3585 = vld [vmem:[#allocation15 + $0x158] sm:$0xff]
        %v3586 = vld [vmem:[#allocation15 + $0x160] sm:$0xff]
        %v3587 = vld [vmem:[#allocation15 + $0x168] sm:$0xff]
        %v3588 = vld [vmem:[#allocation15 + $0x170] sm:$0xff]
        %v3589 = vld [vmem:[#allocation15 + $0x178] sm:$0xff]
        %v3590 = vld [vmem:[#allocation15 + $0x180] sm:$0xff]
        %v3591 = vld [vmem:[#allocation15 + $0x188] sm:$0xff]
        %v3592 = vld [vmem:[#allocation15 + $0x190] sm:$0xff]
        %v3593 = vld [vmem:[#allocation15 + $0x198] sm:$0xff]
        %v3594 = vld [vmem:[#allocation15 + $0x1a0] sm:$0xff]
        %v3595 = vld [vmem:[#allocation15 + $0x1a8] sm:$0xff]
        %v3596 = vld [vmem:[#allocation15 + $0x1b0] sm:$0xff]
        %v3597 = vld [vmem:[#allocation15 + $0x1b8] sm:$0xff]
        %v3598 = vld [vmem:[#allocation15 + $0x1c0] sm:$0xff]
        %v3599 = vld [vmem:[#allocation15 + $0x1c8] sm:$0xff]
        %v3600 = vld [vmem:[#allocation15 + $0x1d0] sm:$0xff]
        %v3601 = vld [vmem:[#allocation15 + $0x1d8] sm:$0xff]
        %v3602 = vld [vmem:[#allocation15 + $0x1e0] sm:$0xff]
        %v3603 = vld [vmem:[#allocation15 + $0x1e8] sm:$0xff]
        %v3604 = vld [vmem:[#allocation15 + $0x1f0] sm:$0xff]
        %v3605 = vld [vmem:[#allocation15 + $0x1f8] sm:$0xff]
        %v3606 = vld [vmem:[%s13] sm:$0x1]
        %v3608 = vlaneseq
        %v3609 = vshrl.u32 %v3608, 7
        %v3610 = vsub.s32 0, %v3609
        %v3611 = vrot.slane %v3606, %v3610
        %3613 = vmatprep.subr.mxu0 0.0
        %3614 = vmatpush1.msra.mxu0 %v3542
        %3615 = vmatprep.subr.mxu0 0.0
        %3616 = vmatpush1.msra.mxu0 %v3543
        %3617 = vmatprep.subr.mxu0 0.0
        %3618 = vmatpush1.msra.mxu0 %v3544
        %3619 = vmatprep.subr.mxu0 0.0
        %3620 = vmatpush1.msra.mxu0 %v3545
        %3621 = vmatprep.subr.mxu0 0.0
        %3622 = vmatpush1.msra.mxu0 %v3546
        %3623 = vmatprep.subr.mxu0 0.0
        %3624 = vmatpush1.msra.mxu0 %v3547
        %3625 = vmatprep.subr.mxu0 0.0
        %3626 = vmatpush1.msra.mxu0 %v3548
        %3627 = vmatprep.subr.mxu0 0.0
        %3628 = vmatpush1.msra.mxu0 %v3549
        %3629 = vmatprep.subr.mxu0 0.0
        %3630 = vmatpush1.msra.mxu0 %v3550
        %3631 = vmatprep.subr.mxu0 0.0
        %3632 = vmatpush1.msra.mxu0 %v3551
        %3633 = vmatprep.subr.mxu0 0.0
        %3634 = vmatpush1.msra.mxu0 %v3552
        %3635 = vmatprep.subr.mxu0 0.0
        %3636 = vmatpush1.msra.mxu0 %v3553
        %3637 = vmatprep.subr.mxu0 0.0
        %3638 = vmatpush1.msra.mxu0 %v3554
        %3639 = vmatprep.subr.mxu0 0.0
        %3640 = vmatpush1.msra.mxu0 %v3555
        %3641 = vmatprep.subr.mxu0 0.0
        %3642 = vmatpush1.msra.mxu0 %v3556
        %3643 = vmatprep.subr.mxu0 0.0
        %3644 = vmatpush1.msra.mxu0 %v3557
        %3645 = vmatprep.subr.mxu0 0.0
        %3646 = vmatpush1.msra.mxu0 %v3558
        %3647 = vmatprep.subr.mxu0 0.0
        %3648 = vmatpush1.msra.mxu0 %v3559
        %3649 = vmatprep.subr.mxu0 0.0
        %3650 = vmatpush1.msra.mxu0 %v3560
        %3651 = vmatprep.subr.mxu0 0.0
        %3652 = vmatpush1.msra.mxu0 %v3561
        %3653 = vmatprep.subr.mxu0 0.0
        %3654 = vmatpush1.msra.mxu0 %v3562
        %3655 = vmatprep.subr.mxu0 0.0
        %3656 = vmatpush1.msra.mxu0 %v3563
        %3657 = vmatprep.subr.mxu0 0.0
        %3658 = vmatpush1.msra.mxu0 %v3564
        %3659 = vmatprep.subr.mxu0 0.0
        %3660 = vmatpush1.msra.mxu0 %v3565
        %3661 = vmatprep.subr.mxu0 0.0
        %3662 = vmatpush1.msra.mxu0 %v3566
        %3663 = vmatprep.subr.mxu0 0.0
        %3664 = vmatpush1.msra.mxu0 %v3567
        %3665 = vmatprep.subr.mxu0 0.0
        %3666 = vmatpush1.msra.mxu0 %v3568
        %3667 = vmatprep.subr.mxu0 0.0
        %3668 = vmatpush1.msra.mxu0 %v3569
        %3669 = vmatprep.subr.mxu0 0.0
        %3670 = vmatpush1.msra.mxu0 %v3570
        %3671 = vmatprep.subr.mxu0 0.0
        %3672 = vmatpush1.msra.mxu0 %v3571
        %3673 = vmatprep.subr.mxu0 0.0
        %3674 = vmatpush1.msra.mxu0 %v3572
        %3675 = vmatprep.subr.mxu0 0.0
        %3676 = vmatpush1.msra.mxu0 %v3573
        %3677 = vmatprep.mubr.f32.mxu0 %v3535
        %3678 = vmatmul.mubr.f32.gmra.mrb[0].mxu0 %v3534
        %v3679 = vpop.f32.mrb[0].mxu0
        %v3680 = vadd.f32 %v3611, %v3679
        %v3681 = vpop.f32.mrb[0].mxu0
        %3682 = vmatprep.mubr.f32.mxu0 %v3539
        %3683 = vmatmul.mubr.f32.gmra.mrb[0].mxu0 %v3538
        %v3684 = vpop.f32.mrb[0].mxu0
        %v3685 = vadd.f32 %v3611, %v3684
        %v3686 = vpop.f32.mrb[0].mxu0
        %3687 = vdwg.mxu0
        %3688 = vmatprep.subr.mxu0 0.0
        %3689 = vmatpush1.msra.mxu0 %v3574
        %3690 = vmatprep.subr.mxu0 0.0
        %3691 = vmatpush1.msra.mxu0 %v3575
        %3692 = vmatprep.subr.mxu0 0.0
        %3693 = vmatpush1.msra.mxu0 %v3576
        %3694 = vmatprep.subr.mxu0 0.0
        %3695 = vmatpush1.msra.mxu0 %v3577
        %3696 = vmatprep.subr.mxu0 0.0
        %3697 = vmatpush1.msra.mxu0 %v3578
        %3698 = vmatprep.subr.mxu0 0.0
        %3699 = vmatpush1.msra.mxu0 %v3579
        %3700 = vmatprep.subr.mxu0 0.0
        %3701 = vmatpush1.msra.mxu0 %v3580
        %3702 = vmatprep.subr.mxu0 0.0
        %3703 = vmatpush1.msra.mxu0 %v3581
        %3704 = vmatprep.subr.mxu0 0.0
        %3705 = vmatpush1.msra.mxu0 %v3582
        %3706 = vmatprep.subr.mxu0 0.0
        %3707 = vmatpush1.msra.mxu0 %v3583
        %3708 = vmatprep.subr.mxu0 0.0
        %3709 = vmatpush1.msra.mxu0 %v3584
        %3710 = vmatprep.subr.mxu0 0.0
        %3711 = vmatpush1.msra.mxu0 %v3585
        %3712 = vmatprep.subr.mxu0 0.0
        %3713 = vmatpush1.msra.mxu0 %v3586
        %3714 = vmatprep.subr.mxu0 0.0
        %3715 = vmatpush1.msra.mxu0 %v3587
        %3716 = vmatprep.subr.mxu0 0.0
        %3717 = vmatpush1.msra.mxu0 %v3588
        %3718 = vmatprep.subr.mxu0 0.0
        %3719 = vmatpush1.msra.mxu0 %v3589
        %3720 = vmatprep.subr.mxu0 0.0
        %3721 = vmatpush1.msra.mxu0 %v3590
        %3722 = vmatprep.subr.mxu0 0.0
        %3723 = vmatpush1.msra.mxu0 %v3591
        %3724 = vmatprep.subr.mxu0 0.0
        %3725 = vmatpush1.msra.mxu0 %v3592
        %3726 = vmatprep.subr.mxu0 0.0
        %3727 = vmatpush1.msra.mxu0 %v3593
        %3728 = vmatprep.subr.mxu0 0.0
        %3729 = vmatpush1.msra.mxu0 %v3594
        %3730 = vmatprep.subr.mxu0 0.0
        %3731 = vmatpush1.msra.mxu0 %v3595
        %3732 = vmatprep.subr.mxu0 0.0
        %3733 = vmatpush1.msra.mxu0 %v3596
        %3734 = vmatprep.subr.mxu0 0.0
        %3735 = vmatpush1.msra.mxu0 %v3597
        %3736 = vmatprep.subr.mxu0 0.0
        %3737 = vmatpush1.msra.mxu0 %v3598
        %3738 = vmatprep.subr.mxu0 0.0
        %3739 = vmatpush1.msra.mxu0 %v3599
        %3740 = vmatprep.subr.mxu0 0.0
        %3741 = vmatpush1.msra.mxu0 %v3600
        %3742 = vmatprep.subr.mxu0 0.0
        %3743 = vmatpush1.msra.mxu0 %v3601
        %3744 = vmatprep.subr.mxu0 0.0
        %3745 = vmatpush1.msra.mxu0 %v3602
        %3746 = vmatprep.subr.mxu0 0.0
        %3747 = vmatpush1.msra.mxu0 %v3603
        %3748 = vmatprep.subr.mxu0 0.0
        %3749 = vmatpush1.msra.mxu0 %v3604
        %3750 = vmatprep.subr.mxu0 0.0
        %3751 = vmatpush1.msra.mxu0 %v3605
        %3752 = vmatprep.mubr.f32.mxu0 %v3537
        %3753 = vmatmul.mubr.f32.gmra.mrb[0].mxu0 %v3536
        %v3754 = vpop.f32.mrb[0].mxu0
        %v3755 = vadd.f32 %v3680, %v3754
        %v3756 = vpop.f32.mrb[0].mxu0
        %3757 = vmatprep.mubr.f32.mxu0 %v3541
        %3758 = vmatmul.mubr.f32.gmra.mrb[0].mxu0 %v3540
        %v3759 = vpop.f32.mrb[0].mxu0
        %v3760 = vadd.f32 %v3685, %v3759
        %v3761 = vpop.f32.mrb[0].mxu0
        %3762 = vdwg.mxu0
        %v3763 = vadd.f32 %v3292, %v3755
        %v3764 = vadd.f32 %v3293, %v3760
        %v3765 = vld [vmem:[%s14] sm:$0x1]
        %v3766 = vld [vmem:[%s15] sm:$0x1]
        %3767 = vadd.xlane.f32.xlu0 %v3763
        %v3768 = vpop.xlane.xlu0 %3767
        %3769 = vadd.xlane.f32.xlu0 %v3764
        %v3770 = vpop.xlane.xlu0 %3769
        %v3771 = vmul.f32 %v3768, %v3259
        %v3772 = vmul.f32 %v3770, %v3259
        %v3773 = vsub.f32 %v3763, %v3771
        %v3774 = vsub.f32 %v3764, %v3772
        %v3775 = vmul.f32 %v3773, %v3773
        %v3776 = vmul.f32 %v3774, %v3774
        %3777 = vadd.xlane.f32.xlu0 %v3775
        %v3778 = vpop.xlane.xlu0 %3777
        %3779 = vadd.xlane.f32.xlu0 %v3776
        %v3780 = vpop.xlane.xlu0 %3779
        %v3781 = vmul.f32 %v3778, %v3259
        %v3782 = vmul.f32 %v3780, %v3259
        %v3783 = vadd.f32 %v3781, 1e-05
        %v3784 = vadd.f32 %v3782, 1e-05
        %v3785 = vrsqrt.pop %v3783
        %v3786 = vrsqrt.pop %v3784
        %v3787 = vmul.f32 %v3773, %v3785
        %v3788 = vmul.f32 %v3774, %v3786
        %v3790 = vlaneseq
        %v3791 = vshrl.u32 %v3790, 7
        %v3792 = vsub.s32 0, %v3791
        %v3793 = vrot.slane %v3765, %v3792
        %v3795 = vmul.f32 %v3787, %v3793
        %v3796 = vmul.f32 %v3788, %v3793
        %v3798 = vlaneseq
        %v3799 = vshrl.u32 %v3798, 7
        %v3800 = vsub.s32 0, %v3799
        %v3801 = vrot.slane %v3766, %v3800
        %v3803 = vadd.f32 %v3795, %v3801
        %v3804 = vadd.f32 %v3796, %v3801
        %v3805 = vld [vmem:[#allocation17] sm:$0xff]
        %v3806 = vld [vmem:[#allocation17 + $0x8] sm:$0xff]
        %v3807 = vld [vmem:[#allocation17 + $0x10] sm:$0xff]
        %v3808 = vld [vmem:[#allocation17 + $0x18] sm:$0xff]
        %v3809 = vld [vmem:[#allocation17 + $0x20] sm:$0xff]
        %v3810 = vld [vmem:[#allocation17 + $0x28] sm:$0xff]
        %v3811 = vld [vmem:[#allocation17 + $0x30] sm:$0xff]
        %v3812 = vld [vmem:[#allocation17 + $0x38] sm:$0xff]
        %v3813 = vld [vmem:[#allocation17 + $0x40] sm:$0xff]
        %v3814 = vld [vmem:[#allocation17 + $0x48] sm:$0xff]
        %v3815 = vld [vmem:[#allocation17 + $0x50] sm:$0xff]
        %v3816 = vld [vmem:[#allocation17 + $0x58] sm:$0xff]
        %v3817 = vld [vmem:[#allocation17 + $0x60] sm:$0xff]
        %v3818 = vld [vmem:[#allocation17 + $0x68] sm:$0xff]
        %v3819 = vld [vmem:[#allocation17 + $0x70] sm:$0xff]
        %v3820 = vld [vmem:[#allocation17 + $0x78] sm:$0xff]
        %v3821 = vld [vmem:[%s17] sm:$0x1]
        %v3823 = vlaneseq
        %v3824 = vshrl.u32 %v3823, 7
        %v3825 = vsub.s32 0, %v3824
        %v3826 = vrot.slane %v3821, %v3825
        %3828 = vmatprep.subr.mxu0 0.0
        %3829 = vmatpush1.msra.mxu0 %v3805
        %3830 = vmatprep.subr.mxu0 0.0
        %3831 = vmatpush1.msra.mxu0 %v3806
        %3832 = vmatprep.subr.mxu0 0.0
        %3833 = vmatpush1.msra.mxu0 %v3807
        %3834 = vmatprep.subr.mxu0 0.0
        %3835 = vmatpush1.msra.mxu0 %v3808
        %3836 = vmatprep.subr.mxu0 0.0
        %3837 = vmatpush1.msra.mxu0 %v3809
        %3838 = vmatprep.subr.mxu0 0.0
        %3839 = vmatpush1.msra.mxu0 %v3810
        %3840 = vmatprep.subr.mxu0 0.0
        %3841 = vmatpush1.msra.mxu0 %v3811
        %3842 = vmatprep.subr.mxu0 0.0
        %3843 = vmatpush1.msra.mxu0 %v3812
        %3844 = vmatprep.subr.mxu0 0.0
        %3845 = vmatpush1.msra.mxu0 %v3813
        %3846 = vmatprep.subr.mxu0 0.0
        %3847 = vmatpush1.msra.mxu0 %v3814
        %3848 = vmatprep.subr.mxu0 0.0
        %3849 = vmatpush1.msra.mxu0 %v3815
        %3850 = vmatprep.subr.mxu0 0.0
        %3851 = vmatpush1.msra.mxu0 %v3816
        %3852 = vmatprep.subr.mxu0 0.0
        %3853 = vmatpush1.msra.mxu0 %v3817
        %3854 = vmatprep.subr.mxu0 0.0
        %3855 = vmatpush1.msra.mxu0 %v3818
        %3856 = vmatprep.subr.mxu0 0.0
        %3857 = vmatpush1.msra.mxu0 %v3819
        %3858 = vmatprep.subr.mxu0 0.0
        %3859 = vmatpush1.msra.mxu0 %v3820
        %3860 = vmatprep.subr.mxu0 0.0
        %3861 = vmatpush1.msra.mxu0 0.0
        %3862 = vmatprep.subr.mxu0 0.0
        %3863 = vmatpush1.msra.mxu0 0.0
        %3864 = vmatprep.subr.mxu0 0.0
        %3865 = vmatpush1.msra.mxu0 0.0
        %3866 = vmatprep.subr.mxu0 0.0
        %3867 = vmatpush1.msra.mxu0 0.0
        %3868 = vmatprep.subr.mxu0 0.0
        %3869 = vmatpush1.msra.mxu0 0.0
        %3870 = vmatprep.subr.mxu0 0.0
        %3871 = vmatpush1.msra.mxu0 0.0
        %3872 = vmatprep.subr.mxu0 0.0
        %3873 = vmatpush1.msra.mxu0 0.0
        %3874 = vmatprep.subr.mxu0 0.0
        %3875 = vmatpush1.msra.mxu0 0.0
        %3876 = vmatprep.subr.mxu0 0.0
        %3877 = vmatpush1.msra.mxu0 0.0
        %3878 = vmatprep.subr.mxu0 0.0
        %3879 = vmatpush1.msra.mxu0 0.0
        %3880 = vmatprep.subr.mxu0 0.0
        %3881 = vmatpush1.msra.mxu0 0.0
        %3882 = vmatprep.subr.mxu0 0.0
        %3883 = vmatpush1.msra.mxu0 0.0
        %3884 = vmatprep.subr.mxu0 0.0
        %3885 = vmatpush1.msra.mxu0 0.0
        %3886 = vmatprep.subr.mxu0 0.0
        %3887 = vmatpush1.msra.mxu0 0.0
        %3888 = vmatprep.subr.mxu0 0.0
        %3889 = vmatpush1.msra.mxu0 0.0
        %3890 = vmatprep.subr.mxu0 0.0
        %3891 = vmatpush1.msra.mxu0 0.0
        %3892 = vmatprep.mubr.f32.mxu0 0.0
        %3893 = vmatmul.mubr.f32.gmra.mrb[0].mxu0 %v3803
        %v3894 = vpop.f32.mrb[0].mxu0
        %v3895 = vadd.f32 %v3826, %v3894
        %v3896 = vpop.f32.mrb[0].mxu0
        %3897 = vmatprep.mubr.f32.mxu0 0.0
        %3898 = vmatmul.mubr.f32.gmra.mrb[0].mxu0 %v3804
        %v3899 = vpop.f32.mrb[0].mxu0
        %v3900 = vadd.f32 %v3826, %v3899
        %v3901 = vpop.f32.mrb[0].mxu0
        %3902 = vdwg.mxu0
        %3903 = vst [vmem:[%s746] sm:$0xff] %v3895
        %3904 = vst [vmem:[%s746 + $0x8] sm:$0xff] %v3900
        %s3905 = sand.u32 %s435, 1
        %s3906 = scalar_lea.sflag [#allocation5], %s3905
        %s3907 = sand.u32 %s435, 1
        %s3908 = smul.addr %s3907, 16
        %s3909 = scalar_lea.vmem [#allocation18], %s3908
        %s3910 = sand.u32 %s461, 1
        %s3911 = scalar_lea.sflag [#allocation20], %s3910
        %s3912 = sand.u32 %s461, 1
        %s3913 = smul.addr %s3912, 16
        %s3914 = scalar_lea.vmem [#allocation19], %s3913
        // Predicated region
        $region129: #{tpu_custom_call.1} parent=91 // pred_check
          %p3915 = pneg %p445
        $region130: #{tpu_custom_call.1} parent=91 // pred_check_branch
          %3917 = sbr.rel (%p3915) target = $region132
        $region131: #{tpu_custom_call.1} parent=91 // pred_region
          %s3919 = ssub.s32 256, 256
          %3920 = vsyncadd %s3906, %s3919
          %s3921 = smul.addr %s44, 2
          %s3922 = smul.addr %s3921, 128
          %s3923 = scalar_lea.hbm %s18, %s3922
          %s3924 = sshll.u32 %s3909, 4
          %s3925 = int_to_ptr.vmem [resolvable:$true] %s3924
          %3930 = dma.vmem_to_hbm [thread:$0]  %s3925, 256, %s3923, %s3906, 128, 128, 8
        $region132: #{tpu_custom_call.1} parent=91 // pred_fallthru
          _
        // Predicated region
        $region133: #{tpu_custom_call.1} parent=91 // pred_check
          %p3931 = pneg %p471
        $region134: #{tpu_custom_call.1} parent=91 // pred_check_branch
          %3933 = sbr.rel (%p3931) target = $region136
        $region135: #{tpu_custom_call.1} parent=91 // pred_region
          %s3934 = smul.u32 2, %s44
          %s3936 = ssub.s32 256, 256
          %3937 = vsyncadd %s3911, %s3936
          %s3938 = smul.addr %s3934, 128
          %s3939 = scalar_lea.hbm %s19, %s3938
          %s3940 = sshll.u32 %s3914, 4
          %s3941 = int_to_ptr.vmem [resolvable:$true] %s3940
          %3946 = dma.vmem_to_hbm [thread:$0]  %s3941, 256, %s3939, %s3911, 128, 128, 8
        $region136: #{tpu_custom_call.1} parent=91 // pred_fallthru
          _
      $region92: #{tpu_custom_call.1} parent=5 // pred_fallthru
        _
      %p3947 = scmp.le.s32.totalorder 2, %s39
      // Predicated region
      $region137: #{tpu_custom_call.1} parent=5 // pred_check
        %p3948 = pneg %p3947
      $region138: #{tpu_custom_call.1} parent=5 // pred_check_branch
        %3950 = sbr.rel (%p3948) target = $region140
      $region139: #{tpu_custom_call.1} parent=5 // pred_region
        %s3951 = ssub.s32 %s39, 2
        // Predicated region
        $region141: #{tpu_custom_call.1} parent=139 // pred_check
          %p3952 = pneg %p451
        $region142: #{tpu_custom_call.1} parent=139 // pred_check_branch
          %3954 = sbr.rel (%p3952) target = $region144
        $region143: #{tpu_custom_call.1} parent=139 // pred_region
          %s3955 = sand.u32 %s436, 1
          %s3956 = scalar_lea.sflag [#allocation5], %s3955
          %s3957 = sand.u32 %s436, 1
          %s3958 = smul.addr %s3957, 16
          %s3959 = scalar_lea.vmem [#allocation18], %s3958
          %3960 = dma.done %s3956, 256
        $region144: #{tpu_custom_call.1} parent=139 // pred_fallthru
          _
        // Predicated region
        $region145: #{tpu_custom_call.1} parent=139 // pred_check
          %p3961 = pneg %p477
        $region146: #{tpu_custom_call.1} parent=139 // pred_check_branch
          %3963 = sbr.rel (%p3961) target = $region148
        $region147: #{tpu_custom_call.1} parent=139 // pred_region
          %s3964 = sand.u32 %s462, 1
          %s3965 = scalar_lea.sflag [#allocation20], %s3964
          %s3966 = sand.u32 %s462, 1
          %s3967 = smul.addr %s3966, 16
          %s3968 = scalar_lea.vmem [#allocation19], %s3967
          %3969 = dma.done %s3965, 256
        $region148: #{tpu_custom_call.1} parent=139 // pred_fallthru
          _
      $region140: #{tpu_custom_call.1} parent=5 // pred_fallthru
        _
    $region6: #{tpu_custom_call.1} parent=1 // loop_footer
      %s43 = sadd.s32 1, %s39
    $region7: #{tpu_custom_call.1} parent=1 // loop_footer_branch
      %38 = sbr.rel target = $region3
    $region8: #{tpu_custom_call.1} parent=1 // loop_exit
      _
    %3970 = vsyncpa [#allocation4], 1
    %s3971 = scalar_lea.sflag [#allocation4], 1
    %3972 = vsyncpa %s3971, 1
    %3973 = vsyncpa [#allocation7], 1
    %3974 = vsyncpa [#allocation10], 1
    %3975 = vsyncpa [#allocation13], 1
    %3976 = vsyncpa [#allocation16], 1
    %3977 = vsyncpa [#allocation5], 1
    %s3978 = scalar_lea.sflag [#allocation5], 1
    %3979 = vsyncpa %s3978, 1
    %3980 = vsyncpa [#allocation20], 1
    %s3981 = scalar_lea.sflag [#allocation20], 1
    %3982 = vsyncpa %s3981, 1

</llo_original>
